<compile_context>
chip_gen: v7x
topology: tpu7x:2x2x1
jax: 0.10.0
libtpu: 0.0.40
codegen_flags: <defaults>
</compile_context>

<pallas_src>
import functools

import numpy as np
import jax
import jax.numpy as jnp
from jax.experimental import pallas as pl
from jax.experimental.pallas import tpu as pltpu


def _pair(x):
    return (x, x) if isinstance(x, int) else tuple(x)


def _phase_slices(xp, phases, dH, dW, qH, qW, c_pad):
    """xp: zero-padded (B, C, Hp, Wp).

    Returns one (B, c_pad, qH, qW) array per (rH, rW) phase with
    out[:, c, a, b] = xp[:, c, rH + a*dH, rW + b*dW]   (zero padded past the
    end / past C; padded entries are never read or contribute zero).
    """
    outs = []
    for (rH, rW) in phases:
        p = xp[:, :, rH::dH, rW::dW][:, :, :qH, :qW]
        padc = c_pad - p.shape[1]
        padh = qH - p.shape[2]
        padw = qW - p.shape[3]
        if padc or padh or padw:
            p = jnp.pad(p, ((0, 0), (0, padc), (0, padh), (0, padw)))
        outs.append(p)
    return outs


def _corr_kernel(*refs, n1, n2, x1_pidx, x2_pidx, Cb, kH, kW, patchH, patchW,
                 dH, dW, dpH, dpW, oH, oW, cchunk):
    # refs = [x1 phase refs (n1)] + [x2 phase refs (n2)] + [out_ref, acc_ref]
    # x1 phase ref : (1, Cb, qH1, qW1)   polyphase slice of padded input1
    # x2 phase ref : (1, Cb, qH2, qW2)   polyphase slice of padded input2
    # out_ref      : (1, patchH, patchW, oH, oW)
    # acc_ref      : (patchH, patchW, oH, oW) f32 scratch, persists over the
    #                channel-block grid axis.
    x1_refs = refs[:n1]
    x2_refs = refs[n1:n1 + n2]
    out_ref = refs[n1 + n2]
    acc_ref = refs[n1 + n2 + 1]

    cblk = pl.program_id(1)

    @pl.when(cblk == 0)
    def _init():
        acc_ref[...] = jnp.zeros_like(acc_ref)

    # All loop bounds / slice starts below are Python ints -> static slices.
    for i in range(kH):
        off1_r, ph1_r = i // dH, i % dH
        for j in range(kW):
            off1_c, ph1_c = j // dW, j % dW
            x1_ref = x1_refs[x1_pidx[(ph1_r, ph1_c)]]
            for c0 in range(0, Cb, cchunk):
                cc = min(cchunk, Cb - c0)
                # Load the x1 chunk ONCE per (i, j, c0); reused for every
                # (ph, pw) displacement below.
                a = x1_ref[0, pl.ds(c0, cc),
                           pl.ds(off1_r, oH), pl.ds(off1_c, oW)]
                for ph in range(patchH):
                    r2 = ph * dpH + i
                    off2_r, ph2_r = r2 // dH, r2 % dH
                    for pw in range(patchW):
                        c2 = pw * dpW + j
                        off2_c, ph2_c = c2 // dW, c2 % dW
                        x2_ref = x2_refs[x2_pidx[(ph2_r, ph2_c)]]
                        b = x2_ref[0, pl.ds(c0, cc),
                                   pl.ds(off2_r, oH), pl.ds(off2_c, oW)]
                        # multiply in native dtype; widen at the reduction
                        part = jnp.sum((a * b).astype(jnp.float32), axis=0)
                        acc_ref[ph, pw] += part

    @pl.when(cblk == pl.num_programs(1) - 1)
    def _store():
        # Single dense writeback of the whole displacement slab per batch.
        out_ref[0] = acc_ref[...].astype(out_ref.dtype)


def spatial_correlation_sampler(input1, input2, kernel_size=1, patch_size=1,
                                stride=1, padding=0, dilation=1,
                                dilation_patch=1):
    kH, kW = _pair(kernel_size)
    patchH, patchW = _pair(patch_size)
    dH, dW = _pair(stride)
    padH, padW = _pair(padding)
    dpH, dpW = _pair(dilation_patch)
    dilH, dilW = _pair(dilation)
    if dilH != 1 or dilW != 1:
        # The reference python Function never forwards `dilation` to the CUDA
        # op, so only dilation == 1 has well-defined reference semantics.
        raise NotImplementedError("dilation != 1 is not supported")

    B, C, H, W = input1.shape
    pH1, pW1 = H + 2 * padH, W + 2 * padW
    oH = (pH1 - kH) // dH + 1
    oW = (pW1 - kW) // dW + 1
    patchRadH = dpH * (patchH - 1) // 2
    patchRadW = dpW * (patchW - 1) // 2

    # Zero padding makes all kernel indices in-bounds; OOB terms contribute 0.
    x1p = jnp.pad(input1, ((0, 0), (0, 0), (padH, padH), (padW, padW)))
    x2p = jnp.pad(
        input2,
        ((0, 0), (0, 0),
         (padH + patchRadH, padH + dpH * (patchH - 1) - patchRadH),
         (padW + patchRadW, padW + dpW * (patchW - 1) - patchRadW)))

    # Polyphase (stride-phase) packing: every in-kernel slice is a contiguous
    # static window of exactly (oH, oW) strided output points.
    qH1 = (kH - 1) // dH + oH
    qW1 = (kW - 1) // dW + oW
    qH2 = (dpH * (patchH - 1) + kH - 1) // dH + oH
    qW2 = (dpW * (patchW - 1) + kW - 1) // dW + oW

    # Only the phases actually touched by some tap are packed / DMA'd.
    x1_phases = sorted({(i % dH, j % dW)
                        for i in range(kH) for j in range(kW)})
    x2_phases = sorted({((ph * dpH + i) % dH, (pw * dpW + j) % dW)
                        for ph in range(patchH) for pw in range(patchW)
                        for i in range(kH) for j in range(kW)})
    x1_pidx = {p: n for n, p in enumerate(x1_phases)}
    x2_pidx = {p: n for n, p in enumerate(x2_phases)}

    # ---- VMEM budgeting: pick a channel-block size ct so the per-grid-step
    # blocks (double-buffered) fit the actual chip's VMEM. ----
    itemsize = np.dtype(input1.dtype).itemsize

    def tile_bytes(h, w):          # (8,128)-tile-padded plane size
        return (-(-h // 8) * 8) * (-(-w // 128) * 128) * itemsize

    per_chan = (len(x1_phases) * tile_bytes(qH1, qW1)
                + len(x2_phases) * tile_bytes(qH2, qW2))
    out_block_elems = patchH * patchW * (-(-oH // 8) * 8) * (-(-oW // 128) * 128)
    fixed = 4 * out_block_elems              # f32 accumulator scratch
    fixed += 2 * out_block_elems * itemsize  # double-buffered output block

    try:
        vmem_cap = int(getattr(pltpu.get_tpu_info(), "vmem_capacity_bytes",
                               64 << 20))
    except Exception:  # pragma: no cover - conservative fallback
        vmem_cap = 64 << 20
    budget = min(vmem_cap, 128 << 20) - (16 << 20)   # headroom for Mosaic

    ct = C
    while ct > 1 and 2 * ct * per_chan + fixed > budget:
        ct = -(-ct // 2)
    ncb = -(-C // ct)
    c_pad = ncb * ct            # zero-padded channels contribute 0

    need = 2 * ct * per_chan + fixed + (4 << 20)
    vmem_limit = int(min(max(need, 32 << 20), vmem_cap - (4 << 20)))

    # Per-iteration live-channel count from a vreg budget (a + b chunks).
    vregs_per_slice = (-(-oH // 8)) * (-(-oW // 128))
    cchunk = max(1, min(ct, 40 // max(1, 2 * vregs_per_slice)))

    x1_list = _phase_slices(x1p, x1_phases, dH, dW, qH1, qW1, c_pad)
    x2_list = _phase_slices(x2p, x2_phases, dH, dW, qH2, qW2, c_pad)

    kernel = functools.partial(
        _corr_kernel, n1=len(x1_list), n2=len(x2_list),
        x1_pidx=x1_pidx, x2_pidx=x2_pidx,
        Cb=ct, kH=kH, kW=kW, patchH=patchH, patchW=patchW,
        dH=dH, dW=dW, dpH=dpH, dpW=dpW, oH=oH, oW=oW, cchunk=cchunk)

    in_specs = (
        [pl.BlockSpec((1, ct, qH1, qW1), lambda b, c: (b, c, 0, 0))]
        * len(x1_list)
        + [pl.BlockSpec((1, ct, qH2, qW2), lambda b, c: (b, c, 0, 0))]
        * len(x2_list))

    out = pl.pallas_call(
        kernel,
        out_shape=jax.ShapeDtypeStruct((B, patchH, patchW, oH, oW),
                                       input1.dtype),
        grid=(B, ncb),
        in_specs=in_specs,
        out_specs=pl.BlockSpec((1, patchH, patchW, oH, oW),
                               lambda b, c: (b, 0, 0, 0, 0)),
        scratch_shapes=[pltpu.VMEM((patchH, patchW, oH, oW), jnp.float32)],
        compiler_params=pltpu.CompilerParams(
            dimension_semantics=("parallel", "arbitrary"),
            vmem_limit_bytes=vmem_limit),
    )(*x1_list, *x2_list)
    return out


class SpatialCorrelationSampler:
    """JAX/Pallas equivalent of the PyTorch SpatialCorrelationSampler module."""

    def __init__(self, kernel_size=1, patch_size=1, stride=1, padding=0,
                 dilation=1, dilation_patch=1):
        self.kernel_size = kernel_size
        self.patch_size = patch_size
        self.stride = stride
        self.padding = padding
        self.dilation = dilation
        self.dilation_patch = dilation_patch

    def __call__(self, input1, input2):
        return spatial_correlation_sampler(
            input1, input2, self.kernel_size, self.patch_size, self.stride,
            self.padding, self.dilation, self.dilation_patch)


def _reference_correlation(x1, x2, kH, kW, patchH, patchW, padH, padW,
                           dpH, dpW, dH, dW):
    """Direct numpy port of the CUDA forward kernel (independent check)."""
    B, C, H, W = x1.shape
    oH = (H + 2 * padH - kH) // dH + 1
    oW = (W + 2 * padW - kW) // dW + 1
    patchRadH = dpH * (patchH - 1) // 2
    patchRadW = dpW * (patchW - 1) // 2
    out = np.zeros((B, patchH, patchW, oH, oW), np.float32)
    for n in range(B):
        for ph in range(patchH):
            for pw in range(patchW):
                for h in range(oH):
                    for w in range(oW):
                        s = 0.0
                        for i in range(kH):
                            i1 = h * dH - padH + i
                            i2 = i1 + ph * dpH - patchRadH
                            if 0 <= i1 < H and 0 <= i2 < H:
                                for j in range(kW):
                                    j1 = w * dW - padW + j
                                    j2 = j1 + pw * dpW - patchRadW
                                    if 0 <= j1 < W and 0 <= j2 < W:
                                        s += float(np.dot(x1[n, :, i1, j1],
                                                          x2[n, :, i2, j2]))
                        out[n, ph, pw, h, w] = s
    return out


if __name__ == "__main__":
    key = jax.random.PRNGKey(0)
    k1, k2 = jax.random.split(key)
    B, C, H, W = 2, 4, 16, 16
    x1 = jax.random.normal(k1, (B, C, H, W), jnp.float32)
    x2 = jax.random.normal(k2, (B, C, H, W), jnp.float32)

    # Config 1: kernel 3, patch 3, stride 2, pad 1, dilation_patch 2.
    sampler = SpatialCorrelationSampler(kernel_size=3, patch_size=3, stride=2,
                                        padding=1, dilation=1, dilation_patch=2)
    out = jax.block_until_ready(sampler(x1, x2))
    ref = _reference_correlation(np.asarray(x1), np.asarray(x2),
                                 kH=3, kW=3, patchH=3, patchW=3,
                                 padH=1, padW=1, dpH=2, dpW=2, dH=2, dW=2)
    assert out.shape == ref.shape, (out.shape, ref.shape)
    np.testing.assert_allclose(np.asarray(out), ref, rtol=1e-4, atol=1e-4)

    # Config 2: classic cost-volume setting (kernel 1, patch 5, stride 1).
    sampler2 = SpatialCorrelationSampler(kernel_size=1, patch_size=5, stride=1,
                                         padding=0, dilation=1,
                                         dilation_patch=1)
    out2 = jax.block_until_ready(sampler2(x1, x2))
    ref2 = _reference_correlation(np.asarray(x1), np.asarray(x2),
                                  kH=1, kW=1, patchH=5, patchW=5,
                                  padH=0, padW=0, dpH=1, dpW=1, dH=1, dW=1)
    assert out2.shape == ref2.shape, (out2.shape, ref2.shape)
    np.testing.assert_allclose(np.asarray(out2), ref2, rtol=1e-4, atol=1e-4)

    print("KERNEL_OK")
</pallas_src>

<mosaic_0001>
module attributes {stable_mosaic.version = 11 : i64} {
  func.func @_corr_kernel(%arg0: i32, %arg1: i32, %arg2: memref<1x4x9x9xf32, #tpu.memory_space<vmem>>, %arg3: memref<1x4x9x9xf32, #tpu.memory_space<vmem>>, %arg4: memref<1x4x9x9xf32, #tpu.memory_space<vmem>>, %arg5: memref<1x4x9x9xf32, #tpu.memory_space<vmem>>, %arg6: memref<1x4x11x11xf32, #tpu.memory_space<vmem>>, %arg7: memref<1x4x11x11xf32, #tpu.memory_space<vmem>>, %arg8: memref<1x4x11x11xf32, #tpu.memory_space<vmem>>, %arg9: memref<1x4x11x11xf32, #tpu.memory_space<vmem>>, %arg10: memref<1x3x3x8x8xf32, #tpu.memory_space<vmem>>, %arg11: memref<3x3x8x8xf32, #tpu.memory_space<vmem>>) attributes {dimension_semantics = [#tpu.dimension_semantics<parallel>, #tpu.dimension_semantics<arbitrary>], iteration_bounds = array<i64: 2, 1>, scalar_prefetch = 0 : i64, scratch_operands = 1 : i64, tpu.core_type = #tpu.core_type<tc>, window_params = [{transform_indices = @transform_0, window_bounds = array<i64: 1, 4, 9, 9>}, {transform_indices = @transform_1, window_bounds = array<i64: 1, 4, 9, 9>}, {transform_indices = @transform_2, window_bounds = array<i64: 1, 4, 9, 9>}, {transform_indices = @transform_3, window_bounds = array<i64: 1, 4, 9, 9>}, {transform_indices = @transform_4, window_bounds = array<i64: 1, 4, 11, 11>}, {transform_indices = @transform_5, window_bounds = array<i64: 1, 4, 11, 11>}, {transform_indices = @transform_6, window_bounds = array<i64: 1, 4, 11, 11>}, {transform_indices = @transform_7, window_bounds = array<i64: 1, 4, 11, 11>}, {transform_indices = @transform_8, window_bounds = array<i64: 1, 3, 3, 8, 8>}]} {
    %c0_i32 = arith.constant 0 : i32
    %0 = arith.cmpi eq, %arg1, %c0_i32 : i32
    %1 = arith.extui %0 : i1 to i32
    %c0_i32_0 = arith.constant 0 : i32
    %2 = arith.cmpi ne, %1, %c0_i32_0 : i32
    scf.if %2 {
      %cst_1087 = arith.constant 0.000000e+00 : f32
      %834 = vector.broadcast %cst_1087 : f32 to vector<3x3x8x8xf32>
      %c0_1088 = arith.constant 0 : index
      %c0_1089 = arith.constant 0 : index
      %c0_1090 = arith.constant 0 : index
      %c0_1091 = arith.constant 0 : index
      %835 = vector.load %arg11[%c0_1088, %c0_1089, %c0_1090, %c0_1091] : memref<3x3x8x8xf32, #tpu.memory_space<vmem>>, vector<3x3x8x8xf32>
      tpu.vector_store %arg11[%c0_1088, %c0_1089, %c0_1090, %c0_1091], %834 {strides = array<i32>} : memref<3x3x8x8xf32, #tpu.memory_space<vmem>>, vector<3x3x8x8xf32>,
    } else {
    }
    %c0 = arith.constant 0 : index
    %c0_1 = arith.constant 0 : index
    %c0_2 = arith.constant 0 : index
    %c0_3 = arith.constant 0 : index
    %3 = vector.load %arg2[%c0, %c0_1, %c0_2, %c0_3] : memref<1x4x9x9xf32, #tpu.memory_space<vmem>>, vector<1x4x8x8xf32>
    %4 = vector.shape_cast %3 : vector<1x4x8x8xf32> to vector<4x8x8xf32>
    %c0_4 = arith.constant 0 : index
    %c0_5 = arith.constant 0 : index
    %c0_6 = arith.constant 0 : index
    %c0_7 = arith.constant 0 : index
    %5 = vector.load %arg6[%c0_4, %c0_5, %c0_6, %c0_7] : memref<1x4x11x11xf32, #tpu.memory_space<vmem>>, vector<1x4x8x8xf32>
    %6 = vector.shape_cast %5 : vector<1x4x8x8xf32> to vector<4x8x8xf32>
    %7 = arith.mulf %4, %6 : vector<4x8x8xf32>
    %cst = arith.constant dense<0.000000e+00> : vector<8x8xf32>
    %8 = vector.multi_reduction <add>, %7, %cst [0] : vector<4x8x8xf32> to vector<8x8xf32>
    %c0_8 = arith.constant 0 : index
    %c0_9 = arith.constant 0 : index
    %c0_10 = arith.constant 0 : index
    %c0_11 = arith.constant 0 : index
    %9 = vector.load %arg11[%c0_8, %c0_9, %c0_10, %c0_11] : memref<3x3x8x8xf32, #tpu.memory_space<vmem>>, vector<1x1x8x8xf32>
    %10 = vector.shape_cast %9 : vector<1x1x8x8xf32> to vector<8x8xf32>
    %11 = arith.addf %10, %8 : vector<8x8xf32>
    %c0_12 = arith.constant 0 : index
    %c0_13 = arith.constant 0 : index
    %c0_14 = arith.constant 0 : index
    %c0_15 = arith.constant 0 : index
    %12 = vector.load %arg11[%c0_12, %c0_13, %c0_14, %c0_15] : memref<3x3x8x8xf32, #tpu.memory_space<vmem>>, vector<1x1x8x8xf32>
    %13 = vector.shape_cast %12 : vector<1x1x8x8xf32> to vector<8x8xf32>
    %14 = vector.shape_cast %11 : vector<8x8xf32> to vector<1x1x8x8xf32>
    tpu.vector_store %arg11[%c0_12, %c0_13, %c0_14, %c0_15], %14 {strides = array<i32>} : memref<3x3x8x8xf32, #tpu.memory_space<vmem>>, vector<1x1x8x8xf32>,
    %c0_16 = arith.constant 0 : index
    %c0_17 = arith.constant 0 : index
    %c0_18 = arith.constant 0 : index
    %c1 = arith.constant 1 : index
    %15 = vector.load %arg6[%c0_16, %c0_17, %c0_18, %c1] : memref<1x4x11x11xf32, #tpu.memory_space<vmem>>, vector<1x4x8x8xf32>
    %16 = vector.shape_cast %15 : vector<1x4x8x8xf32> to vector<4x8x8xf32>
    %17 = arith.mulf %4, %16 : vector<4x8x8xf32>
    %cst_19 = arith.constant dense<0.000000e+00> : vector<8x8xf32>
    %18 = vector.multi_reduction <add>, %17, %cst_19 [0] : vector<4x8x8xf32> to vector<8x8xf32>
    %c0_20 = arith.constant 0 : index
    %c1_21 = arith.constant 1 : index
    %c0_22 = arith.constant 0 : index
    %c0_23 = arith.constant 0 : index
    %19 = vector.load %arg11[%c0_20, %c1_21, %c0_22, %c0_23] : memref<3x3x8x8xf32, #tpu.memory_space<vmem>>, vector<1x1x8x8xf32>
    %20 = vector.shape_cast %19 : vector<1x1x8x8xf32> to vector<8x8xf32>
    %21 = arith.addf %20, %18 : vector<8x8xf32>
    %c0_24 = arith.constant 0 : index
    %c1_25 = arith.constant 1 : index
    %c0_26 = arith.constant 0 : index
    %c0_27 = arith.constant 0 : index
    %22 = vector.load %arg11[%c0_24, %c1_25, %c0_26, %c0_27] : memref<3x3x8x8xf32, #tpu.memory_space<vmem>>, vector<1x1x8x8xf32>
    %23 = vector.shape_cast %22 : vector<1x1x8x8xf32> to vector<8x8xf32>
    %24 = vector.shape_cast %21 : vector<8x8xf32> to vector<1x1x8x8xf32>
    tpu.vector_store %arg11[%c0_24, %c1_25, %c0_26, %c0_27], %24 {strides = array<i32>} : memref<3x3x8x8xf32, #tpu.memory_space<vmem>>, vector<1x1x8x8xf32>,
    %c0_28 = arith.constant 0 : index
    %c0_29 = arith.constant 0 : index
    %c0_30 = arith.constant 0 : index
    %c2 = arith.constant 2 : index
    %25 = vector.load %arg6[%c0_28, %c0_29, %c0_30, %c2] : memref<1x4x11x11xf32, #tpu.memory_space<vmem>>, vector<1x4x8x8xf32>
    %26 = vector.shape_cast %25 : vector<1x4x8x8xf32> to vector<4x8x8xf32>
    %27 = arith.mulf %4, %26 : vector<4x8x8xf32>
    %cst_31 = arith.constant dense<0.000000e+00> : vector<8x8xf32>
    %28 = vector.multi_reduction <add>, %27, %cst_31 [0] : vector<4x8x8xf32> to vector<8x8xf32>
    %c0_32 = arith.constant 0 : index
    %c2_33 = arith.constant 2 : index
    %c0_34 = arith.constant 0 : index
    %c0_35 = arith.constant 0 : index
    %29 = vector.load %arg11[%c0_32, %c2_33, %c0_34, %c0_35] : memref<3x3x8x8xf32, #tpu.memory_space<vmem>>, vector<1x1x8x8xf32>
    %30 = vector.shape_cast %29 : vector<1x1x8x8xf32> to vector<8x8xf32>
    %31 = arith.addf %30, %28 : vector<8x8xf32>
    %c0_36 = arith.constant 0 : index
    %c2_37 = arith.constant 2 : index
    %c0_38 = arith.constant 0 : index
    %c0_39 = arith.constant 0 : index
    %32 = vector.load %arg11[%c0_36, %c2_37, %c0_38, %c0_39] : memref<3x3x8x8xf32, #tpu.memory_space<vmem>>, vector<1x1x8x8xf32>
    %33 = vector.shape_cast %32 : vector<1x1x8x8xf32> to vector<8x8xf32>
    %34 = vector.shape_cast %31 : vector<8x8xf32> to vector<1x1x8x8xf32>
    tpu.vector_store %arg11[%c0_36, %c2_37, %c0_38, %c0_39], %34 {strides = array<i32>} : memref<3x3x8x8xf32, #tpu.memory_space<vmem>>, vector<1x1x8x8xf32>,
    %c0_40 = arith.constant 0 : index
    %c0_41 = arith.constant 0 : index
    %c1_42 = arith.constant 1 : index
    %c0_43 = arith.constant 0 : index
    %35 = vector.load %arg6[%c0_40, %c0_41, %c1_42, %c0_43] : memref<1x4x11x11xf32, #tpu.memory_space<vmem>>, vector<1x4x8x8xf32>
    %36 = vector.shape_cast %35 : vector<1x4x8x8xf32> to vector<4x8x8xf32>
    %37 = arith.mulf %4, %36 : vector<4x8x8xf32>
    %cst_44 = arith.constant dense<0.000000e+00> : vector<8x8xf32>
    %38 = vector.multi_reduction <add>, %37, %cst_44 [0] : vector<4x8x8xf32> to vector<8x8xf32>
    %c1_45 = arith.constant 1 : index
    %c0_46 = arith.constant 0 : index
    %c0_47 = arith.constant 0 : index
    %c0_48 = arith.constant 0 : index
    %39 = vector.load %arg11[%c1_45, %c0_46, %c0_47, %c0_48] : memref<3x3x8x8xf32, #tpu.memory_space<vmem>>, vector<1x1x8x8xf32>
    %40 = vector.shape_cast %39 : vector<1x1x8x8xf32> to vector<8x8xf32>
    %41 = arith.addf %40, %38 : vector<8x8xf32>
    %c1_49 = arith.constant 1 : index
    %c0_50 = arith.constant 0 : index
    %c0_51 = arith.constant 0 : index
    %c0_52 = arith.constant 0 : index
    %42 = vector.load %arg11[%c1_49, %c0_50, %c0_51, %c0_52] : memref<3x3x8x8xf32, #tpu.memory_space<vmem>>, vector<1x1x8x8xf32>
    %43 = vector.shape_cast %42 : vector<1x1x8x8xf32> to vector<8x8xf32>
    %44 = vector.shape_cast %41 : vector<8x8xf32> to vector<1x1x8x8xf32>
    tpu.vector_store %arg11[%c1_49, %c0_50, %c0_51, %c0_52], %44 {strides = array<i32>} : memref<3x3x8x8xf32, #tpu.memory_space<vmem>>, vector<1x1x8x8xf32>,
    %c0_53 = arith.constant 0 : index
    %c0_54 = arith.constant 0 : index
    %c1_55 = arith.constant 1 : index
    %c1_56 = arith.constant 1 : index
    %45 = vector.load %arg6[%c0_53, %c0_54, %c1_55, %c1_56] : memref<1x4x11x11xf32, #tpu.memory_space<vmem>>, vector<1x4x8x8xf32>
    %46 = vector.shape_cast %45 : vector<1x4x8x8xf32> to vector<4x8x8xf32>
    %47 = arith.mulf %4, %46 : vector<4x8x8xf32>
    %cst_57 = arith.constant dense<0.000000e+00> : vector<8x8xf32>
    %48 = vector.multi_reduction <add>, %47, %cst_57 [0] : vector<4x8x8xf32> to vector<8x8xf32>
    %c1_58 = arith.constant 1 : index
    %c1_59 = arith.constant 1 : index
    %c0_60 = arith.constant 0 : index
    %c0_61 = arith.constant 0 : index
    %49 = vector.load %arg11[%c1_58, %c1_59, %c0_60, %c0_61] : memref<3x3x8x8xf32, #tpu.memory_space<vmem>>, vector<1x1x8x8xf32>
    %50 = vector.shape_cast %49 : vector<1x1x8x8xf32> to vector<8x8xf32>
    %51 = arith.addf %50, %48 : vector<8x8xf32>
    %c1_62 = arith.constant 1 : index
    %c1_63 = arith.constant 1 : index
    %c0_64 = arith.constant 0 : index
    %c0_65 = arith.constant 0 : index
    %52 = vector.load %arg11[%c1_62, %c1_63, %c0_64, %c0_65] : memref<3x3x8x8xf32, #tpu.memory_space<vmem>>, vector<1x1x8x8xf32>
    %53 = vector.shape_cast %52 : vector<1x1x8x8xf32> to vector<8x8xf32>
    %54 = vector.shape_cast %51 : vector<8x8xf32> to vector<1x1x8x8xf32>
    tpu.vector_store %arg11[%c1_62, %c1_63, %c0_64, %c0_65], %54 {strides = array<i32>} : memref<3x3x8x8xf32, #tpu.memory_space<vmem>>, vector<1x1x8x8xf32>,
    %c0_66 = arith.constant 0 : index
    %c0_67 = arith.constant 0 : index
    %c1_68 = arith.constant 1 : index
    %c2_69 = arith.constant 2 : index
    %55 = vector.load %arg6[%c0_66, %c0_67, %c1_68, %c2_69] : memref<1x4x11x11xf32, #tpu.memory_space<vmem>>, vector<1x4x8x8xf32>
    %56 = vector.shape_cast %55 : vector<1x4x8x8xf32> to vector<4x8x8xf32>
    %57 = arith.mulf %4, %56 : vector<4x8x8xf32>
    %cst_70 = arith.constant dense<0.000000e+00> : vector<8x8xf32>
    %58 = vector.multi_reduction <add>, %57, %cst_70 [0] : vector<4x8x8xf32> to vector<8x8xf32>
    %c1_71 = arith.constant 1 : index
    %c2_72 = arith.constant 2 : index
    %c0_73 = arith.constant 0 : index
    %c0_74 = arith.constant 0 : index
    %59 = vector.load %arg11[%c1_71, %c2_72, %c0_73, %c0_74] : memref<3x3x8x8xf32, #tpu.memory_space<vmem>>, vector<1x1x8x8xf32>
    %60 = vector.shape_cast %59 : vector<1x1x8x8xf32> to vector<8x8xf32>
    %61 = arith.addf %60, %58 : vector<8x8xf32>
    %c1_75 = arith.constant 1 : index
    %c2_76 = arith.constant 2 : index
    %c0_77 = arith.constant 0 : index
    %c0_78 = arith.constant 0 : index
    %62 = vector.load %arg11[%c1_75, %c2_76, %c0_77, %c0_78] : memref<3x3x8x8xf32, #tpu.memory_space<vmem>>, vector<1x1x8x8xf32>
    %63 = vector.shape_cast %62 : vector<1x1x8x8xf32> to vector<8x8xf32>
    %64 = vector.shape_cast %61 : vector<8x8xf32> to vector<1x1x8x8xf32>
    tpu.vector_store %arg11[%c1_75, %c2_76, %c0_77, %c0_78], %64 {strides = array<i32>} : memref<3x3x8x8xf32, #tpu.memory_space<vmem>>, vector<1x1x8x8xf32>,
    %c0_79 = arith.constant 0 : index
    %c0_80 = arith.constant 0 : index
    %c2_81 = arith.constant 2 : index
    %c0_82 = arith.constant 0 : index
    %65 = vector.load %arg6[%c0_79, %c0_80, %c2_81, %c0_82] : memref<1x4x11x11xf32, #tpu.memory_space<vmem>>, vector<1x4x8x8xf32>
    %66 = vector.shape_cast %65 : vector<1x4x8x8xf32> to vector<4x8x8xf32>
    %67 = arith.mulf %4, %66 : vector<4x8x8xf32>
    %cst_83 = arith.constant dense<0.000000e+00> : vector<8x8xf32>
    %68 = vector.multi_reduction <add>, %67, %cst_83 [0] : vector<4x8x8xf32> to vector<8x8xf32>
    %c2_84 = arith.constant 2 : index
    %c0_85 = arith.constant 0 : index
    %c0_86 = arith.constant 0 : index
    %c0_87 = arith.constant 0 : index
    %69 = vector.load %arg11[%c2_84, %c0_85, %c0_86, %c0_87] : memref<3x3x8x8xf32, #tpu.memory_space<vmem>>, vector<1x1x8x8xf32>
    %70 = vector.shape_cast %69 : vector<1x1x8x8xf32> to vector<8x8xf32>
    %71 = arith.addf %70, %68 : vector<8x8xf32>
    %c2_88 = arith.constant 2 : index
    %c0_89 = arith.constant 0 : index
    %c0_90 = arith.constant 0 : index
    %c0_91 = arith.constant 0 : index
    %72 = vector.load %arg11[%c2_88, %c0_89, %c0_90, %c0_91] : memref<3x3x8x8xf32, #tpu.memory_space<vmem>>, vector<1x1x8x8xf32>
    %73 = vector.shape_cast %72 : vector<1x1x8x8xf32> to vector<8x8xf32>
    %74 = vector.shape_cast %71 : vector<8x8xf32> to vector<1x1x8x8xf32>
    tpu.vector_store %arg11[%c2_88, %c0_89, %c0_90, %c0_91], %74 {strides = array<i32>} : memref<3x3x8x8xf32, #tpu.memory_space<vmem>>, vector<1x1x8x8xf32>,
    %c0_92 = arith.constant 0 : index
    %c0_93 = arith.constant 0 : index
    %c2_94 = arith.constant 2 : index
    %c1_95 = arith.constant 1 : index
    %75 = vector.load %arg6[%c0_92, %c0_93, %c2_94, %c1_95] : memref<1x4x11x11xf32, #tpu.memory_space<vmem>>, vector<1x4x8x8xf32>
    %76 = vector.shape_cast %75 : vector<1x4x8x8xf32> to vector<4x8x8xf32>
    %77 = arith.mulf %4, %76 : vector<4x8x8xf32>
    %cst_96 = arith.constant dense<0.000000e+00> : vector<8x8xf32>
    %78 = vector.multi_reduction <add>, %77, %cst_96 [0] : vector<4x8x8xf32> to vector<8x8xf32>
    %c2_97 = arith.constant 2 : index
    %c1_98 = arith.constant 1 : index
    %c0_99 = arith.constant 0 : index
    %c0_100 = arith.constant 0 : index
    %79 = vector.load %arg11[%c2_97, %c1_98, %c0_99, %c0_100] : memref<3x3x8x8xf32, #tpu.memory_space<vmem>>, vector<1x1x8x8xf32>
    %80 = vector.shape_cast %79 : vector<1x1x8x8xf32> to vector<8x8xf32>
    %81 = arith.addf %80, %78 : vector<8x8xf32>
    %c2_101 = arith.constant 2 : index
    %c1_102 = arith.constant 1 : index
    %c0_103 = arith.constant 0 : index
    %c0_104 = arith.constant 0 : index
    %82 = vector.load %arg11[%c2_101, %c1_102, %c0_103, %c0_104] : memref<3x3x8x8xf32, #tpu.memory_space<vmem>>, vector<1x1x8x8xf32>
    %83 = vector.shape_cast %82 : vector<1x1x8x8xf32> to vector<8x8xf32>
    %84 = vector.shape_cast %81 : vector<8x8xf32> to vector<1x1x8x8xf32>
    tpu.vector_store %arg11[%c2_101, %c1_102, %c0_103, %c0_104], %84 {strides = array<i32>} : memref<3x3x8x8xf32, #tpu.memory_space<vmem>>, vector<1x1x8x8xf32>,
    %c0_105 = arith.constant 0 : index
    %c0_106 = arith.constant 0 : index
    %c2_107 = arith.constant 2 : index
    %c2_108 = arith.constant 2 : index
    %85 = vector.load %arg6[%c0_105, %c0_106, %c2_107, %c2_108] : memref<1x4x11x11xf32, #tpu.memory_space<vmem>>, vector<1x4x8x8xf32>
    %86 = vector.shape_cast %85 : vector<1x4x8x8xf32> to vector<4x8x8xf32>
    %87 = arith.mulf %4, %86 : vector<4x8x8xf32>
    %cst_109 = arith.constant dense<0.000000e+00> : vector<8x8xf32>
    %88 = vector.multi_reduction <add>, %87, %cst_109 [0] : vector<4x8x8xf32> to vector<8x8xf32>
    %c2_110 = arith.constant 2 : index
    %c2_111 = arith.constant 2 : index
    %c0_112 = arith.constant 0 : index
    %c0_113 = arith.constant 0 : index
    %89 = vector.load %arg11[%c2_110, %c2_111, %c0_112, %c0_113] : memref<3x3x8x8xf32, #tpu.memory_space<vmem>>, vector<1x1x8x8xf32>
    %90 = vector.shape_cast %89 : vector<1x1x8x8xf32> to vector<8x8xf32>
    %91 = arith.addf %90, %88 : vector<8x8xf32>
    %c2_114 = arith.constant 2 : index
    %c2_115 = arith.constant 2 : index
    %c0_116 = arith.constant 0 : index
    %c0_117 = arith.constant 0 : index
    %92 = vector.load %arg11[%c2_114, %c2_115, %c0_116, %c0_117] : memref<3x3x8x8xf32, #tpu.memory_space<vmem>>, vector<1x1x8x8xf32>
    %93 = vector.shape_cast %92 : vector<1x1x8x8xf32> to vector<8x8xf32>
    %94 = vector.shape_cast %91 : vector<8x8xf32> to vector<1x1x8x8xf32>
    tpu.vector_store %arg11[%c2_114, %c2_115, %c0_116, %c0_117], %94 {strides = array<i32>} : memref<3x3x8x8xf32, #tpu.memory_space<vmem>>, vector<1x1x8x8xf32>,
    %c0_118 = arith.constant 0 : index
    %c0_119 = arith.constant 0 : index
    %c0_120 = arith.constant 0 : index
    %c0_121 = arith.constant 0 : index
    %95 = vector.load %arg3[%c0_118, %c0_119, %c0_120, %c0_121] : memref<1x4x9x9xf32, #tpu.memory_space<vmem>>, vector<1x4x8x8xf32>
    %96 = vector.shape_cast %95 : vector<1x4x8x8xf32> to vector<4x8x8xf32>
    %c0_122 = arith.constant 0 : index
    %c0_123 = arith.constant 0 : index
    %c0_124 = arith.constant 0 : index
    %c0_125 = arith.constant 0 : index
    %97 = vector.load %arg7[%c0_122, %c0_123, %c0_124, %c0_125] : memref<1x4x11x11xf32, #tpu.memory_space<vmem>>, vector<1x4x8x8xf32>
    %98 = vector.shape_cast %97 : vector<1x4x8x8xf32> to vector<4x8x8xf32>
    %99 = arith.mulf %96, %98 : vector<4x8x8xf32>
    %cst_126 = arith.constant dense<0.000000e+00> : vector<8x8xf32>
    %100 = vector.multi_reduction <add>, %99, %cst_126 [0] : vector<4x8x8xf32> to vector<8x8xf32>
    %c0_127 = arith.constant 0 : index
    %c0_128 = arith.constant 0 : index
    %c0_129 = arith.constant 0 : index
    %c0_130 = arith.constant 0 : index
    %101 = vector.load %arg11[%c0_127, %c0_128, %c0_129, %c0_130] : memref<3x3x8x8xf32, #tpu.memory_space<vmem>>, vector<1x1x8x8xf32>
    %102 = vector.shape_cast %101 : vector<1x1x8x8xf32> to vector<8x8xf32>
    %103 = arith.addf %102, %100 : vector<8x8xf32>
    %c0_131 = arith.constant 0 : index
    %c0_132 = arith.constant 0 : index
    %c0_133 = arith.constant 0 : index
    %c0_134 = arith.constant 0 : index
    %104 = vector.load %arg11[%c0_131, %c0_132, %c0_133, %c0_134] : memref<3x3x8x8xf32, #tpu.memory_space<vmem>>, vector<1x1x8x8xf32>
    %105 = vector.shape_cast %104 : vector<1x1x8x8xf32> to vector<8x8xf32>
    %106 = vector.shape_cast %103 : vector<8x8xf32> to vector<1x1x8x8xf32>
    tpu.vector_store %arg11[%c0_131, %c0_132, %c0_133, %c0_134], %106 {strides = array<i32>} : memref<3x3x8x8xf32, #tpu.memory_space<vmem>>, vector<1x1x8x8xf32>,
    %c0_135 = arith.constant 0 : index
    %c0_136 = arith.constant 0 : index
    %c0_137 = arith.constant 0 : index
    %c1_138 = arith.constant 1 : index
    %107 = vector.load %arg7[%c0_135, %c0_136, %c0_137, %c1_138] : memref<1x4x11x11xf32, #tpu.memory_space<vmem>>, vector<1x4x8x8xf32>
    %108 = vector.shape_cast %107 : vector<1x4x8x8xf32> to vector<4x8x8xf32>
    %109 = arith.mulf %96, %108 : vector<4x8x8xf32>
    %cst_139 = arith.constant dense<0.000000e+00> : vector<8x8xf32>
    %110 = vector.multi_reduction <add>, %109, %cst_139 [0] : vector<4x8x8xf32> to vector<8x8xf32>
    %c0_140 = arith.constant 0 : index
    %c1_141 = arith.constant 1 : index
    %c0_142 = arith.constant 0 : index
    %c0_143 = arith.constant 0 : index
    %111 = vector.load %arg11[%c0_140, %c1_141, %c0_142, %c0_143] : memref<3x3x8x8xf32, #tpu.memory_space<vmem>>, vector<1x1x8x8xf32>
    %112 = vector.shape_cast %111 : vector<1x1x8x8xf32> to vector<8x8xf32>
    %113 = arith.addf %112, %110 : vector<8x8xf32>
    %c0_144 = arith.constant 0 : index
    %c1_145 = arith.constant 1 : index
    %c0_146 = arith.constant 0 : index
    %c0_147 = arith.constant 0 : index
    %114 = vector.load %arg11[%c0_144, %c1_145, %c0_146, %c0_147] : memref<3x3x8x8xf32, #tpu.memory_space<vmem>>, vector<1x1x8x8xf32>
    %115 = vector.shape_cast %114 : vector<1x1x8x8xf32> to vector<8x8xf32>
    %116 = vector.shape_cast %113 : vector<8x8xf32> to vector<1x1x8x8xf32>
    tpu.vector_store %arg11[%c0_144, %c1_145, %c0_146, %c0_147], %116 {strides = array<i32>} : memref<3x3x8x8xf32, #tpu.memory_space<vmem>>, vector<1x1x8x8xf32>,
    %c0_148 = arith.constant 0 : index
    %c0_149 = arith.constant 0 : index
    %c0_150 = arith.constant 0 : index
    %c2_151 = arith.constant 2 : index
    %117 = vector.load %arg7[%c0_148, %c0_149, %c0_150, %c2_151] : memref<1x4x11x11xf32, #tpu.memory_space<vmem>>, vector<1x4x8x8xf32>
    %118 = vector.shape_cast %117 : vector<1x4x8x8xf32> to vector<4x8x8xf32>
    %119 = arith.mulf %96, %118 : vector<4x8x8xf32>
    %cst_152 = arith.constant dense<0.000000e+00> : vector<8x8xf32>
    %120 = vector.multi_reduction <add>, %119, %cst_152 [0] : vector<4x8x8xf32> to vector<8x8xf32>
    %c0_153 = arith.constant 0 : index
    %c2_154 = arith.constant 2 : index
    %c0_155 = arith.constant 0 : index
    %c0_156 = arith.constant 0 : index
    %121 = vector.load %arg11[%c0_153, %c2_154, %c0_155, %c0_156] : memref<3x3x8x8xf32, #tpu.memory_space<vmem>>, vector<1x1x8x8xf32>
    %122 = vector.shape_cast %121 : vector<1x1x8x8xf32> to vector<8x8xf32>
    %123 = arith.addf %122, %120 : vector<8x8xf32>
    %c0_157 = arith.constant 0 : index
    %c2_158 = arith.constant 2 : index
    %c0_159 = arith.constant 0 : index
    %c0_160 = arith.constant 0 : index
    %124 = vector.load %arg11[%c0_157, %c2_158, %c0_159, %c0_160] : memref<3x3x8x8xf32, #tpu.memory_space<vmem>>, vector<1x1x8x8xf32>
    %125 = vector.shape_cast %124 : vector<1x1x8x8xf32> to vector<8x8xf32>
    %126 = vector.shape_cast %123 : vector<8x8xf32> to vector<1x1x8x8xf32>
    tpu.vector_store %arg11[%c0_157, %c2_158, %c0_159, %c0_160], %126 {strides = array<i32>} : memref<3x3x8x8xf32, #tpu.memory_space<vmem>>, vector<1x1x8x8xf32>,
    %c0_161 = arith.constant 0 : index
    %c0_162 = arith.constant 0 : index
    %c1_163 = arith.constant 1 : index
    %c0_164 = arith.constant 0 : index
    %127 = vector.load %arg7[%c0_161, %c0_162, %c1_163, %c0_164] : memref<1x4x11x11xf32, #tpu.memory_space<vmem>>, vector<1x4x8x8xf32>
    %128 = vector.shape_cast %127 : vector<1x4x8x8xf32> to vector<4x8x8xf32>
    %129 = arith.mulf %96, %128 : vector<4x8x8xf32>
    %cst_165 = arith.constant dense<0.000000e+00> : vector<8x8xf32>
    %130 = vector.multi_reduction <add>, %129, %cst_165 [0] : vector<4x8x8xf32> to vector<8x8xf32>
    %c1_166 = arith.constant 1 : index
    %c0_167 = arith.constant 0 : index
    %c0_168 = arith.constant 0 : index
    %c0_169 = arith.constant 0 : index
    %131 = vector.load %arg11[%c1_166, %c0_167, %c0_168, %c0_169] : memref<3x3x8x8xf32, #tpu.memory_space<vmem>>, vector<1x1x8x8xf32>
    %132 = vector.shape_cast %131 : vector<1x1x8x8xf32> to vector<8x8xf32>
    %133 = arith.addf %132, %130 : vector<8x8xf32>
    %c1_170 = arith.constant 1 : index
    %c0_171 = arith.constant 0 : index
    %c0_172 = arith.constant 0 : index
    %c0_173 = arith.constant 0 : index
    %134 = vector.load %arg11[%c1_170, %c0_171, %c0_172, %c0_173] : memref<3x3x8x8xf32, #tpu.memory_space<vmem>>, vector<1x1x8x8xf32>
    %135 = vector.shape_cast %134 : vector<1x1x8x8xf32> to vector<8x8xf32>
    %136 = vector.shape_cast %133 : vector<8x8xf32> to vector<1x1x8x8xf32>
    tpu.vector_store %arg11[%c1_170, %c0_171, %c0_172, %c0_173], %136 {strides = array<i32>} : memref<3x3x8x8xf32, #tpu.memory_space<vmem>>, vector<1x1x8x8xf32>,
    %c0_174 = arith.constant 0 : index
    %c0_175 = arith.constant 0 : index
    %c1_176 = arith.constant 1 : index
    %c1_177 = arith.constant 1 : index
    %137 = vector.load %arg7[%c0_174, %c0_175, %c1_176, %c1_177] : memref<1x4x11x11xf32, #tpu.memory_space<vmem>>, vector<1x4x8x8xf32>
    %138 = vector.shape_cast %137 : vector<1x4x8x8xf32> to vector<4x8x8xf32>
    %139 = arith.mulf %96, %138 : vector<4x8x8xf32>
    %cst_178 = arith.constant dense<0.000000e+00> : vector<8x8xf32>
    %140 = vector.multi_reduction <add>, %139, %cst_178 [0] : vector<4x8x8xf32> to vector<8x8xf32>
    %c1_179 = arith.constant 1 : index
    %c1_180 = arith.constant 1 : index
    %c0_181 = arith.constant 0 : index
    %c0_182 = arith.constant 0 : index
    %141 = vector.load %arg11[%c1_179, %c1_180, %c0_181, %c0_182] : memref<3x3x8x8xf32, #tpu.memory_space<vmem>>, vector<1x1x8x8xf32>
    %142 = vector.shape_cast %141 : vector<1x1x8x8xf32> to vector<8x8xf32>
    %143 = arith.addf %142, %140 : vector<8x8xf32>
    %c1_183 = arith.constant 1 : index
    %c1_184 = arith.constant 1 : index
    %c0_185 = arith.constant 0 : index
    %c0_186 = arith.constant 0 : index
    %144 = vector.load %arg11[%c1_183, %c1_184, %c0_185, %c0_186] : memref<3x3x8x8xf32, #tpu.memory_space<vmem>>, vector<1x1x8x8xf32>
    %145 = vector.shape_cast %144 : vector<1x1x8x8xf32> to vector<8x8xf32>
    %146 = vector.shape_cast %143 : vector<8x8xf32> to vector<1x1x8x8xf32>
    tpu.vector_store %arg11[%c1_183, %c1_184, %c0_185, %c0_186], %146 {strides = array<i32>} : memref<3x3x8x8xf32, #tpu.memory_space<vmem>>, vector<1x1x8x8xf32>,
    %c0_187 = arith.constant 0 : index
    %c0_188 = arith.constant 0 : index
    %c1_189 = arith.constant 1 : index
    %c2_190 = arith.constant 2 : index
    %147 = vector.load %arg7[%c0_187, %c0_188, %c1_189, %c2_190] : memref<1x4x11x11xf32, #tpu.memory_space<vmem>>, vector<1x4x8x8xf32>
    %148 = vector.shape_cast %147 : vector<1x4x8x8xf32> to vector<4x8x8xf32>
    %149 = arith.mulf %96, %148 : vector<4x8x8xf32>
    %cst_191 = arith.constant dense<0.000000e+00> : vector<8x8xf32>
    %150 = vector.multi_reduction <add>, %149, %cst_191 [0] : vector<4x8x8xf32> to vector<8x8xf32>
    %c1_192 = arith.constant 1 : index
    %c2_193 = arith.constant 2 : index
    %c0_194 = arith.constant 0 : index
    %c0_195 = arith.constant 0 : index
    %151 = vector.load %arg11[%c1_192, %c2_193, %c0_194, %c0_195] : memref<3x3x8x8xf32, #tpu.memory_space<vmem>>, vector<1x1x8x8xf32>
    %152 = vector.shape_cast %151 : vector<1x1x8x8xf32> to vector<8x8xf32>
    %153 = arith.addf %152, %150 : vector<8x8xf32>
    %c1_196 = arith.constant 1 : index
    %c2_197 = arith.constant 2 : index
    %c0_198 = arith.constant 0 : index
    %c0_199 = arith.constant 0 : index
    %154 = vector.load %arg11[%c1_196, %c2_197, %c0_198, %c0_199] : memref<3x3x8x8xf32, #tpu.memory_space<vmem>>, vector<1x1x8x8xf32>
    %155 = vector.shape_cast %154 : vector<1x1x8x8xf32> to vector<8x8xf32>
    %156 = vector.shape_cast %153 : vector<8x8xf32> to vector<1x1x8x8xf32>
    tpu.vector_store %arg11[%c1_196, %c2_197, %c0_198, %c0_199], %156 {strides = array<i32>} : memref<3x3x8x8xf32, #tpu.memory_space<vmem>>, vector<1x1x8x8xf32>,
    %c0_200 = arith.constant 0 : index
    %c0_201 = arith.constant 0 : index
    %c2_202 = arith.constant 2 : index
    %c0_203 = arith.constant 0 : index
    %157 = vector.load %arg7[%c0_200, %c0_201, %c2_202, %c0_203] : memref<1x4x11x11xf32, #tpu.memory_space<vmem>>, vector<1x4x8x8xf32>
    %158 = vector.shape_cast %157 : vector<1x4x8x8xf32> to vector<4x8x8xf32>
    %159 = arith.mulf %96, %158 : vector<4x8x8xf32>
    %cst_204 = arith.constant dense<0.000000e+00> : vector<8x8xf32>
    %160 = vector.multi_reduction <add>, %159, %cst_204 [0] : vector<4x8x8xf32> to vector<8x8xf32>
    %c2_205 = arith.constant 2 : index
    %c0_206 = arith.constant 0 : index
    %c0_207 = arith.constant 0 : index
    %c0_208 = arith.constant 0 : index
    %161 = vector.load %arg11[%c2_205, %c0_206, %c0_207, %c0_208] : memref<3x3x8x8xf32, #tpu.memory_space<vmem>>, vector<1x1x8x8xf32>
    %162 = vector.shape_cast %161 : vector<1x1x8x8xf32> to vector<8x8xf32>
    %163 = arith.addf %162, %160 : vector<8x8xf32>
    %c2_209 = arith.constant 2 : index
    %c0_210 = arith.constant 0 : index
    %c0_211 = arith.constant 0 : index
    %c0_212 = arith.constant 0 : index
    %164 = vector.load %arg11[%c2_209, %c0_210, %c0_211, %c0_212] : memref<3x3x8x8xf32, #tpu.memory_space<vmem>>, vector<1x1x8x8xf32>
    %165 = vector.shape_cast %164 : vector<1x1x8x8xf32> to vector<8x8xf32>
    %166 = vector.shape_cast %163 : vector<8x8xf32> to vector<1x1x8x8xf32>
    tpu.vector_store %arg11[%c2_209, %c0_210, %c0_211, %c0_212], %166 {strides = array<i32>} : memref<3x3x8x8xf32, #tpu.memory_space<vmem>>, vector<1x1x8x8xf32>,
    %c0_213 = arith.constant 0 : index
    %c0_214 = arith.constant 0 : index
    %c2_215 = arith.constant 2 : index
    %c1_216 = arith.constant 1 : index
    %167 = vector.load %arg7[%c0_213, %c0_214, %c2_215, %c1_216] : memref<1x4x11x11xf32, #tpu.memory_space<vmem>>, vector<1x4x8x8xf32>
    %168 = vector.shape_cast %167 : vector<1x4x8x8xf32> to vector<4x8x8xf32>
    %169 = arith.mulf %96, %168 : vector<4x8x8xf32>
    %cst_217 = arith.constant dense<0.000000e+00> : vector<8x8xf32>
    %170 = vector.multi_reduction <add>, %169, %cst_217 [0] : vector<4x8x8xf32> to vector<8x8xf32>
    %c2_218 = arith.constant 2 : index
    %c1_219 = arith.constant 1 : index
    %c0_220 = arith.constant 0 : index
    %c0_221 = arith.constant 0 : index
    %171 = vector.load %arg11[%c2_218, %c1_219, %c0_220, %c0_221] : memref<3x3x8x8xf32, #tpu.memory_space<vmem>>, vector<1x1x8x8xf32>
    %172 = vector.shape_cast %171 : vector<1x1x8x8xf32> to vector<8x8xf32>
    %173 = arith.addf %172, %170 : vector<8x8xf32>
    %c2_222 = arith.constant 2 : index
    %c1_223 = arith.constant 1 : index
    %c0_224 = arith.constant 0 : index
    %c0_225 = arith.constant 0 : index
    %174 = vector.load %arg11[%c2_222, %c1_223, %c0_224, %c0_225] : memref<3x3x8x8xf32, #tpu.memory_space<vmem>>, vector<1x1x8x8xf32>
    %175 = vector.shape_cast %174 : vector<1x1x8x8xf32> to vector<8x8xf32>
    %176 = vector.shape_cast %173 : vector<8x8xf32> to vector<1x1x8x8xf32>
    tpu.vector_store %arg11[%c2_222, %c1_223, %c0_224, %c0_225], %176 {strides = array<i32>} : memref<3x3x8x8xf32, #tpu.memory_space<vmem>>, vector<1x1x8x8xf32>,
    %c0_226 = arith.constant 0 : index
    %c0_227 = arith.constant 0 : index
    %c2_228 = arith.constant 2 : index
    %c2_229 = arith.constant 2 : index
    %177 = vector.load %arg7[%c0_226, %c0_227, %c2_228, %c2_229] : memref<1x4x11x11xf32, #tpu.memory_space<vmem>>, vector<1x4x8x8xf32>
    %178 = vector.shape_cast %177 : vector<1x4x8x8xf32> to vector<4x8x8xf32>
    %179 = arith.mulf %96, %178 : vector<4x8x8xf32>
    %cst_230 = arith.constant dense<0.000000e+00> : vector<8x8xf32>
    %180 = vector.multi_reduction <add>, %179, %cst_230 [0] : vector<4x8x8xf32> to vector<8x8xf32>
    %c2_231 = arith.constant 2 : index
    %c2_232 = arith.constant 2 : index
    %c0_233 = arith.constant 0 : index
    %c0_234 = arith.constant 0 : index
    %181 = vector.load %arg11[%c2_231, %c2_232, %c0_233, %c0_234] : memref<3x3x8x8xf32, #tpu.memory_space<vmem>>, vector<1x1x8x8xf32>
    %182 = vector.shape_cast %181 : vector<1x1x8x8xf32> to vector<8x8xf32>
    %183 = arith.addf %182, %180 : vector<8x8xf32>
    %c2_235 = arith.constant 2 : index
    %c2_236 = arith.constant 2 : index
    %c0_237 = arith.constant 0 : index
    %c0_238 = arith.constant 0 : index
    %184 = vector.load %arg11[%c2_235, %c2_236, %c0_237, %c0_238] : memref<3x3x8x8xf32, #tpu.memory_space<vmem>>, vector<1x1x8x8xf32>
    %185 = vector.shape_cast %184 : vector<1x1x8x8xf32> to vector<8x8xf32>
    %186 = vector.shape_cast %183 : vector<8x8xf32> to vector<1x1x8x8xf32>
    tpu.vector_store %arg11[%c2_235, %c2_236, %c0_237, %c0_238], %186 {strides = array<i32>} : memref<3x3x8x8xf32, #tpu.memory_space<vmem>>, vector<1x1x8x8xf32>,
    %c0_239 = arith.constant 0 : index
    %c0_240 = arith.constant 0 : index
    %c0_241 = arith.constant 0 : index
    %c1_242 = arith.constant 1 : index
    %187 = vector.load %arg2[%c0_239, %c0_240, %c0_241, %c1_242] : memref<1x4x9x9xf32, #tpu.memory_space<vmem>>, vector<1x4x8x8xf32>
    %188 = vector.shape_cast %187 : vector<1x4x8x8xf32> to vector<4x8x8xf32>
    %c0_243 = arith.constant 0 : index
    %c0_244 = arith.constant 0 : index
    %c0_245 = arith.constant 0 : index
    %c1_246 = arith.constant 1 : index
    %189 = vector.load %arg6[%c0_243, %c0_244, %c0_245, %c1_246] : memref<1x4x11x11xf32, #tpu.memory_space<vmem>>, vector<1x4x8x8xf32>
    %190 = vector.shape_cast %189 : vector<1x4x8x8xf32> to vector<4x8x8xf32>
    %191 = arith.mulf %188, %190 : vector<4x8x8xf32>
    %cst_247 = arith.constant dense<0.000000e+00> : vector<8x8xf32>
    %192 = vector.multi_reduction <add>, %191, %cst_247 [0] : vector<4x8x8xf32> to vector<8x8xf32>
    %c0_248 = arith.constant 0 : index
    %c0_249 = arith.constant 0 : index
    %c0_250 = arith.constant 0 : index
    %c0_251 = arith.constant 0 : index
    %193 = vector.load %arg11[%c0_248, %c0_249, %c0_250, %c0_251] : memref<3x3x8x8xf32, #tpu.memory_space<vmem>>, vector<1x1x8x8xf32>
    %194 = vector.shape_cast %193 : vector<1x1x8x8xf32> to vector<8x8xf32>
    %195 = arith.addf %194, %192 : vector<8x8xf32>
    %c0_252 = arith.constant 0 : index
    %c0_253 = arith.constant 0 : index
    %c0_254 = arith.constant 0 : index
    %c0_255 = arith.constant 0 : index
    %196 = vector.load %arg11[%c0_252, %c0_253, %c0_254, %c0_255] : memref<3x3x8x8xf32, #tpu.memory_space<vmem>>, vector<1x1x8x8xf32>
    %197 = vector.shape_cast %196 : vector<1x1x8x8xf32> to vector<8x8xf32>
    %198 = vector.shape_cast %195 : vector<8x8xf32> to vector<1x1x8x8xf32>
    tpu.vector_store %arg11[%c0_252, %c0_253, %c0_254, %c0_255], %198 {strides = array<i32>} : memref<3x3x8x8xf32, #tpu.memory_space<vmem>>, vector<1x1x8x8xf32>,
    %c0_256 = arith.constant 0 : index
    %c0_257 = arith.constant 0 : index
    %c0_258 = arith.constant 0 : index
    %c2_259 = arith.constant 2 : index
    %199 = vector.load %arg6[%c0_256, %c0_257, %c0_258, %c2_259] : memref<1x4x11x11xf32, #tpu.memory_space<vmem>>, vector<1x4x8x8xf32>
    %200 = vector.shape_cast %199 : vector<1x4x8x8xf32> to vector<4x8x8xf32>
    %201 = arith.mulf %188, %200 : vector<4x8x8xf32>
    %cst_260 = arith.constant dense<0.000000e+00> : vector<8x8xf32>
    %202 = vector.multi_reduction <add>, %201, %cst_260 [0] : vector<4x8x8xf32> to vector<8x8xf32>
    %c0_261 = arith.constant 0 : index
    %c1_262 = arith.constant 1 : index
    %c0_263 = arith.constant 0 : index
    %c0_264 = arith.constant 0 : index
    %203 = vector.load %arg11[%c0_261, %c1_262, %c0_263, %c0_264] : memref<3x3x8x8xf32, #tpu.memory_space<vmem>>, vector<1x1x8x8xf32>
    %204 = vector.shape_cast %203 : vector<1x1x8x8xf32> to vector<8x8xf32>
    %205 = arith.addf %204, %202 : vector<8x8xf32>
    %c0_265 = arith.constant 0 : index
    %c1_266 = arith.constant 1 : index
    %c0_267 = arith.constant 0 : index
    %c0_268 = arith.constant 0 : index
    %206 = vector.load %arg11[%c0_265, %c1_266, %c0_267, %c0_268] : memref<3x3x8x8xf32, #tpu.memory_space<vmem>>, vector<1x1x8x8xf32>
    %207 = vector.shape_cast %206 : vector<1x1x8x8xf32> to vector<8x8xf32>
    %208 = vector.shape_cast %205 : vector<8x8xf32> to vector<1x1x8x8xf32>
    tpu.vector_store %arg11[%c0_265, %c1_266, %c0_267, %c0_268], %208 {strides = array<i32>} : memref<3x3x8x8xf32, #tpu.memory_space<vmem>>, vector<1x1x8x8xf32>,
    %c0_269 = arith.constant 0 : index
    %c0_270 = arith.constant 0 : index
    %c0_271 = arith.constant 0 : index
    %c3 = arith.constant 3 : index
    %209 = vector.load %arg6[%c0_269, %c0_270, %c0_271, %c3] : memref<1x4x11x11xf32, #tpu.memory_space<vmem>>, vector<1x4x8x8xf32>
    %210 = vector.shape_cast %209 : vector<1x4x8x8xf32> to vector<4x8x8xf32>
    %211 = arith.mulf %188, %210 : vector<4x8x8xf32>
    %cst_272 = arith.constant dense<0.000000e+00> : vector<8x8xf32>
    %212 = vector.multi_reduction <add>, %211, %cst_272 [0] : vector<4x8x8xf32> to vector<8x8xf32>
    %c0_273 = arith.constant 0 : index
    %c2_274 = arith.constant 2 : index
    %c0_275 = arith.constant 0 : index
    %c0_276 = arith.constant 0 : index
    %213 = vector.load %arg11[%c0_273, %c2_274, %c0_275, %c0_276] : memref<3x3x8x8xf32, #tpu.memory_space<vmem>>, vector<1x1x8x8xf32>
    %214 = vector.shape_cast %213 : vector<1x1x8x8xf32> to vector<8x8xf32>
    %215 = arith.addf %214, %212 : vector<8x8xf32>
    %c0_277 = arith.constant 0 : index
    %c2_278 = arith.constant 2 : index
    %c0_279 = arith.constant 0 : index
    %c0_280 = arith.constant 0 : index
    %216 = vector.load %arg11[%c0_277, %c2_278, %c0_279, %c0_280] : memref<3x3x8x8xf32, #tpu.memory_space<vmem>>, vector<1x1x8x8xf32>
    %217 = vector.shape_cast %216 : vector<1x1x8x8xf32> to vector<8x8xf32>
    %218 = vector.shape_cast %215 : vector<8x8xf32> to vector<1x1x8x8xf32>
    tpu.vector_store %arg11[%c0_277, %c2_278, %c0_279, %c0_280], %218 {strides = array<i32>} : memref<3x3x8x8xf32, #tpu.memory_space<vmem>>, vector<1x1x8x8xf32>,
    %c0_281 = arith.constant 0 : index
    %c0_282 = arith.constant 0 : index
    %c1_283 = arith.constant 1 : index
    %c1_284 = arith.constant 1 : index
    %219 = vector.load %arg6[%c0_281, %c0_282, %c1_283, %c1_284] : memref<1x4x11x11xf32, #tpu.memory_space<vmem>>, vector<1x4x8x8xf32>
    %220 = vector.shape_cast %219 : vector<1x4x8x8xf32> to vector<4x8x8xf32>
    %221 = arith.mulf %188, %220 : vector<4x8x8xf32>
    %cst_285 = arith.constant dense<0.000000e+00> : vector<8x8xf32>
    %222 = vector.multi_reduction <add>, %221, %cst_285 [0] : vector<4x8x8xf32> to vector<8x8xf32>
    %c1_286 = arith.constant 1 : index
    %c0_287 = arith.constant 0 : index
    %c0_288 = arith.constant 0 : index
    %c0_289 = arith.constant 0 : index
    %223 = vector.load %arg11[%c1_286, %c0_287, %c0_288, %c0_289] : memref<3x3x8x8xf32, #tpu.memory_space<vmem>>, vector<1x1x8x8xf32>
    %224 = vector.shape_cast %223 : vector<1x1x8x8xf32> to vector<8x8xf32>
    %225 = arith.addf %224, %222 : vector<8x8xf32>
    %c1_290 = arith.constant 1 : index
    %c0_291 = arith.constant 0 : index
    %c0_292 = arith.constant 0 : index
    %c0_293 = arith.constant 0 : index
    %226 = vector.load %arg11[%c1_290, %c0_291, %c0_292, %c0_293] : memref<3x3x8x8xf32, #tpu.memory_space<vmem>>, vector<1x1x8x8xf32>
    %227 = vector.shape_cast %226 : vector<1x1x8x8xf32> to vector<8x8xf32>
    %228 = vector.shape_cast %225 : vector<8x8xf32> to vector<1x1x8x8xf32>
    tpu.vector_store %arg11[%c1_290, %c0_291, %c0_292, %c0_293], %228 {strides = array<i32>} : memref<3x3x8x8xf32, #tpu.memory_space<vmem>>, vector<1x1x8x8xf32>,
    %c0_294 = arith.constant 0 : index
    %c0_295 = arith.constant 0 : index
    %c1_296 = arith.constant 1 : index
    %c2_297 = arith.constant 2 : index
    %229 = vector.load %arg6[%c0_294, %c0_295, %c1_296, %c2_297] : memref<1x4x11x11xf32, #tpu.memory_space<vmem>>, vector<1x4x8x8xf32>
    %230 = vector.shape_cast %229 : vector<1x4x8x8xf32> to vector<4x8x8xf32>
    %231 = arith.mulf %188, %230 : vector<4x8x8xf32>
    %cst_298 = arith.constant dense<0.000000e+00> : vector<8x8xf32>
    %232 = vector.multi_reduction <add>, %231, %cst_298 [0] : vector<4x8x8xf32> to vector<8x8xf32>
    %c1_299 = arith.constant 1 : index
    %c1_300 = arith.constant 1 : index
    %c0_301 = arith.constant 0 : index
    %c0_302 = arith.constant 0 : index
    %233 = vector.load %arg11[%c1_299, %c1_300, %c0_301, %c0_302] : memref<3x3x8x8xf32, #tpu.memory_space<vmem>>, vector<1x1x8x8xf32>
    %234 = vector.shape_cast %233 : vector<1x1x8x8xf32> to vector<8x8xf32>
    %235 = arith.addf %234, %232 : vector<8x8xf32>
    %c1_303 = arith.constant 1 : index
    %c1_304 = arith.constant 1 : index
    %c0_305 = arith.constant 0 : index
    %c0_306 = arith.constant 0 : index
    %236 = vector.load %arg11[%c1_303, %c1_304, %c0_305, %c0_306] : memref<3x3x8x8xf32, #tpu.memory_space<vmem>>, vector<1x1x8x8xf32>
    %237 = vector.shape_cast %236 : vector<1x1x8x8xf32> to vector<8x8xf32>
    %238 = vector.shape_cast %235 : vector<8x8xf32> to vector<1x1x8x8xf32>
    tpu.vector_store %arg11[%c1_303, %c1_304, %c0_305, %c0_306], %238 {strides = array<i32>} : memref<3x3x8x8xf32, #tpu.memory_space<vmem>>, vector<1x1x8x8xf32>,
    %c0_307 = arith.constant 0 : index
    %c0_308 = arith.constant 0 : index
    %c1_309 = arith.constant 1 : index
    %c3_310 = arith.constant 3 : index
    %239 = vector.load %arg6[%c0_307, %c0_308, %c1_309, %c3_310] : memref<1x4x11x11xf32, #tpu.memory_space<vmem>>, vector<1x4x8x8xf32>
    %240 = vector.shape_cast %239 : vector<1x4x8x8xf32> to vector<4x8x8xf32>
    %241 = arith.mulf %188, %240 : vector<4x8x8xf32>
    %cst_311 = arith.constant dense<0.000000e+00> : vector<8x8xf32>
    %242 = vector.multi_reduction <add>, %241, %cst_311 [0] : vector<4x8x8xf32> to vector<8x8xf32>
    %c1_312 = arith.constant 1 : index
    %c2_313 = arith.constant 2 : index
    %c0_314 = arith.constant 0 : index
    %c0_315 = arith.constant 0 : index
    %243 = vector.load %arg11[%c1_312, %c2_313, %c0_314, %c0_315] : memref<3x3x8x8xf32, #tpu.memory_space<vmem>>, vector<1x1x8x8xf32>
    %244 = vector.shape_cast %243 : vector<1x1x8x8xf32> to vector<8x8xf32>
    %245 = arith.addf %244, %242 : vector<8x8xf32>
    %c1_316 = arith.constant 1 : index
    %c2_317 = arith.constant 2 : index
    %c0_318 = arith.constant 0 : index
    %c0_319 = arith.constant 0 : index
    %246 = vector.load %arg11[%c1_316, %c2_317, %c0_318, %c0_319] : memref<3x3x8x8xf32, #tpu.memory_space<vmem>>, vector<1x1x8x8xf32>
    %247 = vector.shape_cast %246 : vector<1x1x8x8xf32> to vector<8x8xf32>
    %248 = vector.shape_cast %245 : vector<8x8xf32> to vector<1x1x8x8xf32>
    tpu.vector_store %arg11[%c1_316, %c2_317, %c0_318, %c0_319], %248 {strides = array<i32>} : memref<3x3x8x8xf32, #tpu.memory_space<vmem>>, vector<1x1x8x8xf32>,
    %c0_320 = arith.constant 0 : index
    %c0_321 = arith.constant 0 : index
    %c2_322 = arith.constant 2 : index
    %c1_323 = arith.constant 1 : index
    %249 = vector.load %arg6[%c0_320, %c0_321, %c2_322, %c1_323] : memref<1x4x11x11xf32, #tpu.memory_space<vmem>>, vector<1x4x8x8xf32>
    %250 = vector.shape_cast %249 : vector<1x4x8x8xf32> to vector<4x8x8xf32>
    %251 = arith.mulf %188, %250 : vector<4x8x8xf32>
    %cst_324 = arith.constant dense<0.000000e+00> : vector<8x8xf32>
    %252 = vector.multi_reduction <add>, %251, %cst_324 [0] : vector<4x8x8xf32> to vector<8x8xf32>
    %c2_325 = arith.constant 2 : index
    %c0_326 = arith.constant 0 : index
    %c0_327 = arith.constant 0 : index
    %c0_328 = arith.constant 0 : index
    %253 = vector.load %arg11[%c2_325, %c0_326, %c0_327, %c0_328] : memref<3x3x8x8xf32, #tpu.memory_space<vmem>>, vector<1x1x8x8xf32>
    %254 = vector.shape_cast %253 : vector<1x1x8x8xf32> to vector<8x8xf32>
    %255 = arith.addf %254, %252 : vector<8x8xf32>
    %c2_329 = arith.constant 2 : index
    %c0_330 = arith.constant 0 : index
    %c0_331 = arith.constant 0 : index
    %c0_332 = arith.constant 0 : index
    %256 = vector.load %arg11[%c2_329, %c0_330, %c0_331, %c0_332] : memref<3x3x8x8xf32, #tpu.memory_space<vmem>>, vector<1x1x8x8xf32>
    %257 = vector.shape_cast %256 : vector<1x1x8x8xf32> to vector<8x8xf32>
    %258 = vector.shape_cast %255 : vector<8x8xf32> to vector<1x1x8x8xf32>
    tpu.vector_store %arg11[%c2_329, %c0_330, %c0_331, %c0_332], %258 {strides = array<i32>} : memref<3x3x8x8xf32, #tpu.memory_space<vmem>>, vector<1x1x8x8xf32>,
    %c0_333 = arith.constant 0 : index
    %c0_334 = arith.constant 0 : index
    %c2_335 = arith.constant 2 : index
    %c2_336 = arith.constant 2 : index
    %259 = vector.load %arg6[%c0_333, %c0_334, %c2_335, %c2_336] : memref<1x4x11x11xf32, #tpu.memory_space<vmem>>, vector<1x4x8x8xf32>
    %260 = vector.shape_cast %259 : vector<1x4x8x8xf32> to vector<4x8x8xf32>
    %261 = arith.mulf %188, %260 : vector<4x8x8xf32>
    %cst_337 = arith.constant dense<0.000000e+00> : vector<8x8xf32>
    %262 = vector.multi_reduction <add>, %261, %cst_337 [0] : vector<4x8x8xf32> to vector<8x8xf32>
    %c2_338 = arith.constant 2 : index
    %c1_339 = arith.constant 1 : index
    %c0_340 = arith.constant 0 : index
    %c0_341 = arith.constant 0 : index
    %263 = vector.load %arg11[%c2_338, %c1_339, %c0_340, %c0_341] : memref<3x3x8x8xf32, #tpu.memory_space<vmem>>, vector<1x1x8x8xf32>
    %264 = vector.shape_cast %263 : vector<1x1x8x8xf32> to vector<8x8xf32>
    %265 = arith.addf %264, %262 : vector<8x8xf32>
    %c2_342 = arith.constant 2 : index
    %c1_343 = arith.constant 1 : index
    %c0_344 = arith.constant 0 : index
    %c0_345 = arith.constant 0 : index
    %266 = vector.load %arg11[%c2_342, %c1_343, %c0_344, %c0_345] : memref<3x3x8x8xf32, #tpu.memory_space<vmem>>, vector<1x1x8x8xf32>
    %267 = vector.shape_cast %266 : vector<1x1x8x8xf32> to vector<8x8xf32>
    %268 = vector.shape_cast %265 : vector<8x8xf32> to vector<1x1x8x8xf32>
    tpu.vector_store %arg11[%c2_342, %c1_343, %c0_344, %c0_345], %268 {strides = array<i32>} : memref<3x3x8x8xf32, #tpu.memory_space<vmem>>, vector<1x1x8x8xf32>,
    %c0_346 = arith.constant 0 : index
    %c0_347 = arith.constant 0 : index
    %c2_348 = arith.constant 2 : index
    %c3_349 = arith.constant 3 : index
    %269 = vector.load %arg6[%c0_346, %c0_347, %c2_348, %c3_349] : memref<1x4x11x11xf32, #tpu.memory_space<vmem>>, vector<1x4x8x8xf32>
    %270 = vector.shape_cast %269 : vector<1x4x8x8xf32> to vector<4x8x8xf32>
    %271 = arith.mulf %188, %270 : vector<4x8x8xf32>
    %cst_350 = arith.constant dense<0.000000e+00> : vector<8x8xf32>
    %272 = vector.multi_reduction <add>, %271, %cst_350 [0] : vector<4x8x8xf32> to vector<8x8xf32>
    %c2_351 = arith.constant 2 : index
    %c2_352 = arith.constant 2 : index
    %c0_353 = arith.constant 0 : index
    %c0_354 = arith.constant 0 : index
    %273 = vector.load %arg11[%c2_351, %c2_352, %c0_353, %c0_354] : memref<3x3x8x8xf32, #tpu.memory_space<vmem>>, vector<1x1x8x8xf32>
    %274 = vector.shape_cast %273 : vector<1x1x8x8xf32> to vector<8x8xf32>
    %275 = arith.addf %274, %272 : vector<8x8xf32>
    %c2_355 = arith.constant 2 : index
    %c2_356 = arith.constant 2 : index
    %c0_357 = arith.constant 0 : index
    %c0_358 = arith.constant 0 : index
    %276 = vector.load %arg11[%c2_355, %c2_356, %c0_357, %c0_358] : memref<3x3x8x8xf32, #tpu.memory_space<vmem>>, vector<1x1x8x8xf32>
    %277 = vector.shape_cast %276 : vector<1x1x8x8xf32> to vector<8x8xf32>
    %278 = vector.shape_cast %275 : vector<8x8xf32> to vector<1x1x8x8xf32>
    tpu.vector_store %arg11[%c2_355, %c2_356, %c0_357, %c0_358], %278 {strides = array<i32>} : memref<3x3x8x8xf32, #tpu.memory_space<vmem>>, vector<1x1x8x8xf32>,
    %c0_359 = arith.constant 0 : index
    %c0_360 = arith.constant 0 : index
    %c0_361 = arith.constant 0 : index
    %c0_362 = arith.constant 0 : index
    %279 = vector.load %arg4[%c0_359, %c0_360, %c0_361, %c0_362] : memref<1x4x9x9xf32, #tpu.memory_space<vmem>>, vector<1x4x8x8xf32>
    %280 = vector.shape_cast %279 : vector<1x4x8x8xf32> to vector<4x8x8xf32>
    %c0_363 = arith.constant 0 : index
    %c0_364 = arith.constant 0 : index
    %c0_365 = arith.constant 0 : index
    %c0_366 = arith.constant 0 : index
    %281 = vector.load %arg8[%c0_363, %c0_364, %c0_365, %c0_366] : memref<1x4x11x11xf32, #tpu.memory_space<vmem>>, vector<1x4x8x8xf32>
    %282 = vector.shape_cast %281 : vector<1x4x8x8xf32> to vector<4x8x8xf32>
    %283 = arith.mulf %280, %282 : vector<4x8x8xf32>
    %cst_367 = arith.constant dense<0.000000e+00> : vector<8x8xf32>
    %284 = vector.multi_reduction <add>, %283, %cst_367 [0] : vector<4x8x8xf32> to vector<8x8xf32>
    %c0_368 = arith.constant 0 : index
    %c0_369 = arith.constant 0 : index
    %c0_370 = arith.constant 0 : index
    %c0_371 = arith.constant 0 : index
    %285 = vector.load %arg11[%c0_368, %c0_369, %c0_370, %c0_371] : memref<3x3x8x8xf32, #tpu.memory_space<vmem>>, vector<1x1x8x8xf32>
    %286 = vector.shape_cast %285 : vector<1x1x8x8xf32> to vector<8x8xf32>
    %287 = arith.addf %286, %284 : vector<8x8xf32>
    %c0_372 = arith.constant 0 : index
    %c0_373 = arith.constant 0 : index
    %c0_374 = arith.constant 0 : index
    %c0_375 = arith.constant 0 : index
    %288 = vector.load %arg11[%c0_372, %c0_373, %c0_374, %c0_375] : memref<3x3x8x8xf32, #tpu.memory_space<vmem>>, vector<1x1x8x8xf32>
    %289 = vector.shape_cast %288 : vector<1x1x8x8xf32> to vector<8x8xf32>
    %290 = vector.shape_cast %287 : vector<8x8xf32> to vector<1x1x8x8xf32>
    tpu.vector_store %arg11[%c0_372, %c0_373, %c0_374, %c0_375], %290 {strides = array<i32>} : memref<3x3x8x8xf32, #tpu.memory_space<vmem>>, vector<1x1x8x8xf32>,
    %c0_376 = arith.constant 0 : index
    %c0_377 = arith.constant 0 : index
    %c0_378 = arith.constant 0 : index
    %c1_379 = arith.constant 1 : index
    %291 = vector.load %arg8[%c0_376, %c0_377, %c0_378, %c1_379] : memref<1x4x11x11xf32, #tpu.memory_space<vmem>>, vector<1x4x8x8xf32>
    %292 = vector.shape_cast %291 : vector<1x4x8x8xf32> to vector<4x8x8xf32>
    %293 = arith.mulf %280, %292 : vector<4x8x8xf32>
    %cst_380 = arith.constant dense<0.000000e+00> : vector<8x8xf32>
    %294 = vector.multi_reduction <add>, %293, %cst_380 [0] : vector<4x8x8xf32> to vector<8x8xf32>
    %c0_381 = arith.constant 0 : index
    %c1_382 = arith.constant 1 : index
    %c0_383 = arith.constant 0 : index
    %c0_384 = arith.constant 0 : index
    %295 = vector.load %arg11[%c0_381, %c1_382, %c0_383, %c0_384] : memref<3x3x8x8xf32, #tpu.memory_space<vmem>>, vector<1x1x8x8xf32>
    %296 = vector.shape_cast %295 : vector<1x1x8x8xf32> to vector<8x8xf32>
    %297 = arith.addf %296, %294 : vector<8x8xf32>
    %c0_385 = arith.constant 0 : index
    %c1_386 = arith.constant 1 : index
    %c0_387 = arith.constant 0 : index
    %c0_388 = arith.constant 0 : index
    %298 = vector.load %arg11[%c0_385, %c1_386, %c0_387, %c0_388] : memref<3x3x8x8xf32, #tpu.memory_space<vmem>>, vector<1x1x8x8xf32>
    %299 = vector.shape_cast %298 : vector<1x1x8x8xf32> to vector<8x8xf32>
    %300 = vector.shape_cast %297 : vector<8x8xf32> to vector<1x1x8x8xf32>
    tpu.vector_store %arg11[%c0_385, %c1_386, %c0_387, %c0_388], %300 {strides = array<i32>} : memref<3x3x8x8xf32, #tpu.memory_space<vmem>>, vector<1x1x8x8xf32>,
    %c0_389 = arith.constant 0 : index
    %c0_390 = arith.constant 0 : index
    %c0_391 = arith.constant 0 : index
    %c2_392 = arith.constant 2 : index
    %301 = vector.load %arg8[%c0_389, %c0_390, %c0_391, %c2_392] : memref<1x4x11x11xf32, #tpu.memory_space<vmem>>, vector<1x4x8x8xf32>
    %302 = vector.shape_cast %301 : vector<1x4x8x8xf32> to vector<4x8x8xf32>
    %303 = arith.mulf %280, %302 : vector<4x8x8xf32>
    %cst_393 = arith.constant dense<0.000000e+00> : vector<8x8xf32>
    %304 = vector.multi_reduction <add>, %303, %cst_393 [0] : vector<4x8x8xf32> to vector<8x8xf32>
    %c0_394 = arith.constant 0 : index
    %c2_395 = arith.constant 2 : index
    %c0_396 = arith.constant 0 : index
    %c0_397 = arith.constant 0 : index
    %305 = vector.load %arg11[%c0_394, %c2_395, %c0_396, %c0_397] : memref<3x3x8x8xf32, #tpu.memory_space<vmem>>, vector<1x1x8x8xf32>
    %306 = vector.shape_cast %305 : vector<1x1x8x8xf32> to vector<8x8xf32>
    %307 = arith.addf %306, %304 : vector<8x8xf32>
    %c0_398 = arith.constant 0 : index
    %c2_399 = arith.constant 2 : index
    %c0_400 = arith.constant 0 : index
    %c0_401 = arith.constant 0 : index
    %308 = vector.load %arg11[%c0_398, %c2_399, %c0_400, %c0_401] : memref<3x3x8x8xf32, #tpu.memory_space<vmem>>, vector<1x1x8x8xf32>
    %309 = vector.shape_cast %308 : vector<1x1x8x8xf32> to vector<8x8xf32>
    %310 = vector.shape_cast %307 : vector<8x8xf32> to vector<1x1x8x8xf32>
    tpu.vector_store %arg11[%c0_398, %c2_399, %c0_400, %c0_401], %310 {strides = array<i32>} : memref<3x3x8x8xf32, #tpu.memory_space<vmem>>, vector<1x1x8x8xf32>,
    %c0_402 = arith.constant 0 : index
    %c0_403 = arith.constant 0 : index
    %c1_404 = arith.constant 1 : index
    %c0_405 = arith.constant 0 : index
    %311 = vector.load %arg8[%c0_402, %c0_403, %c1_404, %c0_405] : memref<1x4x11x11xf32, #tpu.memory_space<vmem>>, vector<1x4x8x8xf32>
    %312 = vector.shape_cast %311 : vector<1x4x8x8xf32> to vector<4x8x8xf32>
    %313 = arith.mulf %280, %312 : vector<4x8x8xf32>
    %cst_406 = arith.constant dense<0.000000e+00> : vector<8x8xf32>
    %314 = vector.multi_reduction <add>, %313, %cst_406 [0] : vector<4x8x8xf32> to vector<8x8xf32>
    %c1_407 = arith.constant 1 : index
    %c0_408 = arith.constant 0 : index
    %c0_409 = arith.constant 0 : index
    %c0_410 = arith.constant 0 : index
    %315 = vector.load %arg11[%c1_407, %c0_408, %c0_409, %c0_410] : memref<3x3x8x8xf32, #tpu.memory_space<vmem>>, vector<1x1x8x8xf32>
    %316 = vector.shape_cast %315 : vector<1x1x8x8xf32> to vector<8x8xf32>
    %317 = arith.addf %316, %314 : vector<8x8xf32>
    %c1_411 = arith.constant 1 : index
    %c0_412 = arith.constant 0 : index
    %c0_413 = arith.constant 0 : index
    %c0_414 = arith.constant 0 : index
    %318 = vector.load %arg11[%c1_411, %c0_412, %c0_413, %c0_414] : memref<3x3x8x8xf32, #tpu.memory_space<vmem>>, vector<1x1x8x8xf32>
    %319 = vector.shape_cast %318 : vector<1x1x8x8xf32> to vector<8x8xf32>
    %320 = vector.shape_cast %317 : vector<8x8xf32> to vector<1x1x8x8xf32>
    tpu.vector_store %arg11[%c1_411, %c0_412, %c0_413, %c0_414], %320 {strides = array<i32>} : memref<3x3x8x8xf32, #tpu.memory_space<vmem>>, vector<1x1x8x8xf32>,
    %c0_415 = arith.constant 0 : index
    %c0_416 = arith.constant 0 : index
    %c1_417 = arith.constant 1 : index
    %c1_418 = arith.constant 1 : index
    %321 = vector.load %arg8[%c0_415, %c0_416, %c1_417, %c1_418] : memref<1x4x11x11xf32, #tpu.memory_space<vmem>>, vector<1x4x8x8xf32>
    %322 = vector.shape_cast %321 : vector<1x4x8x8xf32> to vector<4x8x8xf32>
    %323 = arith.mulf %280, %322 : vector<4x8x8xf32>
    %cst_419 = arith.constant dense<0.000000e+00> : vector<8x8xf32>
    %324 = vector.multi_reduction <add>, %323, %cst_419 [0] : vector<4x8x8xf32> to vector<8x8xf32>
    %c1_420 = arith.constant 1 : index
    %c1_421 = arith.constant 1 : index
    %c0_422 = arith.constant 0 : index
    %c0_423 = arith.constant 0 : index
    %325 = vector.load %arg11[%c1_420, %c1_421, %c0_422, %c0_423] : memref<3x3x8x8xf32, #tpu.memory_space<vmem>>, vector<1x1x8x8xf32>
    %326 = vector.shape_cast %325 : vector<1x1x8x8xf32> to vector<8x8xf32>
    %327 = arith.addf %326, %324 : vector<8x8xf32>
    %c1_424 = arith.constant 1 : index
    %c1_425 = arith.constant 1 : index
    %c0_426 = arith.constant 0 : index
    %c0_427 = arith.constant 0 : index
    %328 = vector.load %arg11[%c1_424, %c1_425, %c0_426, %c0_427] : memref<3x3x8x8xf32, #tpu.memory_space<vmem>>, vector<1x1x8x8xf32>
    %329 = vector.shape_cast %328 : vector<1x1x8x8xf32> to vector<8x8xf32>
    %330 = vector.shape_cast %327 : vector<8x8xf32> to vector<1x1x8x8xf32>
    tpu.vector_store %arg11[%c1_424, %c1_425, %c0_426, %c0_427], %330 {strides = array<i32>} : memref<3x3x8x8xf32, #tpu.memory_space<vmem>>, vector<1x1x8x8xf32>,
    %c0_428 = arith.constant 0 : index
    %c0_429 = arith.constant 0 : index
    %c1_430 = arith.constant 1 : index
    %c2_431 = arith.constant 2 : index
    %331 = vector.load %arg8[%c0_428, %c0_429, %c1_430, %c2_431] : memref<1x4x11x11xf32, #tpu.memory_space<vmem>>, vector<1x4x8x8xf32>
    %332 = vector.shape_cast %331 : vector<1x4x8x8xf32> to vector<4x8x8xf32>
    %333 = arith.mulf %280, %332 : vector<4x8x8xf32>
    %cst_432 = arith.constant dense<0.000000e+00> : vector<8x8xf32>
    %334 = vector.multi_reduction <add>, %333, %cst_432 [0] : vector<4x8x8xf32> to vector<8x8xf32>
    %c1_433 = arith.constant 1 : index
    %c2_434 = arith.constant 2 : index
    %c0_435 = arith.constant 0 : index
    %c0_436 = arith.constant 0 : index
    %335 = vector.load %arg11[%c1_433, %c2_434, %c0_435, %c0_436] : memref<3x3x8x8xf32, #tpu.memory_space<vmem>>, vector<1x1x8x8xf32>
    %336 = vector.shape_cast %335 : vector<1x1x8x8xf32> to vector<8x8xf32>
    %337 = arith.addf %336, %334 : vector<8x8xf32>
    %c1_437 = arith.constant 1 : index
    %c2_438 = arith.constant 2 : index
    %c0_439 = arith.constant 0 : index
    %c0_440 = arith.constant 0 : index
    %338 = vector.load %arg11[%c1_437, %c2_438, %c0_439, %c0_440] : memref<3x3x8x8xf32, #tpu.memory_space<vmem>>, vector<1x1x8x8xf32>
    %339 = vector.shape_cast %338 : vector<1x1x8x8xf32> to vector<8x8xf32>
    %340 = vector.shape_cast %337 : vector<8x8xf32> to vector<1x1x8x8xf32>
    tpu.vector_store %arg11[%c1_437, %c2_438, %c0_439, %c0_440], %340 {strides = array<i32>} : memref<3x3x8x8xf32, #tpu.memory_space<vmem>>, vector<1x1x8x8xf32>,
    %c0_441 = arith.constant 0 : index
    %c0_442 = arith.constant 0 : index
    %c2_443 = arith.constant 2 : index
    %c0_444 = arith.constant 0 : index
    %341 = vector.load %arg8[%c0_441, %c0_442, %c2_443, %c0_444] : memref<1x4x11x11xf32, #tpu.memory_space<vmem>>, vector<1x4x8x8xf32>
    %342 = vector.shape_cast %341 : vector<1x4x8x8xf32> to vector<4x8x8xf32>
    %343 = arith.mulf %280, %342 : vector<4x8x8xf32>
    %cst_445 = arith.constant dense<0.000000e+00> : vector<8x8xf32>
    %344 = vector.multi_reduction <add>, %343, %cst_445 [0] : vector<4x8x8xf32> to vector<8x8xf32>
    %c2_446 = arith.constant 2 : index
    %c0_447 = arith.constant 0 : index
    %c0_448 = arith.constant 0 : index
    %c0_449 = arith.constant 0 : index
    %345 = vector.load %arg11[%c2_446, %c0_447, %c0_448, %c0_449] : memref<3x3x8x8xf32, #tpu.memory_space<vmem>>, vector<1x1x8x8xf32>
    %346 = vector.shape_cast %345 : vector<1x1x8x8xf32> to vector<8x8xf32>
    %347 = arith.addf %346, %344 : vector<8x8xf32>
    %c2_450 = arith.constant 2 : index
    %c0_451 = arith.constant 0 : index
    %c0_452 = arith.constant 0 : index
    %c0_453 = arith.constant 0 : index
    %348 = vector.load %arg11[%c2_450, %c0_451, %c0_452, %c0_453] : memref<3x3x8x8xf32, #tpu.memory_space<vmem>>, vector<1x1x8x8xf32>
    %349 = vector.shape_cast %348 : vector<1x1x8x8xf32> to vector<8x8xf32>
    %350 = vector.shape_cast %347 : vector<8x8xf32> to vector<1x1x8x8xf32>
    tpu.vector_store %arg11[%c2_450, %c0_451, %c0_452, %c0_453], %350 {strides = array<i32>} : memref<3x3x8x8xf32, #tpu.memory_space<vmem>>, vector<1x1x8x8xf32>,
    %c0_454 = arith.constant 0 : index
    %c0_455 = arith.constant 0 : index
    %c2_456 = arith.constant 2 : index
    %c1_457 = arith.constant 1 : index
    %351 = vector.load %arg8[%c0_454, %c0_455, %c2_456, %c1_457] : memref<1x4x11x11xf32, #tpu.memory_space<vmem>>, vector<1x4x8x8xf32>
    %352 = vector.shape_cast %351 : vector<1x4x8x8xf32> to vector<4x8x8xf32>
    %353 = arith.mulf %280, %352 : vector<4x8x8xf32>
    %cst_458 = arith.constant dense<0.000000e+00> : vector<8x8xf32>
    %354 = vector.multi_reduction <add>, %353, %cst_458 [0] : vector<4x8x8xf32> to vector<8x8xf32>
    %c2_459 = arith.constant 2 : index
    %c1_460 = arith.constant 1 : index
    %c0_461 = arith.constant 0 : index
    %c0_462 = arith.constant 0 : index
    %355 = vector.load %arg11[%c2_459, %c1_460, %c0_461, %c0_462] : memref<3x3x8x8xf32, #tpu.memory_space<vmem>>, vector<1x1x8x8xf32>
    %356 = vector.shape_cast %355 : vector<1x1x8x8xf32> to vector<8x8xf32>
    %357 = arith.addf %356, %354 : vector<8x8xf32>
    %c2_463 = arith.constant 2 : index
    %c1_464 = arith.constant 1 : index
    %c0_465 = arith.constant 0 : index
    %c0_466 = arith.constant 0 : index
    %358 = vector.load %arg11[%c2_463, %c1_464, %c0_465, %c0_466] : memref<3x3x8x8xf32, #tpu.memory_space<vmem>>, vector<1x1x8x8xf32>
    %359 = vector.shape_cast %358 : vector<1x1x8x8xf32> to vector<8x8xf32>
    %360 = vector.shape_cast %357 : vector<8x8xf32> to vector<1x1x8x8xf32>
    tpu.vector_store %arg11[%c2_463, %c1_464, %c0_465, %c0_466], %360 {strides = array<i32>} : memref<3x3x8x8xf32, #tpu.memory_space<vmem>>, vector<1x1x8x8xf32>,
    %c0_467 = arith.constant 0 : index
    %c0_468 = arith.constant 0 : index
    %c2_469 = arith.constant 2 : index
    %c2_470 = arith.constant 2 : index
    %361 = vector.load %arg8[%c0_467, %c0_468, %c2_469, %c2_470] : memref<1x4x11x11xf32, #tpu.memory_space<vmem>>, vector<1x4x8x8xf32>
    %362 = vector.shape_cast %361 : vector<1x4x8x8xf32> to vector<4x8x8xf32>
    %363 = arith.mulf %280, %362 : vector<4x8x8xf32>
    %cst_471 = arith.constant dense<0.000000e+00> : vector<8x8xf32>
    %364 = vector.multi_reduction <add>, %363, %cst_471 [0] : vector<4x8x8xf32> to vector<8x8xf32>
    %c2_472 = arith.constant 2 : index
    %c2_473 = arith.constant 2 : index
    %c0_474 = arith.constant 0 : index
    %c0_475 = arith.constant 0 : index
    %365 = vector.load %arg11[%c2_472, %c2_473, %c0_474, %c0_475] : memref<3x3x8x8xf32, #tpu.memory_space<vmem>>, vector<1x1x8x8xf32>
    %366 = vector.shape_cast %365 : vector<1x1x8x8xf32> to vector<8x8xf32>
    %367 = arith.addf %366, %364 : vector<8x8xf32>
    %c2_476 = arith.constant 2 : index
    %c2_477 = arith.constant 2 : index
    %c0_478 = arith.constant 0 : index
    %c0_479 = arith.constant 0 : index
    %368 = vector.load %arg11[%c2_476, %c2_477, %c0_478, %c0_479] : memref<3x3x8x8xf32, #tpu.memory_space<vmem>>, vector<1x1x8x8xf32>
    %369 = vector.shape_cast %368 : vector<1x1x8x8xf32> to vector<8x8xf32>
    %370 = vector.shape_cast %367 : vector<8x8xf32> to vector<1x1x8x8xf32>
    tpu.vector_store %arg11[%c2_476, %c2_477, %c0_478, %c0_479], %370 {strides = array<i32>} : memref<3x3x8x8xf32, #tpu.memory_space<vmem>>, vector<1x1x8x8xf32>,
    %c0_480 = arith.constant 0 : index
    %c0_481 = arith.constant 0 : index
    %c0_482 = arith.constant 0 : index
    %c0_483 = arith.constant 0 : index
    %371 = vector.load %arg5[%c0_480, %c0_481, %c0_482, %c0_483] : memref<1x4x9x9xf32, #tpu.memory_space<vmem>>, vector<1x4x8x8xf32>
    %372 = vector.shape_cast %371 : vector<1x4x8x8xf32> to vector<4x8x8xf32>
    %c0_484 = arith.constant 0 : index
    %c0_485 = arith.constant 0 : index
    %c0_486 = arith.constant 0 : index
    %c0_487 = arith.constant 0 : index
    %373 = vector.load %arg9[%c0_484, %c0_485, %c0_486, %c0_487] : memref<1x4x11x11xf32, #tpu.memory_space<vmem>>, vector<1x4x8x8xf32>
    %374 = vector.shape_cast %373 : vector<1x4x8x8xf32> to vector<4x8x8xf32>
    %375 = arith.mulf %372, %374 : vector<4x8x8xf32>
    %cst_488 = arith.constant dense<0.000000e+00> : vector<8x8xf32>
    %376 = vector.multi_reduction <add>, %375, %cst_488 [0] : vector<4x8x8xf32> to vector<8x8xf32>
    %c0_489 = arith.constant 0 : index
    %c0_490 = arith.constant 0 : index
    %c0_491 = arith.constant 0 : index
    %c0_492 = arith.constant 0 : index
    %377 = vector.load %arg11[%c0_489, %c0_490, %c0_491, %c0_492] : memref<3x3x8x8xf32, #tpu.memory_space<vmem>>, vector<1x1x8x8xf32>
    %378 = vector.shape_cast %377 : vector<1x1x8x8xf32> to vector<8x8xf32>
    %379 = arith.addf %378, %376 : vector<8x8xf32>
    %c0_493 = arith.constant 0 : index
    %c0_494 = arith.constant 0 : index
    %c0_495 = arith.constant 0 : index
    %c0_496 = arith.constant 0 : index
    %380 = vector.load %arg11[%c0_493, %c0_494, %c0_495, %c0_496] : memref<3x3x8x8xf32, #tpu.memory_space<vmem>>, vector<1x1x8x8xf32>
    %381 = vector.shape_cast %380 : vector<1x1x8x8xf32> to vector<8x8xf32>
    %382 = vector.shape_cast %379 : vector<8x8xf32> to vector<1x1x8x8xf32>
    tpu.vector_store %arg11[%c0_493, %c0_494, %c0_495, %c0_496], %382 {strides = array<i32>} : memref<3x3x8x8xf32, #tpu.memory_space<vmem>>, vector<1x1x8x8xf32>,
    %c0_497 = arith.constant 0 : index
    %c0_498 = arith.constant 0 : index
    %c0_499 = arith.constant 0 : index
    %c1_500 = arith.constant 1 : index
    %383 = vector.load %arg9[%c0_497, %c0_498, %c0_499, %c1_500] : memref<1x4x11x11xf32, #tpu.memory_space<vmem>>, vector<1x4x8x8xf32>
    %384 = vector.shape_cast %383 : vector<1x4x8x8xf32> to vector<4x8x8xf32>
    %385 = arith.mulf %372, %384 : vector<4x8x8xf32>
    %cst_501 = arith.constant dense<0.000000e+00> : vector<8x8xf32>
    %386 = vector.multi_reduction <add>, %385, %cst_501 [0] : vector<4x8x8xf32> to vector<8x8xf32>
    %c0_502 = arith.constant 0 : index
    %c1_503 = arith.constant 1 : index
    %c0_504 = arith.constant 0 : index
    %c0_505 = arith.constant 0 : index
    %387 = vector.load %arg11[%c0_502, %c1_503, %c0_504, %c0_505] : memref<3x3x8x8xf32, #tpu.memory_space<vmem>>, vector<1x1x8x8xf32>
    %388 = vector.shape_cast %387 : vector<1x1x8x8xf32> to vector<8x8xf32>
    %389 = arith.addf %388, %386 : vector<8x8xf32>
    %c0_506 = arith.constant 0 : index
    %c1_507 = arith.constant 1 : index
    %c0_508 = arith.constant 0 : index
    %c0_509 = arith.constant 0 : index
    %390 = vector.load %arg11[%c0_506, %c1_507, %c0_508, %c0_509] : memref<3x3x8x8xf32, #tpu.memory_space<vmem>>, vector<1x1x8x8xf32>
    %391 = vector.shape_cast %390 : vector<1x1x8x8xf32> to vector<8x8xf32>
    %392 = vector.shape_cast %389 : vector<8x8xf32> to vector<1x1x8x8xf32>
    tpu.vector_store %arg11[%c0_506, %c1_507, %c0_508, %c0_509], %392 {strides = array<i32>} : memref<3x3x8x8xf32, #tpu.memory_space<vmem>>, vector<1x1x8x8xf32>,
    %c0_510 = arith.constant 0 : index
    %c0_511 = arith.constant 0 : index
    %c0_512 = arith.constant 0 : index
    %c2_513 = arith.constant 2 : index
    %393 = vector.load %arg9[%c0_510, %c0_511, %c0_512, %c2_513] : memref<1x4x11x11xf32, #tpu.memory_space<vmem>>, vector<1x4x8x8xf32>
    %394 = vector.shape_cast %393 : vector<1x4x8x8xf32> to vector<4x8x8xf32>
    %395 = arith.mulf %372, %394 : vector<4x8x8xf32>
    %cst_514 = arith.constant dense<0.000000e+00> : vector<8x8xf32>
    %396 = vector.multi_reduction <add>, %395, %cst_514 [0] : vector<4x8x8xf32> to vector<8x8xf32>
    %c0_515 = arith.constant 0 : index
    %c2_516 = arith.constant 2 : index
    %c0_517 = arith.constant 0 : index
    %c0_518 = arith.constant 0 : index
    %397 = vector.load %arg11[%c0_515, %c2_516, %c0_517, %c0_518] : memref<3x3x8x8xf32, #tpu.memory_space<vmem>>, vector<1x1x8x8xf32>
    %398 = vector.shape_cast %397 : vector<1x1x8x8xf32> to vector<8x8xf32>
    %399 = arith.addf %398, %396 : vector<8x8xf32>
    %c0_519 = arith.constant 0 : index
    %c2_520 = arith.constant 2 : index
    %c0_521 = arith.constant 0 : index
    %c0_522 = arith.constant 0 : index
    %400 = vector.load %arg11[%c0_519, %c2_520, %c0_521, %c0_522] : memref<3x3x8x8xf32, #tpu.memory_space<vmem>>, vector<1x1x8x8xf32>
    %401 = vector.shape_cast %400 : vector<1x1x8x8xf32> to vector<8x8xf32>
    %402 = vector.shape_cast %399 : vector<8x8xf32> to vector<1x1x8x8xf32>
    tpu.vector_store %arg11[%c0_519, %c2_520, %c0_521, %c0_522], %402 {strides = array<i32>} : memref<3x3x8x8xf32, #tpu.memory_space<vmem>>, vector<1x1x8x8xf32>,
    %c0_523 = arith.constant 0 : index
    %c0_524 = arith.constant 0 : index
    %c1_525 = arith.constant 1 : index
    %c0_526 = arith.constant 0 : index
    %403 = vector.load %arg9[%c0_523, %c0_524, %c1_525, %c0_526] : memref<1x4x11x11xf32, #tpu.memory_space<vmem>>, vector<1x4x8x8xf32>
    %404 = vector.shape_cast %403 : vector<1x4x8x8xf32> to vector<4x8x8xf32>
    %405 = arith.mulf %372, %404 : vector<4x8x8xf32>
    %cst_527 = arith.constant dense<0.000000e+00> : vector<8x8xf32>
    %406 = vector.multi_reduction <add>, %405, %cst_527 [0] : vector<4x8x8xf32> to vector<8x8xf32>
    %c1_528 = arith.constant 1 : index
    %c0_529 = arith.constant 0 : index
    %c0_530 = arith.constant 0 : index
    %c0_531 = arith.constant 0 : index
    %407 = vector.load %arg11[%c1_528, %c0_529, %c0_530, %c0_531] : memref<3x3x8x8xf32, #tpu.memory_space<vmem>>, vector<1x1x8x8xf32>
    %408 = vector.shape_cast %407 : vector<1x1x8x8xf32> to vector<8x8xf32>
    %409 = arith.addf %408, %406 : vector<8x8xf32>
    %c1_532 = arith.constant 1 : index
    %c0_533 = arith.constant 0 : index
    %c0_534 = arith.constant 0 : index
    %c0_535 = arith.constant 0 : index
    %410 = vector.load %arg11[%c1_532, %c0_533, %c0_534, %c0_535] : memref<3x3x8x8xf32, #tpu.memory_space<vmem>>, vector<1x1x8x8xf32>
    %411 = vector.shape_cast %410 : vector<1x1x8x8xf32> to vector<8x8xf32>
    %412 = vector.shape_cast %409 : vector<8x8xf32> to vector<1x1x8x8xf32>
    tpu.vector_store %arg11[%c1_532, %c0_533, %c0_534, %c0_535], %412 {strides = array<i32>} : memref<3x3x8x8xf32, #tpu.memory_space<vmem>>, vector<1x1x8x8xf32>,
    %c0_536 = arith.constant 0 : index
    %c0_537 = arith.constant 0 : index
    %c1_538 = arith.constant 1 : index
    %c1_539 = arith.constant 1 : index
    %413 = vector.load %arg9[%c0_536, %c0_537, %c1_538, %c1_539] : memref<1x4x11x11xf32, #tpu.memory_space<vmem>>, vector<1x4x8x8xf32>
    %414 = vector.shape_cast %413 : vector<1x4x8x8xf32> to vector<4x8x8xf32>
    %415 = arith.mulf %372, %414 : vector<4x8x8xf32>
    %cst_540 = arith.constant dense<0.000000e+00> : vector<8x8xf32>
    %416 = vector.multi_reduction <add>, %415, %cst_540 [0] : vector<4x8x8xf32> to vector<8x8xf32>
    %c1_541 = arith.constant 1 : index
    %c1_542 = arith.constant 1 : index
    %c0_543 = arith.constant 0 : index
    %c0_544 = arith.constant 0 : index
    %417 = vector.load %arg11[%c1_541, %c1_542, %c0_543, %c0_544] : memref<3x3x8x8xf32, #tpu.memory_space<vmem>>, vector<1x1x8x8xf32>
    %418 = vector.shape_cast %417 : vector<1x1x8x8xf32> to vector<8x8xf32>
    %419 = arith.addf %418, %416 : vector<8x8xf32>
    %c1_545 = arith.constant 1 : index
    %c1_546 = arith.constant 1 : index
    %c0_547 = arith.constant 0 : index
    %c0_548 = arith.constant 0 : index
    %420 = vector.load %arg11[%c1_545, %c1_546, %c0_547, %c0_548] : memref<3x3x8x8xf32, #tpu.memory_space<vmem>>, vector<1x1x8x8xf32>
    %421 = vector.shape_cast %420 : vector<1x1x8x8xf32> to vector<8x8xf32>
    %422 = vector.shape_cast %419 : vector<8x8xf32> to vector<1x1x8x8xf32>
    tpu.vector_store %arg11[%c1_545, %c1_546, %c0_547, %c0_548], %422 {strides = array<i32>} : memref<3x3x8x8xf32, #tpu.memory_space<vmem>>, vector<1x1x8x8xf32>,
    %c0_549 = arith.constant 0 : index
    %c0_550 = arith.constant 0 : index
    %c1_551 = arith.constant 1 : index
    %c2_552 = arith.constant 2 : index
    %423 = vector.load %arg9[%c0_549, %c0_550, %c1_551, %c2_552] : memref<1x4x11x11xf32, #tpu.memory_space<vmem>>, vector<1x4x8x8xf32>
    %424 = vector.shape_cast %423 : vector<1x4x8x8xf32> to vector<4x8x8xf32>
    %425 = arith.mulf %372, %424 : vector<4x8x8xf32>
    %cst_553 = arith.constant dense<0.000000e+00> : vector<8x8xf32>
    %426 = vector.multi_reduction <add>, %425, %cst_553 [0] : vector<4x8x8xf32> to vector<8x8xf32>
    %c1_554 = arith.constant 1 : index
    %c2_555 = arith.constant 2 : index
    %c0_556 = arith.constant 0 : index
    %c0_557 = arith.constant 0 : index
    %427 = vector.load %arg11[%c1_554, %c2_555, %c0_556, %c0_557] : memref<3x3x8x8xf32, #tpu.memory_space<vmem>>, vector<1x1x8x8xf32>
    %428 = vector.shape_cast %427 : vector<1x1x8x8xf32> to vector<8x8xf32>
    %429 = arith.addf %428, %426 : vector<8x8xf32>
    %c1_558 = arith.constant 1 : index
    %c2_559 = arith.constant 2 : index
    %c0_560 = arith.constant 0 : index
    %c0_561 = arith.constant 0 : index
    %430 = vector.load %arg11[%c1_558, %c2_559, %c0_560, %c0_561] : memref<3x3x8x8xf32, #tpu.memory_space<vmem>>, vector<1x1x8x8xf32>
    %431 = vector.shape_cast %430 : vector<1x1x8x8xf32> to vector<8x8xf32>
    %432 = vector.shape_cast %429 : vector<8x8xf32> to vector<1x1x8x8xf32>
    tpu.vector_store %arg11[%c1_558, %c2_559, %c0_560, %c0_561], %432 {strides = array<i32>} : memref<3x3x8x8xf32, #tpu.memory_space<vmem>>, vector<1x1x8x8xf32>,
    %c0_562 = arith.constant 0 : index
    %c0_563 = arith.constant 0 : index
    %c2_564 = arith.constant 2 : index
    %c0_565 = arith.constant 0 : index
    %433 = vector.load %arg9[%c0_562, %c0_563, %c2_564, %c0_565] : memref<1x4x11x11xf32, #tpu.memory_space<vmem>>, vector<1x4x8x8xf32>
    %434 = vector.shape_cast %433 : vector<1x4x8x8xf32> to vector<4x8x8xf32>
    %435 = arith.mulf %372, %434 : vector<4x8x8xf32>
    %cst_566 = arith.constant dense<0.000000e+00> : vector<8x8xf32>
    %436 = vector.multi_reduction <add>, %435, %cst_566 [0] : vector<4x8x8xf32> to vector<8x8xf32>
    %c2_567 = arith.constant 2 : index
    %c0_568 = arith.constant 0 : index
    %c0_569 = arith.constant 0 : index
    %c0_570 = arith.constant 0 : index
    %437 = vector.load %arg11[%c2_567, %c0_568, %c0_569, %c0_570] : memref<3x3x8x8xf32, #tpu.memory_space<vmem>>, vector<1x1x8x8xf32>
    %438 = vector.shape_cast %437 : vector<1x1x8x8xf32> to vector<8x8xf32>
    %439 = arith.addf %438, %436 : vector<8x8xf32>
    %c2_571 = arith.constant 2 : index
    %c0_572 = arith.constant 0 : index
    %c0_573 = arith.constant 0 : index
    %c0_574 = arith.constant 0 : index
    %440 = vector.load %arg11[%c2_571, %c0_572, %c0_573, %c0_574] : memref<3x3x8x8xf32, #tpu.memory_space<vmem>>, vector<1x1x8x8xf32>
    %441 = vector.shape_cast %440 : vector<1x1x8x8xf32> to vector<8x8xf32>
    %442 = vector.shape_cast %439 : vector<8x8xf32> to vector<1x1x8x8xf32>
    tpu.vector_store %arg11[%c2_571, %c0_572, %c0_573, %c0_574], %442 {strides = array<i32>} : memref<3x3x8x8xf32, #tpu.memory_space<vmem>>, vector<1x1x8x8xf32>,
    %c0_575 = arith.constant 0 : index
    %c0_576 = arith.constant 0 : index
    %c2_577 = arith.constant 2 : index
    %c1_578 = arith.constant 1 : index
    %443 = vector.load %arg9[%c0_575, %c0_576, %c2_577, %c1_578] : memref<1x4x11x11xf32, #tpu.memory_space<vmem>>, vector<1x4x8x8xf32>
    %444 = vector.shape_cast %443 : vector<1x4x8x8xf32> to vector<4x8x8xf32>
    %445 = arith.mulf %372, %444 : vector<4x8x8xf32>
    %cst_579 = arith.constant dense<0.000000e+00> : vector<8x8xf32>
    %446 = vector.multi_reduction <add>, %445, %cst_579 [0] : vector<4x8x8xf32> to vector<8x8xf32>
    %c2_580 = arith.constant 2 : index
    %c1_581 = arith.constant 1 : index
    %c0_582 = arith.constant 0 : index
    %c0_583 = arith.constant 0 : index
    %447 = vector.load %arg11[%c2_580, %c1_581, %c0_582, %c0_583] : memref<3x3x8x8xf32, #tpu.memory_space<vmem>>, vector<1x1x8x8xf32>
    %448 = vector.shape_cast %447 : vector<1x1x8x8xf32> to vector<8x8xf32>
    %449 = arith.addf %448, %446 : vector<8x8xf32>
    %c2_584 = arith.constant 2 : index
    %c1_585 = arith.constant 1 : index
    %c0_586 = arith.constant 0 : index
    %c0_587 = arith.constant 0 : index
    %450 = vector.load %arg11[%c2_584, %c1_585, %c0_586, %c0_587] : memref<3x3x8x8xf32, #tpu.memory_space<vmem>>, vector<1x1x8x8xf32>
    %451 = vector.shape_cast %450 : vector<1x1x8x8xf32> to vector<8x8xf32>
    %452 = vector.shape_cast %449 : vector<8x8xf32> to vector<1x1x8x8xf32>
    tpu.vector_store %arg11[%c2_584, %c1_585, %c0_586, %c0_587], %452 {strides = array<i32>} : memref<3x3x8x8xf32, #tpu.memory_space<vmem>>, vector<1x1x8x8xf32>,
    %c0_588 = arith.constant 0 : index
    %c0_589 = arith.constant 0 : index
    %c2_590 = arith.constant 2 : index
    %c2_591 = arith.constant 2 : index
    %453 = vector.load %arg9[%c0_588, %c0_589, %c2_590, %c2_591] : memref<1x4x11x11xf32, #tpu.memory_space<vmem>>, vector<1x4x8x8xf32>
    %454 = vector.shape_cast %453 : vector<1x4x8x8xf32> to vector<4x8x8xf32>
    %455 = arith.mulf %372, %454 : vector<4x8x8xf32>
    %cst_592 = arith.constant dense<0.000000e+00> : vector<8x8xf32>
    %456 = vector.multi_reduction <add>, %455, %cst_592 [0] : vector<4x8x8xf32> to vector<8x8xf32>
    %c2_593 = arith.constant 2 : index
    %c2_594 = arith.constant 2 : index
    %c0_595 = arith.constant 0 : index
    %c0_596 = arith.constant 0 : index
    %457 = vector.load %arg11[%c2_593, %c2_594, %c0_595, %c0_596] : memref<3x3x8x8xf32, #tpu.memory_space<vmem>>, vector<1x1x8x8xf32>
    %458 = vector.shape_cast %457 : vector<1x1x8x8xf32> to vector<8x8xf32>
    %459 = arith.addf %458, %456 : vector<8x8xf32>
    %c2_597 = arith.constant 2 : index
    %c2_598 = arith.constant 2 : index
    %c0_599 = arith.constant 0 : index
    %c0_600 = arith.constant 0 : index
    %460 = vector.load %arg11[%c2_597, %c2_598, %c0_599, %c0_600] : memref<3x3x8x8xf32, #tpu.memory_space<vmem>>, vector<1x1x8x8xf32>
    %461 = vector.shape_cast %460 : vector<1x1x8x8xf32> to vector<8x8xf32>
    %462 = vector.shape_cast %459 : vector<8x8xf32> to vector<1x1x8x8xf32>
    tpu.vector_store %arg11[%c2_597, %c2_598, %c0_599, %c0_600], %462 {strides = array<i32>} : memref<3x3x8x8xf32, #tpu.memory_space<vmem>>, vector<1x1x8x8xf32>,
    %c0_601 = arith.constant 0 : index
    %c0_602 = arith.constant 0 : index
    %c0_603 = arith.constant 0 : index
    %c1_604 = arith.constant 1 : index
    %463 = vector.load %arg4[%c0_601, %c0_602, %c0_603, %c1_604] : memref<1x4x9x9xf32, #tpu.memory_space<vmem>>, vector<1x4x8x8xf32>
    %464 = vector.shape_cast %463 : vector<1x4x8x8xf32> to vector<4x8x8xf32>
    %c0_605 = arith.constant 0 : index
    %c0_606 = arith.constant 0 : index
    %c0_607 = arith.constant 0 : index
    %c1_608 = arith.constant 1 : index
    %465 = vector.load %arg8[%c0_605, %c0_606, %c0_607, %c1_608] : memref<1x4x11x11xf32, #tpu.memory_space<vmem>>, vector<1x4x8x8xf32>
    %466 = vector.shape_cast %465 : vector<1x4x8x8xf32> to vector<4x8x8xf32>
    %467 = arith.mulf %464, %466 : vector<4x8x8xf32>
    %cst_609 = arith.constant dense<0.000000e+00> : vector<8x8xf32>
    %468 = vector.multi_reduction <add>, %467, %cst_609 [0] : vector<4x8x8xf32> to vector<8x8xf32>
    %c0_610 = arith.constant 0 : index
    %c0_611 = arith.constant 0 : index
    %c0_612 = arith.constant 0 : index
    %c0_613 = arith.constant 0 : index
    %469 = vector.load %arg11[%c0_610, %c0_611, %c0_612, %c0_613] : memref<3x3x8x8xf32, #tpu.memory_space<vmem>>, vector<1x1x8x8xf32>
    %470 = vector.shape_cast %469 : vector<1x1x8x8xf32> to vector<8x8xf32>
    %471 = arith.addf %470, %468 : vector<8x8xf32>
    %c0_614 = arith.constant 0 : index
    %c0_615 = arith.constant 0 : index
    %c0_616 = arith.constant 0 : index
    %c0_617 = arith.constant 0 : index
    %472 = vector.load %arg11[%c0_614, %c0_615, %c0_616, %c0_617] : memref<3x3x8x8xf32, #tpu.memory_space<vmem>>, vector<1x1x8x8xf32>
    %473 = vector.shape_cast %472 : vector<1x1x8x8xf32> to vector<8x8xf32>
    %474 = vector.shape_cast %471 : vector<8x8xf32> to vector<1x1x8x8xf32>
    tpu.vector_store %arg11[%c0_614, %c0_615, %c0_616, %c0_617], %474 {strides = array<i32>} : memref<3x3x8x8xf32, #tpu.memory_space<vmem>>, vector<1x1x8x8xf32>,
    %c0_618 = arith.constant 0 : index
    %c0_619 = arith.constant 0 : index
    %c0_620 = arith.constant 0 : index
    %c2_621 = arith.constant 2 : index
    %475 = vector.load %arg8[%c0_618, %c0_619, %c0_620, %c2_621] : memref<1x4x11x11xf32, #tpu.memory_space<vmem>>, vector<1x4x8x8xf32>
    %476 = vector.shape_cast %475 : vector<1x4x8x8xf32> to vector<4x8x8xf32>
    %477 = arith.mulf %464, %476 : vector<4x8x8xf32>
    %cst_622 = arith.constant dense<0.000000e+00> : vector<8x8xf32>
    %478 = vector.multi_reduction <add>, %477, %cst_622 [0] : vector<4x8x8xf32> to vector<8x8xf32>
    %c0_623 = arith.constant 0 : index
    %c1_624 = arith.constant 1 : index
    %c0_625 = arith.constant 0 : index
    %c0_626 = arith.constant 0 : index
    %479 = vector.load %arg11[%c0_623, %c1_624, %c0_625, %c0_626] : memref<3x3x8x8xf32, #tpu.memory_space<vmem>>, vector<1x1x8x8xf32>
    %480 = vector.shape_cast %479 : vector<1x1x8x8xf32> to vector<8x8xf32>
    %481 = arith.addf %480, %478 : vector<8x8xf32>
    %c0_627 = arith.constant 0 : index
    %c1_628 = arith.constant 1 : index
    %c0_629 = arith.constant 0 : index
    %c0_630 = arith.constant 0 : index
    %482 = vector.load %arg11[%c0_627, %c1_628, %c0_629, %c0_630] : memref<3x3x8x8xf32, #tpu.memory_space<vmem>>, vector<1x1x8x8xf32>
    %483 = vector.shape_cast %482 : vector<1x1x8x8xf32> to vector<8x8xf32>
    %484 = vector.shape_cast %481 : vector<8x8xf32> to vector<1x1x8x8xf32>
    tpu.vector_store %arg11[%c0_627, %c1_628, %c0_629, %c0_630], %484 {strides = array<i32>} : memref<3x3x8x8xf32, #tpu.memory_space<vmem>>, vector<1x1x8x8xf32>,
    %c0_631 = arith.constant 0 : index
    %c0_632 = arith.constant 0 : index
    %c0_633 = arith.constant 0 : index
    %c3_634 = arith.constant 3 : index
    %485 = vector.load %arg8[%c0_631, %c0_632, %c0_633, %c3_634] : memref<1x4x11x11xf32, #tpu.memory_space<vmem>>, vector<1x4x8x8xf32>
    %486 = vector.shape_cast %485 : vector<1x4x8x8xf32> to vector<4x8x8xf32>
    %487 = arith.mulf %464, %486 : vector<4x8x8xf32>
    %cst_635 = arith.constant dense<0.000000e+00> : vector<8x8xf32>
    %488 = vector.multi_reduction <add>, %487, %cst_635 [0] : vector<4x8x8xf32> to vector<8x8xf32>
    %c0_636 = arith.constant 0 : index
    %c2_637 = arith.constant 2 : index
    %c0_638 = arith.constant 0 : index
    %c0_639 = arith.constant 0 : index
    %489 = vector.load %arg11[%c0_636, %c2_637, %c0_638, %c0_639] : memref<3x3x8x8xf32, #tpu.memory_space<vmem>>, vector<1x1x8x8xf32>
    %490 = vector.shape_cast %489 : vector<1x1x8x8xf32> to vector<8x8xf32>
    %491 = arith.addf %490, %488 : vector<8x8xf32>
    %c0_640 = arith.constant 0 : index
    %c2_641 = arith.constant 2 : index
    %c0_642 = arith.constant 0 : index
    %c0_643 = arith.constant 0 : index
    %492 = vector.load %arg11[%c0_640, %c2_641, %c0_642, %c0_643] : memref<3x3x8x8xf32, #tpu.memory_space<vmem>>, vector<1x1x8x8xf32>
    %493 = vector.shape_cast %492 : vector<1x1x8x8xf32> to vector<8x8xf32>
    %494 = vector.shape_cast %491 : vector<8x8xf32> to vector<1x1x8x8xf32>
    tpu.vector_store %arg11[%c0_640, %c2_641, %c0_642, %c0_643], %494 {strides = array<i32>} : memref<3x3x8x8xf32, #tpu.memory_space<vmem>>, vector<1x1x8x8xf32>,
    %c0_644 = arith.constant 0 : index
    %c0_645 = arith.constant 0 : index
    %c1_646 = arith.constant 1 : index
    %c1_647 = arith.constant 1 : index
    %495 = vector.load %arg8[%c0_644, %c0_645, %c1_646, %c1_647] : memref<1x4x11x11xf32, #tpu.memory_space<vmem>>, vector<1x4x8x8xf32>
    %496 = vector.shape_cast %495 : vector<1x4x8x8xf32> to vector<4x8x8xf32>
    %497 = arith.mulf %464, %496 : vector<4x8x8xf32>
    %cst_648 = arith.constant dense<0.000000e+00> : vector<8x8xf32>
    %498 = vector.multi_reduction <add>, %497, %cst_648 [0] : vector<4x8x8xf32> to vector<8x8xf32>
    %c1_649 = arith.constant 1 : index
    %c0_650 = arith.constant 0 : index
    %c0_651 = arith.constant 0 : index
    %c0_652 = arith.constant 0 : index
    %499 = vector.load %arg11[%c1_649, %c0_650, %c0_651, %c0_652] : memref<3x3x8x8xf32, #tpu.memory_space<vmem>>, vector<1x1x8x8xf32>
    %500 = vector.shape_cast %499 : vector<1x1x8x8xf32> to vector<8x8xf32>
    %501 = arith.addf %500, %498 : vector<8x8xf32>
    %c1_653 = arith.constant 1 : index
    %c0_654 = arith.constant 0 : index
    %c0_655 = arith.constant 0 : index
    %c0_656 = arith.constant 0 : index
    %502 = vector.load %arg11[%c1_653, %c0_654, %c0_655, %c0_656] : memref<3x3x8x8xf32, #tpu.memory_space<vmem>>, vector<1x1x8x8xf32>
    %503 = vector.shape_cast %502 : vector<1x1x8x8xf32> to vector<8x8xf32>
    %504 = vector.shape_cast %501 : vector<8x8xf32> to vector<1x1x8x8xf32>
    tpu.vector_store %arg11[%c1_653, %c0_654, %c0_655, %c0_656], %504 {strides = array<i32>} : memref<3x3x8x8xf32, #tpu.memory_space<vmem>>, vector<1x1x8x8xf32>,
    %c0_657 = arith.constant 0 : index
    %c0_658 = arith.constant 0 : index
    %c1_659 = arith.constant 1 : index
    %c2_660 = arith.constant 2 : index
    %505 = vector.load %arg8[%c0_657, %c0_658, %c1_659, %c2_660] : memref<1x4x11x11xf32, #tpu.memory_space<vmem>>, vector<1x4x8x8xf32>
    %506 = vector.shape_cast %505 : vector<1x4x8x8xf32> to vector<4x8x8xf32>
    %507 = arith.mulf %464, %506 : vector<4x8x8xf32>
    %cst_661 = arith.constant dense<0.000000e+00> : vector<8x8xf32>
    %508 = vector.multi_reduction <add>, %507, %cst_661 [0] : vector<4x8x8xf32> to vector<8x8xf32>
    %c1_662 = arith.constant 1 : index
    %c1_663 = arith.constant 1 : index
    %c0_664 = arith.constant 0 : index
    %c0_665 = arith.constant 0 : index
    %509 = vector.load %arg11[%c1_662, %c1_663, %c0_664, %c0_665] : memref<3x3x8x8xf32, #tpu.memory_space<vmem>>, vector<1x1x8x8xf32>
    %510 = vector.shape_cast %509 : vector<1x1x8x8xf32> to vector<8x8xf32>
    %511 = arith.addf %510, %508 : vector<8x8xf32>
    %c1_666 = arith.constant 1 : index
    %c1_667 = arith.constant 1 : index
    %c0_668 = arith.constant 0 : index
    %c0_669 = arith.constant 0 : index
    %512 = vector.load %arg11[%c1_666, %c1_667, %c0_668, %c0_669] : memref<3x3x8x8xf32, #tpu.memory_space<vmem>>, vector<1x1x8x8xf32>
    %513 = vector.shape_cast %512 : vector<1x1x8x8xf32> to vector<8x8xf32>
    %514 = vector.shape_cast %511 : vector<8x8xf32> to vector<1x1x8x8xf32>
    tpu.vector_store %arg11[%c1_666, %c1_667, %c0_668, %c0_669], %514 {strides = array<i32>} : memref<3x3x8x8xf32, #tpu.memory_space<vmem>>, vector<1x1x8x8xf32>,
    %c0_670 = arith.constant 0 : index
    %c0_671 = arith.constant 0 : index
    %c1_672 = arith.constant 1 : index
    %c3_673 = arith.constant 3 : index
    %515 = vector.load %arg8[%c0_670, %c0_671, %c1_672, %c3_673] : memref<1x4x11x11xf32, #tpu.memory_space<vmem>>, vector<1x4x8x8xf32>
    %516 = vector.shape_cast %515 : vector<1x4x8x8xf32> to vector<4x8x8xf32>
    %517 = arith.mulf %464, %516 : vector<4x8x8xf32>
    %cst_674 = arith.constant dense<0.000000e+00> : vector<8x8xf32>
    %518 = vector.multi_reduction <add>, %517, %cst_674 [0] : vector<4x8x8xf32> to vector<8x8xf32>
    %c1_675 = arith.constant 1 : index
    %c2_676 = arith.constant 2 : index
    %c0_677 = arith.constant 0 : index
    %c0_678 = arith.constant 0 : index
    %519 = vector.load %arg11[%c1_675, %c2_676, %c0_677, %c0_678] : memref<3x3x8x8xf32, #tpu.memory_space<vmem>>, vector<1x1x8x8xf32>
    %520 = vector.shape_cast %519 : vector<1x1x8x8xf32> to vector<8x8xf32>
    %521 = arith.addf %520, %518 : vector<8x8xf32>
    %c1_679 = arith.constant 1 : index
    %c2_680 = arith.constant 2 : index
    %c0_681 = arith.constant 0 : index
    %c0_682 = arith.constant 0 : index
    %522 = vector.load %arg11[%c1_679, %c2_680, %c0_681, %c0_682] : memref<3x3x8x8xf32, #tpu.memory_space<vmem>>, vector<1x1x8x8xf32>
    %523 = vector.shape_cast %522 : vector<1x1x8x8xf32> to vector<8x8xf32>
    %524 = vector.shape_cast %521 : vector<8x8xf32> to vector<1x1x8x8xf32>
    tpu.vector_store %arg11[%c1_679, %c2_680, %c0_681, %c0_682], %524 {strides = array<i32>} : memref<3x3x8x8xf32, #tpu.memory_space<vmem>>, vector<1x1x8x8xf32>,
    %c0_683 = arith.constant 0 : index
    %c0_684 = arith.constant 0 : index
    %c2_685 = arith.constant 2 : index
    %c1_686 = arith.constant 1 : index
    %525 = vector.load %arg8[%c0_683, %c0_684, %c2_685, %c1_686] : memref<1x4x11x11xf32, #tpu.memory_space<vmem>>, vector<1x4x8x8xf32>
    %526 = vector.shape_cast %525 : vector<1x4x8x8xf32> to vector<4x8x8xf32>
    %527 = arith.mulf %464, %526 : vector<4x8x8xf32>
    %cst_687 = arith.constant dense<0.000000e+00> : vector<8x8xf32>
    %528 = vector.multi_reduction <add>, %527, %cst_687 [0] : vector<4x8x8xf32> to vector<8x8xf32>
    %c2_688 = arith.constant 2 : index
    %c0_689 = arith.constant 0 : index
    %c0_690 = arith.constant 0 : index
    %c0_691 = arith.constant 0 : index
    %529 = vector.load %arg11[%c2_688, %c0_689, %c0_690, %c0_691] : memref<3x3x8x8xf32, #tpu.memory_space<vmem>>, vector<1x1x8x8xf32>
    %530 = vector.shape_cast %529 : vector<1x1x8x8xf32> to vector<8x8xf32>
    %531 = arith.addf %530, %528 : vector<8x8xf32>
    %c2_692 = arith.constant 2 : index
    %c0_693 = arith.constant 0 : index
    %c0_694 = arith.constant 0 : index
    %c0_695 = arith.constant 0 : index
    %532 = vector.load %arg11[%c2_692, %c0_693, %c0_694, %c0_695] : memref<3x3x8x8xf32, #tpu.memory_space<vmem>>, vector<1x1x8x8xf32>
    %533 = vector.shape_cast %532 : vector<1x1x8x8xf32> to vector<8x8xf32>
    %534 = vector.shape_cast %531 : vector<8x8xf32> to vector<1x1x8x8xf32>
    tpu.vector_store %arg11[%c2_692, %c0_693, %c0_694, %c0_695], %534 {strides = array<i32>} : memref<3x3x8x8xf32, #tpu.memory_space<vmem>>, vector<1x1x8x8xf32>,
    %c0_696 = arith.constant 0 : index
    %c0_697 = arith.constant 0 : index
    %c2_698 = arith.constant 2 : index
    %c2_699 = arith.constant 2 : index
    %535 = vector.load %arg8[%c0_696, %c0_697, %c2_698, %c2_699] : memref<1x4x11x11xf32, #tpu.memory_space<vmem>>, vector<1x4x8x8xf32>
    %536 = vector.shape_cast %535 : vector<1x4x8x8xf32> to vector<4x8x8xf32>
    %537 = arith.mulf %464, %536 : vector<4x8x8xf32>
    %cst_700 = arith.constant dense<0.000000e+00> : vector<8x8xf32>
    %538 = vector.multi_reduction <add>, %537, %cst_700 [0] : vector<4x8x8xf32> to vector<8x8xf32>
    %c2_701 = arith.constant 2 : index
    %c1_702 = arith.constant 1 : index
    %c0_703 = arith.constant 0 : index
    %c0_704 = arith.constant 0 : index
    %539 = vector.load %arg11[%c2_701, %c1_702, %c0_703, %c0_704] : memref<3x3x8x8xf32, #tpu.memory_space<vmem>>, vector<1x1x8x8xf32>
    %540 = vector.shape_cast %539 : vector<1x1x8x8xf32> to vector<8x8xf32>
    %541 = arith.addf %540, %538 : vector<8x8xf32>
    %c2_705 = arith.constant 2 : index
    %c1_706 = arith.constant 1 : index
    %c0_707 = arith.constant 0 : index
    %c0_708 = arith.constant 0 : index
    %542 = vector.load %arg11[%c2_705, %c1_706, %c0_707, %c0_708] : memref<3x3x8x8xf32, #tpu.memory_space<vmem>>, vector<1x1x8x8xf32>
    %543 = vector.shape_cast %542 : vector<1x1x8x8xf32> to vector<8x8xf32>
    %544 = vector.shape_cast %541 : vector<8x8xf32> to vector<1x1x8x8xf32>
    tpu.vector_store %arg11[%c2_705, %c1_706, %c0_707, %c0_708], %544 {strides = array<i32>} : memref<3x3x8x8xf32, #tpu.memory_space<vmem>>, vector<1x1x8x8xf32>,
    %c0_709 = arith.constant 0 : index
    %c0_710 = arith.constant 0 : index
    %c2_711 = arith.constant 2 : index
    %c3_712 = arith.constant 3 : index
    %545 = vector.load %arg8[%c0_709, %c0_710, %c2_711, %c3_712] : memref<1x4x11x11xf32, #tpu.memory_space<vmem>>, vector<1x4x8x8xf32>
    %546 = vector.shape_cast %545 : vector<1x4x8x8xf32> to vector<4x8x8xf32>
    %547 = arith.mulf %464, %546 : vector<4x8x8xf32>
    %cst_713 = arith.constant dense<0.000000e+00> : vector<8x8xf32>
    %548 = vector.multi_reduction <add>, %547, %cst_713 [0] : vector<4x8x8xf32> to vector<8x8xf32>
    %c2_714 = arith.constant 2 : index
    %c2_715 = arith.constant 2 : index
    %c0_716 = arith.constant 0 : index
    %c0_717 = arith.constant 0 : index
    %549 = vector.load %arg11[%c2_714, %c2_715, %c0_716, %c0_717] : memref<3x3x8x8xf32, #tpu.memory_space<vmem>>, vector<1x1x8x8xf32>
    %550 = vector.shape_cast %549 : vector<1x1x8x8xf32> to vector<8x8xf32>
    %551 = arith.addf %550, %548 : vector<8x8xf32>
    %c2_718 = arith.constant 2 : index
    %c2_719 = arith.constant 2 : index
    %c0_720 = arith.constant 0 : index
    %c0_721 = arith.constant 0 : index
    %552 = vector.load %arg11[%c2_718, %c2_719, %c0_720, %c0_721] : memref<3x3x8x8xf32, #tpu.memory_space<vmem>>, vector<1x1x8x8xf32>
    %553 = vector.shape_cast %552 : vector<1x1x8x8xf32> to vector<8x8xf32>
    %554 = vector.shape_cast %551 : vector<8x8xf32> to vector<1x1x8x8xf32>
    tpu.vector_store %arg11[%c2_718, %c2_719, %c0_720, %c0_721], %554 {strides = array<i32>} : memref<3x3x8x8xf32, #tpu.memory_space<vmem>>, vector<1x1x8x8xf32>,
    %c0_722 = arith.constant 0 : index
    %c0_723 = arith.constant 0 : index
    %c1_724 = arith.constant 1 : index
    %c0_725 = arith.constant 0 : index
    %555 = vector.load %arg2[%c0_722, %c0_723, %c1_724, %c0_725] : memref<1x4x9x9xf32, #tpu.memory_space<vmem>>, vector<1x4x8x8xf32>
    %556 = vector.shape_cast %555 : vector<1x4x8x8xf32> to vector<4x8x8xf32>
    %c0_726 = arith.constant 0 : index
    %c0_727 = arith.constant 0 : index
    %c1_728 = arith.constant 1 : index
    %c0_729 = arith.constant 0 : index
    %557 = vector.load %arg6[%c0_726, %c0_727, %c1_728, %c0_729] : memref<1x4x11x11xf32, #tpu.memory_space<vmem>>, vector<1x4x8x8xf32>
    %558 = vector.shape_cast %557 : vector<1x4x8x8xf32> to vector<4x8x8xf32>
    %559 = arith.mulf %556, %558 : vector<4x8x8xf32>
    %cst_730 = arith.constant dense<0.000000e+00> : vector<8x8xf32>
    %560 = vector.multi_reduction <add>, %559, %cst_730 [0] : vector<4x8x8xf32> to vector<8x8xf32>
    %c0_731 = arith.constant 0 : index
    %c0_732 = arith.constant 0 : index
    %c0_733 = arith.constant 0 : index
    %c0_734 = arith.constant 0 : index
    %561 = vector.load %arg11[%c0_731, %c0_732, %c0_733, %c0_734] : memref<3x3x8x8xf32, #tpu.memory_space<vmem>>, vector<1x1x8x8xf32>
    %562 = vector.shape_cast %561 : vector<1x1x8x8xf32> to vector<8x8xf32>
    %563 = arith.addf %562, %560 : vector<8x8xf32>
    %c0_735 = arith.constant 0 : index
    %c0_736 = arith.constant 0 : index
    %c0_737 = arith.constant 0 : index
    %c0_738 = arith.constant 0 : index
    %564 = vector.load %arg11[%c0_735, %c0_736, %c0_737, %c0_738] : memref<3x3x8x8xf32, #tpu.memory_space<vmem>>, vector<1x1x8x8xf32>
    %565 = vector.shape_cast %564 : vector<1x1x8x8xf32> to vector<8x8xf32>
    %566 = vector.shape_cast %563 : vector<8x8xf32> to vector<1x1x8x8xf32>
    tpu.vector_store %arg11[%c0_735, %c0_736, %c0_737, %c0_738], %566 {strides = array<i32>} : memref<3x3x8x8xf32, #tpu.memory_space<vmem>>, vector<1x1x8x8xf32>,
    %c0_739 = arith.constant 0 : index
    %c0_740 = arith.constant 0 : index
    %c1_741 = arith.constant 1 : index
    %c1_742 = arith.constant 1 : index
    %567 = vector.load %arg6[%c0_739, %c0_740, %c1_741, %c1_742] : memref<1x4x11x11xf32, #tpu.memory_space<vmem>>, vector<1x4x8x8xf32>
    %568 = vector.shape_cast %567 : vector<1x4x8x8xf32> to vector<4x8x8xf32>
    %569 = arith.mulf %556, %568 : vector<4x8x8xf32>
    %cst_743 = arith.constant dense<0.000000e+00> : vector<8x8xf32>
    %570 = vector.multi_reduction <add>, %569, %cst_743 [0] : vector<4x8x8xf32> to vector<8x8xf32>
    %c0_744 = arith.constant 0 : index
    %c1_745 = arith.constant 1 : index
    %c0_746 = arith.constant 0 : index
    %c0_747 = arith.constant 0 : index
    %571 = vector.load %arg11[%c0_744, %c1_745, %c0_746, %c0_747] : memref<3x3x8x8xf32, #tpu.memory_space<vmem>>, vector<1x1x8x8xf32>
    %572 = vector.shape_cast %571 : vector<1x1x8x8xf32> to vector<8x8xf32>
    %573 = arith.addf %572, %570 : vector<8x8xf32>
    %c0_748 = arith.constant 0 : index
    %c1_749 = arith.constant 1 : index
    %c0_750 = arith.constant 0 : index
    %c0_751 = arith.constant 0 : index
    %574 = vector.load %arg11[%c0_748, %c1_749, %c0_750, %c0_751] : memref<3x3x8x8xf32, #tpu.memory_space<vmem>>, vector<1x1x8x8xf32>
    %575 = vector.shape_cast %574 : vector<1x1x8x8xf32> to vector<8x8xf32>
    %576 = vector.shape_cast %573 : vector<8x8xf32> to vector<1x1x8x8xf32>
    tpu.vector_store %arg11[%c0_748, %c1_749, %c0_750, %c0_751], %576 {strides = array<i32>} : memref<3x3x8x8xf32, #tpu.memory_space<vmem>>, vector<1x1x8x8xf32>,
    %c0_752 = arith.constant 0 : index
    %c0_753 = arith.constant 0 : index
    %c1_754 = arith.constant 1 : index
    %c2_755 = arith.constant 2 : index
    %577 = vector.load %arg6[%c0_752, %c0_753, %c1_754, %c2_755] : memref<1x4x11x11xf32, #tpu.memory_space<vmem>>, vector<1x4x8x8xf32>
    %578 = vector.shape_cast %577 : vector<1x4x8x8xf32> to vector<4x8x8xf32>
    %579 = arith.mulf %556, %578 : vector<4x8x8xf32>
    %cst_756 = arith.constant dense<0.000000e+00> : vector<8x8xf32>
    %580 = vector.multi_reduction <add>, %579, %cst_756 [0] : vector<4x8x8xf32> to vector<8x8xf32>
    %c0_757 = arith.constant 0 : index
    %c2_758 = arith.constant 2 : index
    %c0_759 = arith.constant 0 : index
    %c0_760 = arith.constant 0 : index
    %581 = vector.load %arg11[%c0_757, %c2_758, %c0_759, %c0_760] : memref<3x3x8x8xf32, #tpu.memory_space<vmem>>, vector<1x1x8x8xf32>
    %582 = vector.shape_cast %581 : vector<1x1x8x8xf32> to vector<8x8xf32>
    %583 = arith.addf %582, %580 : vector<8x8xf32>
    %c0_761 = arith.constant 0 : index
    %c2_762 = arith.constant 2 : index
    %c0_763 = arith.constant 0 : index
    %c0_764 = arith.constant 0 : index
    %584 = vector.load %arg11[%c0_761, %c2_762, %c0_763, %c0_764] : memref<3x3x8x8xf32, #tpu.memory_space<vmem>>, vector<1x1x8x8xf32>
    %585 = vector.shape_cast %584 : vector<1x1x8x8xf32> to vector<8x8xf32>
    %586 = vector.shape_cast %583 : vector<8x8xf32> to vector<1x1x8x8xf32>
    tpu.vector_store %arg11[%c0_761, %c2_762, %c0_763, %c0_764], %586 {strides = array<i32>} : memref<3x3x8x8xf32, #tpu.memory_space<vmem>>, vector<1x1x8x8xf32>,
    %c0_765 = arith.constant 0 : index
    %c0_766 = arith.constant 0 : index
    %c2_767 = arith.constant 2 : index
    %c0_768 = arith.constant 0 : index
    %587 = vector.load %arg6[%c0_765, %c0_766, %c2_767, %c0_768] : memref<1x4x11x11xf32, #tpu.memory_space<vmem>>, vector<1x4x8x8xf32>
    %588 = vector.shape_cast %587 : vector<1x4x8x8xf32> to vector<4x8x8xf32>
    %589 = arith.mulf %556, %588 : vector<4x8x8xf32>
    %cst_769 = arith.constant dense<0.000000e+00> : vector<8x8xf32>
    %590 = vector.multi_reduction <add>, %589, %cst_769 [0] : vector<4x8x8xf32> to vector<8x8xf32>
    %c1_770 = arith.constant 1 : index
    %c0_771 = arith.constant 0 : index
    %c0_772 = arith.constant 0 : index
    %c0_773 = arith.constant 0 : index
    %591 = vector.load %arg11[%c1_770, %c0_771, %c0_772, %c0_773] : memref<3x3x8x8xf32, #tpu.memory_space<vmem>>, vector<1x1x8x8xf32>
    %592 = vector.shape_cast %591 : vector<1x1x8x8xf32> to vector<8x8xf32>
    %593 = arith.addf %592, %590 : vector<8x8xf32>
    %c1_774 = arith.constant 1 : index
    %c0_775 = arith.constant 0 : index
    %c0_776 = arith.constant 0 : index
    %c0_777 = arith.constant 0 : index
    %594 = vector.load %arg11[%c1_774, %c0_775, %c0_776, %c0_777] : memref<3x3x8x8xf32, #tpu.memory_space<vmem>>, vector<1x1x8x8xf32>
    %595 = vector.shape_cast %594 : vector<1x1x8x8xf32> to vector<8x8xf32>
    %596 = vector.shape_cast %593 : vector<8x8xf32> to vector<1x1x8x8xf32>
    tpu.vector_store %arg11[%c1_774, %c0_775, %c0_776, %c0_777], %596 {strides = array<i32>} : memref<3x3x8x8xf32, #tpu.memory_space<vmem>>, vector<1x1x8x8xf32>,
    %c0_778 = arith.constant 0 : index
    %c0_779 = arith.constant 0 : index
    %c2_780 = arith.constant 2 : index
    %c1_781 = arith.constant 1 : index
    %597 = vector.load %arg6[%c0_778, %c0_779, %c2_780, %c1_781] : memref<1x4x11x11xf32, #tpu.memory_space<vmem>>, vector<1x4x8x8xf32>
    %598 = vector.shape_cast %597 : vector<1x4x8x8xf32> to vector<4x8x8xf32>
    %599 = arith.mulf %556, %598 : vector<4x8x8xf32>
    %cst_782 = arith.constant dense<0.000000e+00> : vector<8x8xf32>
    %600 = vector.multi_reduction <add>, %599, %cst_782 [0] : vector<4x8x8xf32> to vector<8x8xf32>
    %c1_783 = arith.constant 1 : index
    %c1_784 = arith.constant 1 : index
    %c0_785 = arith.constant 0 : index
    %c0_786 = arith.constant 0 : index
    %601 = vector.load %arg11[%c1_783, %c1_784, %c0_785, %c0_786] : memref<3x3x8x8xf32, #tpu.memory_space<vmem>>, vector<1x1x8x8xf32>
    %602 = vector.shape_cast %601 : vector<1x1x8x8xf32> to vector<8x8xf32>
    %603 = arith.addf %602, %600 : vector<8x8xf32>
    %c1_787 = arith.constant 1 : index
    %c1_788 = arith.constant 1 : index
    %c0_789 = arith.constant 0 : index
    %c0_790 = arith.constant 0 : index
    %604 = vector.load %arg11[%c1_787, %c1_788, %c0_789, %c0_790] : memref<3x3x8x8xf32, #tpu.memory_space<vmem>>, vector<1x1x8x8xf32>
    %605 = vector.shape_cast %604 : vector<1x1x8x8xf32> to vector<8x8xf32>
    %606 = vector.shape_cast %603 : vector<8x8xf32> to vector<1x1x8x8xf32>
    tpu.vector_store %arg11[%c1_787, %c1_788, %c0_789, %c0_790], %606 {strides = array<i32>} : memref<3x3x8x8xf32, #tpu.memory_space<vmem>>, vector<1x1x8x8xf32>,
    %c0_791 = arith.constant 0 : index
    %c0_792 = arith.constant 0 : index
    %c2_793 = arith.constant 2 : index
    %c2_794 = arith.constant 2 : index
    %607 = vector.load %arg6[%c0_791, %c0_792, %c2_793, %c2_794] : memref<1x4x11x11xf32, #tpu.memory_space<vmem>>, vector<1x4x8x8xf32>
    %608 = vector.shape_cast %607 : vector<1x4x8x8xf32> to vector<4x8x8xf32>
    %609 = arith.mulf %556, %608 : vector<4x8x8xf32>
    %cst_795 = arith.constant dense<0.000000e+00> : vector<8x8xf32>
    %610 = vector.multi_reduction <add>, %609, %cst_795 [0] : vector<4x8x8xf32> to vector<8x8xf32>
    %c1_796 = arith.constant 1 : index
    %c2_797 = arith.constant 2 : index
    %c0_798 = arith.constant 0 : index
    %c0_799 = arith.constant 0 : index
    %611 = vector.load %arg11[%c1_796, %c2_797, %c0_798, %c0_799] : memref<3x3x8x8xf32, #tpu.memory_space<vmem>>, vector<1x1x8x8xf32>
    %612 = vector.shape_cast %611 : vector<1x1x8x8xf32> to vector<8x8xf32>
    %613 = arith.addf %612, %610 : vector<8x8xf32>
    %c1_800 = arith.constant 1 : index
    %c2_801 = arith.constant 2 : index
    %c0_802 = arith.constant 0 : index
    %c0_803 = arith.constant 0 : index
    %614 = vector.load %arg11[%c1_800, %c2_801, %c0_802, %c0_803] : memref<3x3x8x8xf32, #tpu.memory_space<vmem>>, vector<1x1x8x8xf32>
    %615 = vector.shape_cast %614 : vector<1x1x8x8xf32> to vector<8x8xf32>
    %616 = vector.shape_cast %613 : vector<8x8xf32> to vector<1x1x8x8xf32>
    tpu.vector_store %arg11[%c1_800, %c2_801, %c0_802, %c0_803], %616 {strides = array<i32>} : memref<3x3x8x8xf32, #tpu.memory_space<vmem>>, vector<1x1x8x8xf32>,
    %c0_804 = arith.constant 0 : index
    %c0_805 = arith.constant 0 : index
    %c3_806 = arith.constant 3 : index
    %c0_807 = arith.constant 0 : index
    %617 = vector.load %arg6[%c0_804, %c0_805, %c3_806, %c0_807] : memref<1x4x11x11xf32, #tpu.memory_space<vmem>>, vector<1x4x8x8xf32>
    %618 = vector.shape_cast %617 : vector<1x4x8x8xf32> to vector<4x8x8xf32>
    %619 = arith.mulf %556, %618 : vector<4x8x8xf32>
    %cst_808 = arith.constant dense<0.000000e+00> : vector<8x8xf32>
    %620 = vector.multi_reduction <add>, %619, %cst_808 [0] : vector<4x8x8xf32> to vector<8x8xf32>
    %c2_809 = arith.constant 2 : index
    %c0_810 = arith.constant 0 : index
    %c0_811 = arith.constant 0 : index
    %c0_812 = arith.constant 0 : index
    %621 = vector.load %arg11[%c2_809, %c0_810, %c0_811, %c0_812] : memref<3x3x8x8xf32, #tpu.memory_space<vmem>>, vector<1x1x8x8xf32>
    %622 = vector.shape_cast %621 : vector<1x1x8x8xf32> to vector<8x8xf32>
    %623 = arith.addf %622, %620 : vector<8x8xf32>
    %c2_813 = arith.constant 2 : index
    %c0_814 = arith.constant 0 : index
    %c0_815 = arith.constant 0 : index
    %c0_816 = arith.constant 0 : index
    %624 = vector.load %arg11[%c2_813, %c0_814, %c0_815, %c0_816] : memref<3x3x8x8xf32, #tpu.memory_space<vmem>>, vector<1x1x8x8xf32>
    %625 = vector.shape_cast %624 : vector<1x1x8x8xf32> to vector<8x8xf32>
    %626 = vector.shape_cast %623 : vector<8x8xf32> to vector<1x1x8x8xf32>
    tpu.vector_store %arg11[%c2_813, %c0_814, %c0_815, %c0_816], %626 {strides = array<i32>} : memref<3x3x8x8xf32, #tpu.memory_space<vmem>>, vector<1x1x8x8xf32>,
    %c0_817 = arith.constant 0 : index
    %c0_818 = arith.constant 0 : index
    %c3_819 = arith.constant 3 : index
    %c1_820 = arith.constant 1 : index
    %627 = vector.load %arg6[%c0_817, %c0_818, %c3_819, %c1_820] : memref<1x4x11x11xf32, #tpu.memory_space<vmem>>, vector<1x4x8x8xf32>
    %628 = vector.shape_cast %627 : vector<1x4x8x8xf32> to vector<4x8x8xf32>
    %629 = arith.mulf %556, %628 : vector<4x8x8xf32>
    %cst_821 = arith.constant dense<0.000000e+00> : vector<8x8xf32>
    %630 = vector.multi_reduction <add>, %629, %cst_821 [0] : vector<4x8x8xf32> to vector<8x8xf32>
    %c2_822 = arith.constant 2 : index
    %c1_823 = arith.constant 1 : index
    %c0_824 = arith.constant 0 : index
    %c0_825 = arith.constant 0 : index
    %631 = vector.load %arg11[%c2_822, %c1_823, %c0_824, %c0_825] : memref<3x3x8x8xf32, #tpu.memory_space<vmem>>, vector<1x1x8x8xf32>
    %632 = vector.shape_cast %631 : vector<1x1x8x8xf32> to vector<8x8xf32>
    %633 = arith.addf %632, %630 : vector<8x8xf32>
    %c2_826 = arith.constant 2 : index
    %c1_827 = arith.constant 1 : index
    %c0_828 = arith.constant 0 : index
    %c0_829 = arith.constant 0 : index
    %634 = vector.load %arg11[%c2_826, %c1_827, %c0_828, %c0_829] : memref<3x3x8x8xf32, #tpu.memory_space<vmem>>, vector<1x1x8x8xf32>
    %635 = vector.shape_cast %634 : vector<1x1x8x8xf32> to vector<8x8xf32>
    %636 = vector.shape_cast %633 : vector<8x8xf32> to vector<1x1x8x8xf32>
    tpu.vector_store %arg11[%c2_826, %c1_827, %c0_828, %c0_829], %636 {strides = array<i32>} : memref<3x3x8x8xf32, #tpu.memory_space<vmem>>, vector<1x1x8x8xf32>,
    %c0_830 = arith.constant 0 : index
    %c0_831 = arith.constant 0 : index
    %c3_832 = arith.constant 3 : index
    %c2_833 = arith.constant 2 : index
    %637 = vector.load %arg6[%c0_830, %c0_831, %c3_832, %c2_833] : memref<1x4x11x11xf32, #tpu.memory_space<vmem>>, vector<1x4x8x8xf32>
    %638 = vector.shape_cast %637 : vector<1x4x8x8xf32> to vector<4x8x8xf32>
    %639 = arith.mulf %556, %638 : vector<4x8x8xf32>
    %cst_834 = arith.constant dense<0.000000e+00> : vector<8x8xf32>
    %640 = vector.multi_reduction <add>, %639, %cst_834 [0] : vector<4x8x8xf32> to vector<8x8xf32>
    %c2_835 = arith.constant 2 : index
    %c2_836 = arith.constant 2 : index
    %c0_837 = arith.constant 0 : index
    %c0_838 = arith.constant 0 : index
    %641 = vector.load %arg11[%c2_835, %c2_836, %c0_837, %c0_838] : memref<3x3x8x8xf32, #tpu.memory_space<vmem>>, vector<1x1x8x8xf32>
    %642 = vector.shape_cast %641 : vector<1x1x8x8xf32> to vector<8x8xf32>
    %643 = arith.addf %642, %640 : vector<8x8xf32>
    %c2_839 = arith.constant 2 : index
    %c2_840 = arith.constant 2 : index
    %c0_841 = arith.constant 0 : index
    %c0_842 = arith.constant 0 : index
    %644 = vector.load %arg11[%c2_839, %c2_840, %c0_841, %c0_842] : memref<3x3x8x8xf32, #tpu.memory_space<vmem>>, vector<1x1x8x8xf32>
    %645 = vector.shape_cast %644 : vector<1x1x8x8xf32> to vector<8x8xf32>
    %646 = vector.shape_cast %643 : vector<8x8xf32> to vector<1x1x8x8xf32>
    tpu.vector_store %arg11[%c2_839, %c2_840, %c0_841, %c0_842], %646 {strides = array<i32>} : memref<3x3x8x8xf32, #tpu.memory_space<vmem>>, vector<1x1x8x8xf32>,
    %c0_843 = arith.constant 0 : index
    %c0_844 = arith.constant 0 : index
    %c1_845 = arith.constant 1 : index
    %c0_846 = arith.constant 0 : index
    %647 = vector.load %arg3[%c0_843, %c0_844, %c1_845, %c0_846] : memref<1x4x9x9xf32, #tpu.memory_space<vmem>>, vector<1x4x8x8xf32>
    %648 = vector.shape_cast %647 : vector<1x4x8x8xf32> to vector<4x8x8xf32>
    %c0_847 = arith.constant 0 : index
    %c0_848 = arith.constant 0 : index
    %c1_849 = arith.constant 1 : index
    %c0_850 = arith.constant 0 : index
    %649 = vector.load %arg7[%c0_847, %c0_848, %c1_849, %c0_850] : memref<1x4x11x11xf32, #tpu.memory_space<vmem>>, vector<1x4x8x8xf32>
    %650 = vector.shape_cast %649 : vector<1x4x8x8xf32> to vector<4x8x8xf32>
    %651 = arith.mulf %648, %650 : vector<4x8x8xf32>
    %cst_851 = arith.constant dense<0.000000e+00> : vector<8x8xf32>
    %652 = vector.multi_reduction <add>, %651, %cst_851 [0] : vector<4x8x8xf32> to vector<8x8xf32>
    %c0_852 = arith.constant 0 : index
    %c0_853 = arith.constant 0 : index
    %c0_854 = arith.constant 0 : index
    %c0_855 = arith.constant 0 : index
    %653 = vector.load %arg11[%c0_852, %c0_853, %c0_854, %c0_855] : memref<3x3x8x8xf32, #tpu.memory_space<vmem>>, vector<1x1x8x8xf32>
    %654 = vector.shape_cast %653 : vector<1x1x8x8xf32> to vector<8x8xf32>
    %655 = arith.addf %654, %652 : vector<8x8xf32>
    %c0_856 = arith.constant 0 : index
    %c0_857 = arith.constant 0 : index
    %c0_858 = arith.constant 0 : index
    %c0_859 = arith.constant 0 : index
    %656 = vector.load %arg11[%c0_856, %c0_857, %c0_858, %c0_859] : memref<3x3x8x8xf32, #tpu.memory_space<vmem>>, vector<1x1x8x8xf32>
    %657 = vector.shape_cast %656 : vector<1x1x8x8xf32> to vector<8x8xf32>
    %658 = vector.shape_cast %655 : vector<8x8xf32> to vector<1x1x8x8xf32>
    tpu.vector_store %arg11[%c0_856, %c0_857, %c0_858, %c0_859], %658 {strides = array<i32>} : memref<3x3x8x8xf32, #tpu.memory_space<vmem>>, vector<1x1x8x8xf32>,
    %c0_860 = arith.constant 0 : index
    %c0_861 = arith.constant 0 : index
    %c1_862 = arith.constant 1 : index
    %c1_863 = arith.constant 1 : index
    %659 = vector.load %arg7[%c0_860, %c0_861, %c1_862, %c1_863] : memref<1x4x11x11xf32, #tpu.memory_space<vmem>>, vector<1x4x8x8xf32>
    %660 = vector.shape_cast %659 : vector<1x4x8x8xf32> to vector<4x8x8xf32>
    %661 = arith.mulf %648, %660 : vector<4x8x8xf32>
    %cst_864 = arith.constant dense<0.000000e+00> : vector<8x8xf32>
    %662 = vector.multi_reduction <add>, %661, %cst_864 [0] : vector<4x8x8xf32> to vector<8x8xf32>
    %c0_865 = arith.constant 0 : index
    %c1_866 = arith.constant 1 : index
    %c0_867 = arith.constant 0 : index
    %c0_868 = arith.constant 0 : index
    %663 = vector.load %arg11[%c0_865, %c1_866, %c0_867, %c0_868] : memref<3x3x8x8xf32, #tpu.memory_space<vmem>>, vector<1x1x8x8xf32>
    %664 = vector.shape_cast %663 : vector<1x1x8x8xf32> to vector<8x8xf32>
    %665 = arith.addf %664, %662 : vector<8x8xf32>
    %c0_869 = arith.constant 0 : index
    %c1_870 = arith.constant 1 : index
    %c0_871 = arith.constant 0 : index
    %c0_872 = arith.constant 0 : index
    %666 = vector.load %arg11[%c0_869, %c1_870, %c0_871, %c0_872] : memref<3x3x8x8xf32, #tpu.memory_space<vmem>>, vector<1x1x8x8xf32>
    %667 = vector.shape_cast %666 : vector<1x1x8x8xf32> to vector<8x8xf32>
    %668 = vector.shape_cast %665 : vector<8x8xf32> to vector<1x1x8x8xf32>
    tpu.vector_store %arg11[%c0_869, %c1_870, %c0_871, %c0_872], %668 {strides = array<i32>} : memref<3x3x8x8xf32, #tpu.memory_space<vmem>>, vector<1x1x8x8xf32>,
    %c0_873 = arith.constant 0 : index
    %c0_874 = arith.constant 0 : index
    %c1_875 = arith.constant 1 : index
    %c2_876 = arith.constant 2 : index
    %669 = vector.load %arg7[%c0_873, %c0_874, %c1_875, %c2_876] : memref<1x4x11x11xf32, #tpu.memory_space<vmem>>, vector<1x4x8x8xf32>
    %670 = vector.shape_cast %669 : vector<1x4x8x8xf32> to vector<4x8x8xf32>
    %671 = arith.mulf %648, %670 : vector<4x8x8xf32>
    %cst_877 = arith.constant dense<0.000000e+00> : vector<8x8xf32>
    %672 = vector.multi_reduction <add>, %671, %cst_877 [0] : vector<4x8x8xf32> to vector<8x8xf32>
    %c0_878 = arith.constant 0 : index
    %c2_879 = arith.constant 2 : index
    %c0_880 = arith.constant 0 : index
    %c0_881 = arith.constant 0 : index
    %673 = vector.load %arg11[%c0_878, %c2_879, %c0_880, %c0_881] : memref<3x3x8x8xf32, #tpu.memory_space<vmem>>, vector<1x1x8x8xf32>
    %674 = vector.shape_cast %673 : vector<1x1x8x8xf32> to vector<8x8xf32>
    %675 = arith.addf %674, %672 : vector<8x8xf32>
    %c0_882 = arith.constant 0 : index
    %c2_883 = arith.constant 2 : index
    %c0_884 = arith.constant 0 : index
    %c0_885 = arith.constant 0 : index
    %676 = vector.load %arg11[%c0_882, %c2_883, %c0_884, %c0_885] : memref<3x3x8x8xf32, #tpu.memory_space<vmem>>, vector<1x1x8x8xf32>
    %677 = vector.shape_cast %676 : vector<1x1x8x8xf32> to vector<8x8xf32>
    %678 = vector.shape_cast %675 : vector<8x8xf32> to vector<1x1x8x8xf32>
    tpu.vector_store %arg11[%c0_882, %c2_883, %c0_884, %c0_885], %678 {strides = array<i32>} : memref<3x3x8x8xf32, #tpu.memory_space<vmem>>, vector<1x1x8x8xf32>,
    %c0_886 = arith.constant 0 : index
    %c0_887 = arith.constant 0 : index
    %c2_888 = arith.constant 2 : index
    %c0_889 = arith.constant 0 : index
    %679 = vector.load %arg7[%c0_886, %c0_887, %c2_888, %c0_889] : memref<1x4x11x11xf32, #tpu.memory_space<vmem>>, vector<1x4x8x8xf32>
    %680 = vector.shape_cast %679 : vector<1x4x8x8xf32> to vector<4x8x8xf32>
    %681 = arith.mulf %648, %680 : vector<4x8x8xf32>
    %cst_890 = arith.constant dense<0.000000e+00> : vector<8x8xf32>
    %682 = vector.multi_reduction <add>, %681, %cst_890 [0] : vector<4x8x8xf32> to vector<8x8xf32>
    %c1_891 = arith.constant 1 : index
    %c0_892 = arith.constant 0 : index
    %c0_893 = arith.constant 0 : index
    %c0_894 = arith.constant 0 : index
    %683 = vector.load %arg11[%c1_891, %c0_892, %c0_893, %c0_894] : memref<3x3x8x8xf32, #tpu.memory_space<vmem>>, vector<1x1x8x8xf32>
    %684 = vector.shape_cast %683 : vector<1x1x8x8xf32> to vector<8x8xf32>
    %685 = arith.addf %684, %682 : vector<8x8xf32>
    %c1_895 = arith.constant 1 : index
    %c0_896 = arith.constant 0 : index
    %c0_897 = arith.constant 0 : index
    %c0_898 = arith.constant 0 : index
    %686 = vector.load %arg11[%c1_895, %c0_896, %c0_897, %c0_898] : memref<3x3x8x8xf32, #tpu.memory_space<vmem>>, vector<1x1x8x8xf32>
    %687 = vector.shape_cast %686 : vector<1x1x8x8xf32> to vector<8x8xf32>
    %688 = vector.shape_cast %685 : vector<8x8xf32> to vector<1x1x8x8xf32>
    tpu.vector_store %arg11[%c1_895, %c0_896, %c0_897, %c0_898], %688 {strides = array<i32>} : memref<3x3x8x8xf32, #tpu.memory_space<vmem>>, vector<1x1x8x8xf32>,
    %c0_899 = arith.constant 0 : index
    %c0_900 = arith.constant 0 : index
    %c2_901 = arith.constant 2 : index
    %c1_902 = arith.constant 1 : index
    %689 = vector.load %arg7[%c0_899, %c0_900, %c2_901, %c1_902] : memref<1x4x11x11xf32, #tpu.memory_space<vmem>>, vector<1x4x8x8xf32>
    %690 = vector.shape_cast %689 : vector<1x4x8x8xf32> to vector<4x8x8xf32>
    %691 = arith.mulf %648, %690 : vector<4x8x8xf32>
    %cst_903 = arith.constant dense<0.000000e+00> : vector<8x8xf32>
    %692 = vector.multi_reduction <add>, %691, %cst_903 [0] : vector<4x8x8xf32> to vector<8x8xf32>
    %c1_904 = arith.constant 1 : index
    %c1_905 = arith.constant 1 : index
    %c0_906 = arith.constant 0 : index
    %c0_907 = arith.constant 0 : index
    %693 = vector.load %arg11[%c1_904, %c1_905, %c0_906, %c0_907] : memref<3x3x8x8xf32, #tpu.memory_space<vmem>>, vector<1x1x8x8xf32>
    %694 = vector.shape_cast %693 : vector<1x1x8x8xf32> to vector<8x8xf32>
    %695 = arith.addf %694, %692 : vector<8x8xf32>
    %c1_908 = arith.constant 1 : index
    %c1_909 = arith.constant 1 : index
    %c0_910 = arith.constant 0 : index
    %c0_911 = arith.constant 0 : index
    %696 = vector.load %arg11[%c1_908, %c1_909, %c0_910, %c0_911] : memref<3x3x8x8xf32, #tpu.memory_space<vmem>>, vector<1x1x8x8xf32>
    %697 = vector.shape_cast %696 : vector<1x1x8x8xf32> to vector<8x8xf32>
    %698 = vector.shape_cast %695 : vector<8x8xf32> to vector<1x1x8x8xf32>
    tpu.vector_store %arg11[%c1_908, %c1_909, %c0_910, %c0_911], %698 {strides = array<i32>} : memref<3x3x8x8xf32, #tpu.memory_space<vmem>>, vector<1x1x8x8xf32>,
    %c0_912 = arith.constant 0 : index
    %c0_913 = arith.constant 0 : index
    %c2_914 = arith.constant 2 : index
    %c2_915 = arith.constant 2 : index
    %699 = vector.load %arg7[%c0_912, %c0_913, %c2_914, %c2_915] : memref<1x4x11x11xf32, #tpu.memory_space<vmem>>, vector<1x4x8x8xf32>
    %700 = vector.shape_cast %699 : vector<1x4x8x8xf32> to vector<4x8x8xf32>
    %701 = arith.mulf %648, %700 : vector<4x8x8xf32>
    %cst_916 = arith.constant dense<0.000000e+00> : vector<8x8xf32>
    %702 = vector.multi_reduction <add>, %701, %cst_916 [0] : vector<4x8x8xf32> to vector<8x8xf32>
    %c1_917 = arith.constant 1 : index
    %c2_918 = arith.constant 2 : index
    %c0_919 = arith.constant 0 : index
    %c0_920 = arith.constant 0 : index
    %703 = vector.load %arg11[%c1_917, %c2_918, %c0_919, %c0_920] : memref<3x3x8x8xf32, #tpu.memory_space<vmem>>, vector<1x1x8x8xf32>
    %704 = vector.shape_cast %703 : vector<1x1x8x8xf32> to vector<8x8xf32>
    %705 = arith.addf %704, %702 : vector<8x8xf32>
    %c1_921 = arith.constant 1 : index
    %c2_922 = arith.constant 2 : index
    %c0_923 = arith.constant 0 : index
    %c0_924 = arith.constant 0 : index
    %706 = vector.load %arg11[%c1_921, %c2_922, %c0_923, %c0_924] : memref<3x3x8x8xf32, #tpu.memory_space<vmem>>, vector<1x1x8x8xf32>
    %707 = vector.shape_cast %706 : vector<1x1x8x8xf32> to vector<8x8xf32>
    %708 = vector.shape_cast %705 : vector<8x8xf32> to vector<1x1x8x8xf32>
    tpu.vector_store %arg11[%c1_921, %c2_922, %c0_923, %c0_924], %708 {strides = array<i32>} : memref<3x3x8x8xf32, #tpu.memory_space<vmem>>, vector<1x1x8x8xf32>,
    %c0_925 = arith.constant 0 : index
    %c0_926 = arith.constant 0 : index
    %c3_927 = arith.constant 3 : index
    %c0_928 = arith.constant 0 : index
    %709 = vector.load %arg7[%c0_925, %c0_926, %c3_927, %c0_928] : memref<1x4x11x11xf32, #tpu.memory_space<vmem>>, vector<1x4x8x8xf32>
    %710 = vector.shape_cast %709 : vector<1x4x8x8xf32> to vector<4x8x8xf32>
    %711 = arith.mulf %648, %710 : vector<4x8x8xf32>
    %cst_929 = arith.constant dense<0.000000e+00> : vector<8x8xf32>
    %712 = vector.multi_reduction <add>, %711, %cst_929 [0] : vector<4x8x8xf32> to vector<8x8xf32>
    %c2_930 = arith.constant 2 : index
    %c0_931 = arith.constant 0 : index
    %c0_932 = arith.constant 0 : index
    %c0_933 = arith.constant 0 : index
    %713 = vector.load %arg11[%c2_930, %c0_931, %c0_932, %c0_933] : memref<3x3x8x8xf32, #tpu.memory_space<vmem>>, vector<1x1x8x8xf32>
    %714 = vector.shape_cast %713 : vector<1x1x8x8xf32> to vector<8x8xf32>
    %715 = arith.addf %714, %712 : vector<8x8xf32>
    %c2_934 = arith.constant 2 : index
    %c0_935 = arith.constant 0 : index
    %c0_936 = arith.constant 0 : index
    %c0_937 = arith.constant 0 : index
    %716 = vector.load %arg11[%c2_934, %c0_935, %c0_936, %c0_937] : memref<3x3x8x8xf32, #tpu.memory_space<vmem>>, vector<1x1x8x8xf32>
    %717 = vector.shape_cast %716 : vector<1x1x8x8xf32> to vector<8x8xf32>
    %718 = vector.shape_cast %715 : vector<8x8xf32> to vector<1x1x8x8xf32>
    tpu.vector_store %arg11[%c2_934, %c0_935, %c0_936, %c0_937], %718 {strides = array<i32>} : memref<3x3x8x8xf32, #tpu.memory_space<vmem>>, vector<1x1x8x8xf32>,
    %c0_938 = arith.constant 0 : index
    %c0_939 = arith.constant 0 : index
    %c3_940 = arith.constant 3 : index
    %c1_941 = arith.constant 1 : index
    %719 = vector.load %arg7[%c0_938, %c0_939, %c3_940, %c1_941] : memref<1x4x11x11xf32, #tpu.memory_space<vmem>>, vector<1x4x8x8xf32>
    %720 = vector.shape_cast %719 : vector<1x4x8x8xf32> to vector<4x8x8xf32>
    %721 = arith.mulf %648, %720 : vector<4x8x8xf32>
    %cst_942 = arith.constant dense<0.000000e+00> : vector<8x8xf32>
    %722 = vector.multi_reduction <add>, %721, %cst_942 [0] : vector<4x8x8xf32> to vector<8x8xf32>
    %c2_943 = arith.constant 2 : index
    %c1_944 = arith.constant 1 : index
    %c0_945 = arith.constant 0 : index
    %c0_946 = arith.constant 0 : index
    %723 = vector.load %arg11[%c2_943, %c1_944, %c0_945, %c0_946] : memref<3x3x8x8xf32, #tpu.memory_space<vmem>>, vector<1x1x8x8xf32>
    %724 = vector.shape_cast %723 : vector<1x1x8x8xf32> to vector<8x8xf32>
    %725 = arith.addf %724, %722 : vector<8x8xf32>
    %c2_947 = arith.constant 2 : index
    %c1_948 = arith.constant 1 : index
    %c0_949 = arith.constant 0 : index
    %c0_950 = arith.constant 0 : index
    %726 = vector.load %arg11[%c2_947, %c1_948, %c0_949, %c0_950] : memref<3x3x8x8xf32, #tpu.memory_space<vmem>>, vector<1x1x8x8xf32>
    %727 = vector.shape_cast %726 : vector<1x1x8x8xf32> to vector<8x8xf32>
    %728 = vector.shape_cast %725 : vector<8x8xf32> to vector<1x1x8x8xf32>
    tpu.vector_store %arg11[%c2_947, %c1_948, %c0_949, %c0_950], %728 {strides = array<i32>} : memref<3x3x8x8xf32, #tpu.memory_space<vmem>>, vector<1x1x8x8xf32>,
    %c0_951 = arith.constant 0 : index
    %c0_952 = arith.constant 0 : index
    %c3_953 = arith.constant 3 : index
    %c2_954 = arith.constant 2 : index
    %729 = vector.load %arg7[%c0_951, %c0_952, %c3_953, %c2_954] : memref<1x4x11x11xf32, #tpu.memory_space<vmem>>, vector<1x4x8x8xf32>
    %730 = vector.shape_cast %729 : vector<1x4x8x8xf32> to vector<4x8x8xf32>
    %731 = arith.mulf %648, %730 : vector<4x8x8xf32>
    %cst_955 = arith.constant dense<0.000000e+00> : vector<8x8xf32>
    %732 = vector.multi_reduction <add>, %731, %cst_955 [0] : vector<4x8x8xf32> to vector<8x8xf32>
    %c2_956 = arith.constant 2 : index
    %c2_957 = arith.constant 2 : index
    %c0_958 = arith.constant 0 : index
    %c0_959 = arith.constant 0 : index
    %733 = vector.load %arg11[%c2_956, %c2_957, %c0_958, %c0_959] : memref<3x3x8x8xf32, #tpu.memory_space<vmem>>, vector<1x1x8x8xf32>
    %734 = vector.shape_cast %733 : vector<1x1x8x8xf32> to vector<8x8xf32>
    %735 = arith.addf %734, %732 : vector<8x8xf32>
    %c2_960 = arith.constant 2 : index
    %c2_961 = arith.constant 2 : index
    %c0_962 = arith.constant 0 : index
    %c0_963 = arith.constant 0 : index
    %736 = vector.load %arg11[%c2_960, %c2_961, %c0_962, %c0_963] : memref<3x3x8x8xf32, #tpu.memory_space<vmem>>, vector<1x1x8x8xf32>
    %737 = vector.shape_cast %736 : vector<1x1x8x8xf32> to vector<8x8xf32>
    %738 = vector.shape_cast %735 : vector<8x8xf32> to vector<1x1x8x8xf32>
    tpu.vector_store %arg11[%c2_960, %c2_961, %c0_962, %c0_963], %738 {strides = array<i32>} : memref<3x3x8x8xf32, #tpu.memory_space<vmem>>, vector<1x1x8x8xf32>,
    %c0_964 = arith.constant 0 : index
    %c0_965 = arith.constant 0 : index
    %c1_966 = arith.constant 1 : index
    %c1_967 = arith.constant 1 : index
    %739 = vector.load %arg2[%c0_964, %c0_965, %c1_966, %c1_967] : memref<1x4x9x9xf32, #tpu.memory_space<vmem>>, vector<1x4x8x8xf32>
    %740 = vector.shape_cast %739 : vector<1x4x8x8xf32> to vector<4x8x8xf32>
    %c0_968 = arith.constant 0 : index
    %c0_969 = arith.constant 0 : index
    %c1_970 = arith.constant 1 : index
    %c1_971 = arith.constant 1 : index
    %741 = vector.load %arg6[%c0_968, %c0_969, %c1_970, %c1_971] : memref<1x4x11x11xf32, #tpu.memory_space<vmem>>, vector<1x4x8x8xf32>
    %742 = vector.shape_cast %741 : vector<1x4x8x8xf32> to vector<4x8x8xf32>
    %743 = arith.mulf %740, %742 : vector<4x8x8xf32>
    %cst_972 = arith.constant dense<0.000000e+00> : vector<8x8xf32>
    %744 = vector.multi_reduction <add>, %743, %cst_972 [0] : vector<4x8x8xf32> to vector<8x8xf32>
    %c0_973 = arith.constant 0 : index
    %c0_974 = arith.constant 0 : index
    %c0_975 = arith.constant 0 : index
    %c0_976 = arith.constant 0 : index
    %745 = vector.load %arg11[%c0_973, %c0_974, %c0_975, %c0_976] : memref<3x3x8x8xf32, #tpu.memory_space<vmem>>, vector<1x1x8x8xf32>
    %746 = vector.shape_cast %745 : vector<1x1x8x8xf32> to vector<8x8xf32>
    %747 = arith.addf %746, %744 : vector<8x8xf32>
    %c0_977 = arith.constant 0 : index
    %c0_978 = arith.constant 0 : index
    %c0_979 = arith.constant 0 : index
    %c0_980 = arith.constant 0 : index
    %748 = vector.load %arg11[%c0_977, %c0_978, %c0_979, %c0_980] : memref<3x3x8x8xf32, #tpu.memory_space<vmem>>, vector<1x1x8x8xf32>
    %749 = vector.shape_cast %748 : vector<1x1x8x8xf32> to vector<8x8xf32>
    %750 = vector.shape_cast %747 : vector<8x8xf32> to vector<1x1x8x8xf32>
    tpu.vector_store %arg11[%c0_977, %c0_978, %c0_979, %c0_980], %750 {strides = array<i32>} : memref<3x3x8x8xf32, #tpu.memory_space<vmem>>, vector<1x1x8x8xf32>,
    %c0_981 = arith.constant 0 : index
    %c0_982 = arith.constant 0 : index
    %c1_983 = arith.constant 1 : index
    %c2_984 = arith.constant 2 : index
    %751 = vector.load %arg6[%c0_981, %c0_982, %c1_983, %c2_984] : memref<1x4x11x11xf32, #tpu.memory_space<vmem>>, vector<1x4x8x8xf32>
    %752 = vector.shape_cast %751 : vector<1x4x8x8xf32> to vector<4x8x8xf32>
    %753 = arith.mulf %740, %752 : vector<4x8x8xf32>
    %cst_985 = arith.constant dense<0.000000e+00> : vector<8x8xf32>
    %754 = vector.multi_reduction <add>, %753, %cst_985 [0] : vector<4x8x8xf32> to vector<8x8xf32>
    %c0_986 = arith.constant 0 : index
    %c1_987 = arith.constant 1 : index
    %c0_988 = arith.constant 0 : index
    %c0_989 = arith.constant 0 : index
    %755 = vector.load %arg11[%c0_986, %c1_987, %c0_988, %c0_989] : memref<3x3x8x8xf32, #tpu.memory_space<vmem>>, vector<1x1x8x8xf32>
    %756 = vector.shape_cast %755 : vector<1x1x8x8xf32> to vector<8x8xf32>
    %757 = arith.addf %756, %754 : vector<8x8xf32>
    %c0_990 = arith.constant 0 : index
    %c1_991 = arith.constant 1 : index
    %c0_992 = arith.constant 0 : index
    %c0_993 = arith.constant 0 : index
    %758 = vector.load %arg11[%c0_990, %c1_991, %c0_992, %c0_993] : memref<3x3x8x8xf32, #tpu.memory_space<vmem>>, vector<1x1x8x8xf32>
    %759 = vector.shape_cast %758 : vector<1x1x8x8xf32> to vector<8x8xf32>
    %760 = vector.shape_cast %757 : vector<8x8xf32> to vector<1x1x8x8xf32>
    tpu.vector_store %arg11[%c0_990, %c1_991, %c0_992, %c0_993], %760 {strides = array<i32>} : memref<3x3x8x8xf32, #tpu.memory_space<vmem>>, vector<1x1x8x8xf32>,
    %c0_994 = arith.constant 0 : index
    %c0_995 = arith.constant 0 : index
    %c1_996 = arith.constant 1 : index
    %c3_997 = arith.constant 3 : index
    %761 = vector.load %arg6[%c0_994, %c0_995, %c1_996, %c3_997] : memref<1x4x11x11xf32, #tpu.memory_space<vmem>>, vector<1x4x8x8xf32>
    %762 = vector.shape_cast %761 : vector<1x4x8x8xf32> to vector<4x8x8xf32>
    %763 = arith.mulf %740, %762 : vector<4x8x8xf32>
    %cst_998 = arith.constant dense<0.000000e+00> : vector<8x8xf32>
    %764 = vector.multi_reduction <add>, %763, %cst_998 [0] : vector<4x8x8xf32> to vector<8x8xf32>
    %c0_999 = arith.constant 0 : index
    %c2_1000 = arith.constant 2 : index
    %c0_1001 = arith.constant 0 : index
    %c0_1002 = arith.constant 0 : index
    %765 = vector.load %arg11[%c0_999, %c2_1000, %c0_1001, %c0_1002] : memref<3x3x8x8xf32, #tpu.memory_space<vmem>>, vector<1x1x8x8xf32>
    %766 = vector.shape_cast %765 : vector<1x1x8x8xf32> to vector<8x8xf32>
    %767 = arith.addf %766, %764 : vector<8x8xf32>
    %c0_1003 = arith.constant 0 : index
    %c2_1004 = arith.constant 2 : index
    %c0_1005 = arith.constant 0 : index
    %c0_1006 = arith.constant 0 : index
    %768 = vector.load %arg11[%c0_1003, %c2_1004, %c0_1005, %c0_1006] : memref<3x3x8x8xf32, #tpu.memory_space<vmem>>, vector<1x1x8x8xf32>
    %769 = vector.shape_cast %768 : vector<1x1x8x8xf32> to vector<8x8xf32>
    %770 = vector.shape_cast %767 : vector<8x8xf32> to vector<1x1x8x8xf32>
    tpu.vector_store %arg11[%c0_1003, %c2_1004, %c0_1005, %c0_1006], %770 {strides = array<i32>} : memref<3x3x8x8xf32, #tpu.memory_space<vmem>>, vector<1x1x8x8xf32>,
    %c0_1007 = arith.constant 0 : index
    %c0_1008 = arith.constant 0 : index
    %c2_1009 = arith.constant 2 : index
    %c1_1010 = arith.constant 1 : index
    %771 = vector.load %arg6[%c0_1007, %c0_1008, %c2_1009, %c1_1010] : memref<1x4x11x11xf32, #tpu.memory_space<vmem>>, vector<1x4x8x8xf32>
    %772 = vector.shape_cast %771 : vector<1x4x8x8xf32> to vector<4x8x8xf32>
    %773 = arith.mulf %740, %772 : vector<4x8x8xf32>
    %cst_1011 = arith.constant dense<0.000000e+00> : vector<8x8xf32>
    %774 = vector.multi_reduction <add>, %773, %cst_1011 [0] : vector<4x8x8xf32> to vector<8x8xf32>
    %c1_1012 = arith.constant 1 : index
    %c0_1013 = arith.constant 0 : index
    %c0_1014 = arith.constant 0 : index
    %c0_1015 = arith.constant 0 : index
    %775 = vector.load %arg11[%c1_1012, %c0_1013, %c0_1014, %c0_1015] : memref<3x3x8x8xf32, #tpu.memory_space<vmem>>, vector<1x1x8x8xf32>
    %776 = vector.shape_cast %775 : vector<1x1x8x8xf32> to vector<8x8xf32>
    %777 = arith.addf %776, %774 : vector<8x8xf32>
    %c1_1016 = arith.constant 1 : index
    %c0_1017 = arith.constant 0 : index
    %c0_1018 = arith.constant 0 : index
    %c0_1019 = arith.constant 0 : index
    %778 = vector.load %arg11[%c1_1016, %c0_1017, %c0_1018, %c0_1019] : memref<3x3x8x8xf32, #tpu.memory_space<vmem>>, vector<1x1x8x8xf32>
    %779 = vector.shape_cast %778 : vector<1x1x8x8xf32> to vector<8x8xf32>
    %780 = vector.shape_cast %777 : vector<8x8xf32> to vector<1x1x8x8xf32>
    tpu.vector_store %arg11[%c1_1016, %c0_1017, %c0_1018, %c0_1019], %780 {strides = array<i32>} : memref<3x3x8x8xf32, #tpu.memory_space<vmem>>, vector<1x1x8x8xf32>,
    %c0_1020 = arith.constant 0 : index
    %c0_1021 = arith.constant 0 : index
    %c2_1022 = arith.constant 2 : index
    %c2_1023 = arith.constant 2 : index
    %781 = vector.load %arg6[%c0_1020, %c0_1021, %c2_1022, %c2_1023] : memref<1x4x11x11xf32, #tpu.memory_space<vmem>>, vector<1x4x8x8xf32>
    %782 = vector.shape_cast %781 : vector<1x4x8x8xf32> to vector<4x8x8xf32>
    %783 = arith.mulf %740, %782 : vector<4x8x8xf32>
    %cst_1024 = arith.constant dense<0.000000e+00> : vector<8x8xf32>
    %784 = vector.multi_reduction <add>, %783, %cst_1024 [0] : vector<4x8x8xf32> to vector<8x8xf32>
    %c1_1025 = arith.constant 1 : index
    %c1_1026 = arith.constant 1 : index
    %c0_1027 = arith.constant 0 : index
    %c0_1028 = arith.constant 0 : index
    %785 = vector.load %arg11[%c1_1025, %c1_1026, %c0_1027, %c0_1028] : memref<3x3x8x8xf32, #tpu.memory_space<vmem>>, vector<1x1x8x8xf32>
    %786 = vector.shape_cast %785 : vector<1x1x8x8xf32> to vector<8x8xf32>
    %787 = arith.addf %786, %784 : vector<8x8xf32>
    %c1_1029 = arith.constant 1 : index
    %c1_1030 = arith.constant 1 : index
    %c0_1031 = arith.constant 0 : index
    %c0_1032 = arith.constant 0 : index
    %788 = vector.load %arg11[%c1_1029, %c1_1030, %c0_1031, %c0_1032] : memref<3x3x8x8xf32, #tpu.memory_space<vmem>>, vector<1x1x8x8xf32>
    %789 = vector.shape_cast %788 : vector<1x1x8x8xf32> to vector<8x8xf32>
    %790 = vector.shape_cast %787 : vector<8x8xf32> to vector<1x1x8x8xf32>
    tpu.vector_store %arg11[%c1_1029, %c1_1030, %c0_1031, %c0_1032], %790 {strides = array<i32>} : memref<3x3x8x8xf32, #tpu.memory_space<vmem>>, vector<1x1x8x8xf32>,
    %c0_1033 = arith.constant 0 : index
    %c0_1034 = arith.constant 0 : index
    %c2_1035 = arith.constant 2 : index
    %c3_1036 = arith.constant 3 : index
    %791 = vector.load %arg6[%c0_1033, %c0_1034, %c2_1035, %c3_1036] : memref<1x4x11x11xf32, #tpu.memory_space<vmem>>, vector<1x4x8x8xf32>
    %792 = vector.shape_cast %791 : vector<1x4x8x8xf32> to vector<4x8x8xf32>
    %793 = arith.mulf %740, %792 : vector<4x8x8xf32>
    %cst_1037 = arith.constant dense<0.000000e+00> : vector<8x8xf32>
    %794 = vector.multi_reduction <add>, %793, %cst_1037 [0] : vector<4x8x8xf32> to vector<8x8xf32>
    %c1_1038 = arith.constant 1 : index
    %c2_1039 = arith.constant 2 : index
    %c0_1040 = arith.constant 0 : index
    %c0_1041 = arith.constant 0 : index
    %795 = vector.load %arg11[%c1_1038, %c2_1039, %c0_1040, %c0_1041] : memref<3x3x8x8xf32, #tpu.memory_space<vmem>>, vector<1x1x8x8xf32>
    %796 = vector.shape_cast %795 : vector<1x1x8x8xf32> to vector<8x8xf32>
    %797 = arith.addf %796, %794 : vector<8x8xf32>
    %c1_1042 = arith.constant 1 : index
    %c2_1043 = arith.constant 2 : index
    %c0_1044 = arith.constant 0 : index
    %c0_1045 = arith.constant 0 : index
    %798 = vector.load %arg11[%c1_1042, %c2_1043, %c0_1044, %c0_1045] : memref<3x3x8x8xf32, #tpu.memory_space<vmem>>, vector<1x1x8x8xf32>
    %799 = vector.shape_cast %798 : vector<1x1x8x8xf32> to vector<8x8xf32>
    %800 = vector.shape_cast %797 : vector<8x8xf32> to vector<1x1x8x8xf32>
    tpu.vector_store %arg11[%c1_1042, %c2_1043, %c0_1044, %c0_1045], %800 {strides = array<i32>} : memref<3x3x8x8xf32, #tpu.memory_space<vmem>>, vector<1x1x8x8xf32>,
    %c0_1046 = arith.constant 0 : index
    %c0_1047 = arith.constant 0 : index
    %c3_1048 = arith.constant 3 : index
    %c1_1049 = arith.constant 1 : index
    %801 = vector.load %arg6[%c0_1046, %c0_1047, %c3_1048, %c1_1049] : memref<1x4x11x11xf32, #tpu.memory_space<vmem>>, vector<1x4x8x8xf32>
    %802 = vector.shape_cast %801 : vector<1x4x8x8xf32> to vector<4x8x8xf32>
    %803 = arith.mulf %740, %802 : vector<4x8x8xf32>
    %cst_1050 = arith.constant dense<0.000000e+00> : vector<8x8xf32>
    %804 = vector.multi_reduction <add>, %803, %cst_1050 [0] : vector<4x8x8xf32> to vector<8x8xf32>
    %c2_1051 = arith.constant 2 : index
    %c0_1052 = arith.constant 0 : index
    %c0_1053 = arith.constant 0 : index
    %c0_1054 = arith.constant 0 : index
    %805 = vector.load %arg11[%c2_1051, %c0_1052, %c0_1053, %c0_1054] : memref<3x3x8x8xf32, #tpu.memory_space<vmem>>, vector<1x1x8x8xf32>
    %806 = vector.shape_cast %805 : vector<1x1x8x8xf32> to vector<8x8xf32>
    %807 = arith.addf %806, %804 : vector<8x8xf32>
    %c2_1055 = arith.constant 2 : index
    %c0_1056 = arith.constant 0 : index
    %c0_1057 = arith.constant 0 : index
    %c0_1058 = arith.constant 0 : index
    %808 = vector.load %arg11[%c2_1055, %c0_1056, %c0_1057, %c0_1058] : memref<3x3x8x8xf32, #tpu.memory_space<vmem>>, vector<1x1x8x8xf32>
    %809 = vector.shape_cast %808 : vector<1x1x8x8xf32> to vector<8x8xf32>
    %810 = vector.shape_cast %807 : vector<8x8xf32> to vector<1x1x8x8xf32>
    tpu.vector_store %arg11[%c2_1055, %c0_1056, %c0_1057, %c0_1058], %810 {strides = array<i32>} : memref<3x3x8x8xf32, #tpu.memory_space<vmem>>, vector<1x1x8x8xf32>,
    %c0_1059 = arith.constant 0 : index
    %c0_1060 = arith.constant 0 : index
    %c3_1061 = arith.constant 3 : index
    %c2_1062 = arith.constant 2 : index
    %811 = vector.load %arg6[%c0_1059, %c0_1060, %c3_1061, %c2_1062] : memref<1x4x11x11xf32, #tpu.memory_space<vmem>>, vector<1x4x8x8xf32>
    %812 = vector.shape_cast %811 : vector<1x4x8x8xf32> to vector<4x8x8xf32>
    %813 = arith.mulf %740, %812 : vector<4x8x8xf32>
    %cst_1063 = arith.constant dense<0.000000e+00> : vector<8x8xf32>
    %814 = vector.multi_reduction <add>, %813, %cst_1063 [0] : vector<4x8x8xf32> to vector<8x8xf32>
    %c2_1064 = arith.constant 2 : index
    %c1_1065 = arith.constant 1 : index
    %c0_1066 = arith.constant 0 : index
    %c0_1067 = arith.constant 0 : index
    %815 = vector.load %arg11[%c2_1064, %c1_1065, %c0_1066, %c0_1067] : memref<3x3x8x8xf32, #tpu.memory_space<vmem>>, vector<1x1x8x8xf32>
    %816 = vector.shape_cast %815 : vector<1x1x8x8xf32> to vector<8x8xf32>
    %817 = arith.addf %816, %814 : vector<8x8xf32>
    %c2_1068 = arith.constant 2 : index
    %c1_1069 = arith.constant 1 : index
    %c0_1070 = arith.constant 0 : index
    %c0_1071 = arith.constant 0 : index
    %818 = vector.load %arg11[%c2_1068, %c1_1069, %c0_1070, %c0_1071] : memref<3x3x8x8xf32, #tpu.memory_space<vmem>>, vector<1x1x8x8xf32>
    %819 = vector.shape_cast %818 : vector<1x1x8x8xf32> to vector<8x8xf32>
    %820 = vector.shape_cast %817 : vector<8x8xf32> to vector<1x1x8x8xf32>
    tpu.vector_store %arg11[%c2_1068, %c1_1069, %c0_1070, %c0_1071], %820 {strides = array<i32>} : memref<3x3x8x8xf32, #tpu.memory_space<vmem>>, vector<1x1x8x8xf32>,
    %c0_1072 = arith.constant 0 : index
    %c0_1073 = arith.constant 0 : index
    %c3_1074 = arith.constant 3 : index
    %c3_1075 = arith.constant 3 : index
    %821 = vector.load %arg6[%c0_1072, %c0_1073, %c3_1074, %c3_1075] : memref<1x4x11x11xf32, #tpu.memory_space<vmem>>, vector<1x4x8x8xf32>
    %822 = vector.shape_cast %821 : vector<1x4x8x8xf32> to vector<4x8x8xf32>
    %823 = arith.mulf %740, %822 : vector<4x8x8xf32>
    %cst_1076 = arith.constant dense<0.000000e+00> : vector<8x8xf32>
    %824 = vector.multi_reduction <add>, %823, %cst_1076 [0] : vector<4x8x8xf32> to vector<8x8xf32>
    %c2_1077 = arith.constant 2 : index
    %c2_1078 = arith.constant 2 : index
    %c0_1079 = arith.constant 0 : index
    %c0_1080 = arith.constant 0 : index
    %825 = vector.load %arg11[%c2_1077, %c2_1078, %c0_1079, %c0_1080] : memref<3x3x8x8xf32, #tpu.memory_space<vmem>>, vector<1x1x8x8xf32>
    %826 = vector.shape_cast %825 : vector<1x1x8x8xf32> to vector<8x8xf32>
    %827 = arith.addf %826, %824 : vector<8x8xf32>
    %c2_1081 = arith.constant 2 : index
    %c2_1082 = arith.constant 2 : index
    %c0_1083 = arith.constant 0 : index
    %c0_1084 = arith.constant 0 : index
    %828 = vector.load %arg11[%c2_1081, %c2_1082, %c0_1083, %c0_1084] : memref<3x3x8x8xf32, #tpu.memory_space<vmem>>, vector<1x1x8x8xf32>
    %829 = vector.shape_cast %828 : vector<1x1x8x8xf32> to vector<8x8xf32>
    %830 = vector.shape_cast %827 : vector<8x8xf32> to vector<1x1x8x8xf32>
    tpu.vector_store %arg11[%c2_1081, %c2_1082, %c0_1083, %c0_1084], %830 {strides = array<i32>} : memref<3x3x8x8xf32, #tpu.memory_space<vmem>>, vector<1x1x8x8xf32>,
    %c0_i32_1085 = arith.constant 0 : i32
    %831 = arith.cmpi eq, %arg1, %c0_i32_1085 : i32
    %832 = arith.extui %831 : i1 to i32
    %c0_i32_1086 = arith.constant 0 : i32
    %833 = arith.cmpi ne, %832, %c0_i32_1086 : i32
    scf.if %833 {
      %c0_1087 = arith.constant 0 : index
      %c0_1088 = arith.constant 0 : index
      %c0_1089 = arith.constant 0 : index
      %c0_1090 = arith.constant 0 : index
      %834 = vector.load %arg11[%c0_1087, %c0_1088, %c0_1089, %c0_1090] : memref<3x3x8x8xf32, #tpu.memory_space<vmem>>, vector<3x3x8x8xf32>
      %c0_1091 = arith.constant 0 : index
      %c0_1092 = arith.constant 0 : index
      %c0_1093 = arith.constant 0 : index
      %c0_1094 = arith.constant 0 : index
      %c0_1095 = arith.constant 0 : index
      %835 = vector.load %arg10[%c0_1091, %c0_1092, %c0_1093, %c0_1094, %c0_1095] : memref<1x3x3x8x8xf32, #tpu.memory_space<vmem>>, vector<1x3x3x8x8xf32>
      %836 = vector.shape_cast %835 : vector<1x3x3x8x8xf32> to vector<3x3x8x8xf32>
      %837 = vector.shape_cast %834 : vector<3x3x8x8xf32> to vector<1x3x3x8x8xf32>
      tpu.vector_store %arg10[%c0_1091, %c0_1092, %c0_1093, %c0_1094, %c0_1095], %837 {strides = array<i32>} : memref<1x3x3x8x8xf32, #tpu.memory_space<vmem>>, vector<1x3x3x8x8xf32>,
    } else {
    }
    return
  }
  func.func @transform_0(%arg0: i32, %arg1: i32) -> (i32, i32, i32, i32) {
    %c0_i32 = arith.constant 0 : i32
    %c0_i32_0 = arith.constant 0 : i32
    %c0_i32_1 = arith.constant 0 : i32
    return %arg0, %arg1, %c0_i32, %c0_i32_0 : i32, i32, i32, i32
  }
  func.func @transform_1(%arg0: i32, %arg1: i32) -> (i32, i32, i32, i32) {
    %c0_i32 = arith.constant 0 : i32
    %c0_i32_0 = arith.constant 0 : i32
    %c0_i32_1 = arith.constant 0 : i32
    return %arg0, %arg1, %c0_i32, %c0_i32_0 : i32, i32, i32, i32
  }
  func.func @transform_2(%arg0: i32, %arg1: i32) -> (i32, i32, i32, i32) {
    %c0_i32 = arith.constant 0 : i32
    %c0_i32_0 = arith.constant 0 : i32
    %c0_i32_1 = arith.constant 0 : i32
    return %arg0, %arg1, %c0_i32, %c0_i32_0 : i32, i32, i32, i32
  }
  func.func @transform_3(%arg0: i32, %arg1: i32) -> (i32, i32, i32, i32) {
    %c0_i32 = arith.constant 0 : i32
    %c0_i32_0 = arith.constant 0 : i32
    %c0_i32_1 = arith.constant 0 : i32
    return %arg0, %arg1, %c0_i32, %c0_i32_0 : i32, i32, i32, i32
  }
  func.func @transform_4(%arg0: i32, %arg1: i32) -> (i32, i32, i32, i32) {
    %c0_i32 = arith.constant 0 : i32
    %c0_i32_0 = arith.constant 0 : i32
    %c0_i32_1 = arith.constant 0 : i32
    return %arg0, %arg1, %c0_i32, %c0_i32_0 : i32, i32, i32, i32
  }
  func.func @transform_5(%arg0: i32, %arg1: i32) -> (i32, i32, i32, i32) {
    %c0_i32 = arith.constant 0 : i32
    %c0_i32_0 = arith.constant 0 : i32
    %c0_i32_1 = arith.constant 0 : i32
    return %arg0, %arg1, %c0_i32, %c0_i32_0 : i32, i32, i32, i32
  }
  func.func @transform_6(%arg0: i32, %arg1: i32) -> (i32, i32, i32, i32) {
    %c0_i32 = arith.constant 0 : i32
    %c0_i32_0 = arith.constant 0 : i32
    %c0_i32_1 = arith.constant 0 : i32
    return %arg0, %arg1, %c0_i32, %c0_i32_0 : i32, i32, i32, i32
  }
  func.func @transform_7(%arg0: i32, %arg1: i32) -> (i32, i32, i32, i32) {
    %c0_i32 = arith.constant 0 : i32
    %c0_i32_0 = arith.constant 0 : i32
    %c0_i32_1 = arith.constant 0 : i32
    return %arg0, %arg1, %c0_i32, %c0_i32_0 : i32, i32, i32, i32
  }
  func.func @transform_8(%arg0: i32, %arg1: i32) -> (i32, i32, i32, i32, i32) {
    %c0_i32 = arith.constant 0 : i32
    %c0_i32_0 = arith.constant 0 : i32
    %c0_i32_1 = arith.constant 0 : i32
    %c0_i32_2 = arith.constant 0 : i32
    %c0_i32_3 = arith.constant 0 : i32
    return %arg0, %c0_i32, %c0_i32_0, %c0_i32_1, %c0_i32_2 : i32, i32, i32, i32, i32
  }
}

</mosaic_0001>

<llo_original>
// kernel: tpu_custom_call.1
$region0: #{tpu_custom_call.1}
  #allocation0 [shape = 'u32[]', space=smem, size = 0x4, offset = 0x4, fixed_abs, tag = 'smem constant byte address 0x4 - core index']
  #allocation1 [shape = 'u32[144,128]{1,0:T(1,128)}', space=vmem, size = 0x12000, scoped, tag = 'internal scratch']
  #allocation2 [shape = 'f32[3,3,8,8]{3,2,1,0:T(8,128)}', space=vmem, size = 0x9000, scoped, tag = 'scratch operand']
  %s0 = inlined_call_operand.vmem [shape: f32[2,4,9,9], index: 0, kind: input, shape index: {}]
  %s1 = inlined_call_operand.vmem [shape: f32[2,4,9,9], index: 1, kind: input, shape index: {}]
  %s2 = inlined_call_operand.vmem [shape: f32[2,4,9,9], index: 2, kind: input, shape index: {}]
  %s3 = inlined_call_operand.vmem [shape: f32[2,4,9,9], index: 3, kind: input, shape index: {}]
  %s4 = inlined_call_operand.vmem [shape: f32[2,4,11,11], index: 4, kind: input, shape index: {}]
  %s5 = inlined_call_operand.vmem [shape: f32[2,4,11,11], index: 5, kind: input, shape index: {}]
  %s6 = inlined_call_operand.vmem [shape: f32[2,4,11,11], index: 6, kind: input, shape index: {}]
  %s7 = inlined_call_operand.vmem [shape: f32[2,4,11,11], index: 7, kind: input, shape index: {}]
  %s8 = inlined_call_operand.hbm [shape: f32[2,3,3,8,8], index: 8, kind: output, shape index: {}]
  %s9 = sld [smem:[#allocation0]]
  $region73: #{tpu_custom_call.1} parent=0
    _
  %s11 = ssub.s32 1, %s9
  %s12 = scalar_select 0, %s11, %s9
  $region1: #{tpu_custom_call.1} parent=0
    #allocation3 [shape = 'u8[73728]{0}', space=vmem, size = 0x12000, scoped, tag = 'output window, operand 0']
    #allocation4 [shape = 's32[2]{0}', space=sflag, size = 0x8, scoped, tag = 'scoped memory for tpu_custom_call.1']
    %13 = vsyncpa [#allocation4], 0
    %s14 = scalar_lea.sflag [#allocation4], 1
    %15 = vsyncpa %s14, 0
    loop: start=0, step=1, limit=4
    $region2: #{tpu_custom_call.1} parent=1 // loop_pre_header
      _
    $region3: #{tpu_custom_call.1} parent=1 // loop_header
      %s17 = sphi 0, %s21
      %p18 = scmp.ge.s32.totalorder %s17, 4
      %s24 = sphi 0, %s36
      %s25 = sphi 0, %s32
      %s26 = sphi 0, %s24
      %s27 = sphi 0, %s25
      %s28 = sphi 0, %s26
      %s29 = sphi 0, %s27
      %s41 = sphi 0, %s43
      %s44 = sphi 0, %s41
      %s45 = sphi 0, %s44
      %s61 = sphi 0, %s45
      %s69 = sphi 0, %s71
      %s72 = sphi 0, %s69
      %s73 = sphi 0, %s72
      %s89 = sphi 0, %s73
      %s97 = sphi 0, %s99
      %s100 = sphi 0, %s97
      %s101 = sphi 0, %s100
      %s117 = sphi 0, %s101
      %s125 = sphi 0, %s127
      %s128 = sphi 0, %s125
      %s129 = sphi 0, %s128
      %s145 = sphi 0, %s129
      %s153 = sphi 0, %s155
      %s156 = sphi 0, %s153
      %s157 = sphi 0, %s156
      %s173 = sphi 0, %s157
      %s181 = sphi 0, %s183
      %s184 = sphi 0, %s181
      %s185 = sphi 0, %s184
      %s201 = sphi 0, %s185
      %s209 = sphi 0, %s211
      %s212 = sphi 0, %s209
      %s213 = sphi 0, %s212
      %s229 = sphi 0, %s213
      %s237 = sphi 0, %s239
      %s240 = sphi 0, %s237
      %s241 = sphi 0, %s240
      %s257 = sphi 0, %s241
      %s263 = sphi 0, %s265
      %s266 = sphi 0, %s263
      %s267 = sphi 0, %s266
      %s283 = sphi 0, %s267
    $region4: #{tpu_custom_call.1} parent=1 // loop_header_branch
      %20 = sbr.rel (%p18) target = $region8
    $region5: #{tpu_custom_call.1} parent=1 // loop_body
      %s22 = ssub.s32 %s17, 1
      %s23 = ssub.s32 %s17, 2
      %s30 = sadd.s32 1, %s25
      %p31 = scmp.ge.s32.totalorder %s30, 1
      %s32 = scalar_select %p31, 0, %s30
      %s33 = sadd.s32 1, %s24
      %s34 = scalar_select %p31, %s33, %s24
      %p35 = scmp.ge.s32.totalorder %s34, 2
      %s36 = scalar_select %p35, 0, %s34
      %s37 = ssub.s32 %s24, %s36
      %s38 = ssub.s32 %s25, %s32
      %s39 = sor.u32 %s37, %s38
      %p40 = scmp.eq.s32.totalorder %s39, 0
      %s42 = sadd.s32 %s41, 1
      %s43 = scalar_select %p40, %s41, %s42
      %p46 = pneg %p40
      %p47 = scmp.eq.s32.totalorder %s17, 1
      %p48 = por %p46, %p47
      %p49 = scmp.ne.s32.totalorder %s41, %s44
      %p50 = scmp.eq.s32.totalorder %s17, 0
      %p51 = por %p49, %p50
      %p52 = scmp.ne.s32.totalorder %s41, %s44
      %p53 = scmp.eq.s32.totalorder %s22, 1
      %p54 = por %p52, %p53
      %p55 = scmp.ne.s32.totalorder %s44, %s45
      %p56 = scmp.eq.s32.totalorder %s22, 0
      %p57 = por %p55, %p56
      %p58 = scmp.ne.s32.totalorder %s44, %s45
      %p59 = scmp.eq.s32.totalorder %s23, 1
      %p60 = por %p58, %p59
      %p62 = scmp.ne.s32.totalorder %s45, %s61
      %p63 = scmp.eq.s32.totalorder %s23, 0
      %p64 = por %p62, %p63
      %s65 = ssub.s32 %s24, %s36
      %s66 = ssub.s32 %s25, %s32
      %s67 = sor.u32 %s65, %s66
      %p68 = scmp.eq.s32.totalorder %s67, 0
      %s70 = sadd.s32 %s69, 1
      %s71 = scalar_select %p68, %s69, %s70
      %p74 = pneg %p68
      %p75 = scmp.eq.s32.totalorder %s17, 1
      %p76 = por %p74, %p75
      %p77 = scmp.ne.s32.totalorder %s69, %s72
      %p78 = scmp.eq.s32.totalorder %s17, 0
      %p79 = por %p77, %p78
      %p80 = scmp.ne.s32.totalorder %s69, %s72
      %p81 = scmp.eq.s32.totalorder %s22, 1
      %p82 = por %p80, %p81
      %p83 = scmp.ne.s32.totalorder %s72, %s73
      %p84 = scmp.eq.s32.totalorder %s22, 0
      %p85 = por %p83, %p84
      %p86 = scmp.ne.s32.totalorder %s72, %s73
      %p87 = scmp.eq.s32.totalorder %s23, 1
      %p88 = por %p86, %p87
      %p90 = scmp.ne.s32.totalorder %s73, %s89
      %p91 = scmp.eq.s32.totalorder %s23, 0
      %p92 = por %p90, %p91
      %s93 = ssub.s32 %s24, %s36
      %s94 = ssub.s32 %s25, %s32
      %s95 = sor.u32 %s93, %s94
      %p96 = scmp.eq.s32.totalorder %s95, 0
      %s98 = sadd.s32 %s97, 1
      %s99 = scalar_select %p96, %s97, %s98
      %p102 = pneg %p96
      %p103 = scmp.eq.s32.totalorder %s17, 1
      %p104 = por %p102, %p103
      %p105 = scmp.ne.s32.totalorder %s97, %s100
      %p106 = scmp.eq.s32.totalorder %s17, 0
      %p107 = por %p105, %p106
      %p108 = scmp.ne.s32.totalorder %s97, %s100
      %p109 = scmp.eq.s32.totalorder %s22, 1
      %p110 = por %p108, %p109
      %p111 = scmp.ne.s32.totalorder %s100, %s101
      %p112 = scmp.eq.s32.totalorder %s22, 0
      %p113 = por %p111, %p112
      %p114 = scmp.ne.s32.totalorder %s100, %s101
      %p115 = scmp.eq.s32.totalorder %s23, 1
      %p116 = por %p114, %p115
      %p118 = scmp.ne.s32.totalorder %s101, %s117
      %p119 = scmp.eq.s32.totalorder %s23, 0
      %p120 = por %p118, %p119
      %s121 = ssub.s32 %s24, %s36
      %s122 = ssub.s32 %s25, %s32
      %s123 = sor.u32 %s121, %s122
      %p124 = scmp.eq.s32.totalorder %s123, 0
      %s126 = sadd.s32 %s125, 1
      %s127 = scalar_select %p124, %s125, %s126
      %p130 = pneg %p124
      %p131 = scmp.eq.s32.totalorder %s17, 1
      %p132 = por %p130, %p131
      %p133 = scmp.ne.s32.totalorder %s125, %s128
      %p134 = scmp.eq.s32.totalorder %s17, 0
      %p135 = por %p133, %p134
      %p136 = scmp.ne.s32.totalorder %s125, %s128
      %p137 = scmp.eq.s32.totalorder %s22, 1
      %p138 = por %p136, %p137
      %p139 = scmp.ne.s32.totalorder %s128, %s129
      %p140 = scmp.eq.s32.totalorder %s22, 0
      %p141 = por %p139, %p140
      %p142 = scmp.ne.s32.totalorder %s128, %s129
      %p143 = scmp.eq.s32.totalorder %s23, 1
      %p144 = por %p142, %p143
      %p146 = scmp.ne.s32.totalorder %s129, %s145
      %p147 = scmp.eq.s32.totalorder %s23, 0
      %p148 = por %p146, %p147
      %s149 = ssub.s32 %s24, %s36
      %s150 = ssub.s32 %s25, %s32
      %s151 = sor.u32 %s149, %s150
      %p152 = scmp.eq.s32.totalorder %s151, 0
      %s154 = sadd.s32 %s153, 1
      %s155 = scalar_select %p152, %s153, %s154
      %p158 = pneg %p152
      %p159 = scmp.eq.s32.totalorder %s17, 1
      %p160 = por %p158, %p159
      %p161 = scmp.ne.s32.totalorder %s153, %s156
      %p162 = scmp.eq.s32.totalorder %s17, 0
      %p163 = por %p161, %p162
      %p164 = scmp.ne.s32.totalorder %s153, %s156
      %p165 = scmp.eq.s32.totalorder %s22, 1
      %p166 = por %p164, %p165
      %p167 = scmp.ne.s32.totalorder %s156, %s157
      %p168 = scmp.eq.s32.totalorder %s22, 0
      %p169 = por %p167, %p168
      %p170 = scmp.ne.s32.totalorder %s156, %s157
      %p171 = scmp.eq.s32.totalorder %s23, 1
      %p172 = por %p170, %p171
      %p174 = scmp.ne.s32.totalorder %s157, %s173
      %p175 = scmp.eq.s32.totalorder %s23, 0
      %p176 = por %p174, %p175
      %s177 = ssub.s32 %s24, %s36
      %s178 = ssub.s32 %s25, %s32
      %s179 = sor.u32 %s177, %s178
      %p180 = scmp.eq.s32.totalorder %s179, 0
      %s182 = sadd.s32 %s181, 1
      %s183 = scalar_select %p180, %s181, %s182
      %p186 = pneg %p180
      %p187 = scmp.eq.s32.totalorder %s17, 1
      %p188 = por %p186, %p187
      %p189 = scmp.ne.s32.totalorder %s181, %s184
      %p190 = scmp.eq.s32.totalorder %s17, 0
      %p191 = por %p189, %p190
      %p192 = scmp.ne.s32.totalorder %s181, %s184
      %p193 = scmp.eq.s32.totalorder %s22, 1
      %p194 = por %p192, %p193
      %p195 = scmp.ne.s32.totalorder %s184, %s185
      %p196 = scmp.eq.s32.totalorder %s22, 0
      %p197 = por %p195, %p196
      %p198 = scmp.ne.s32.totalorder %s184, %s185
      %p199 = scmp.eq.s32.totalorder %s23, 1
      %p200 = por %p198, %p199
      %p202 = scmp.ne.s32.totalorder %s185, %s201
      %p203 = scmp.eq.s32.totalorder %s23, 0
      %p204 = por %p202, %p203
      %s205 = ssub.s32 %s24, %s36
      %s206 = ssub.s32 %s25, %s32
      %s207 = sor.u32 %s205, %s206
      %p208 = scmp.eq.s32.totalorder %s207, 0
      %s210 = sadd.s32 %s209, 1
      %s211 = scalar_select %p208, %s209, %s210
      %p214 = pneg %p208
      %p215 = scmp.eq.s32.totalorder %s17, 1
      %p216 = por %p214, %p215
      %p217 = scmp.ne.s32.totalorder %s209, %s212
      %p218 = scmp.eq.s32.totalorder %s17, 0
      %p219 = por %p217, %p218
      %p220 = scmp.ne.s32.totalorder %s209, %s212
      %p221 = scmp.eq.s32.totalorder %s22, 1
      %p222 = por %p220, %p221
      %p223 = scmp.ne.s32.totalorder %s212, %s213
      %p224 = scmp.eq.s32.totalorder %s22, 0
      %p225 = por %p223, %p224
      %p226 = scmp.ne.s32.totalorder %s212, %s213
      %p227 = scmp.eq.s32.totalorder %s23, 1
      %p228 = por %p226, %p227
      %p230 = scmp.ne.s32.totalorder %s213, %s229
      %p231 = scmp.eq.s32.totalorder %s23, 0
      %p232 = por %p230, %p231
      %s233 = ssub.s32 %s24, %s36
      %s234 = ssub.s32 %s25, %s32
      %s235 = sor.u32 %s233, %s234
      %p236 = scmp.eq.s32.totalorder %s235, 0
      %s238 = sadd.s32 %s237, 1
      %s239 = scalar_select %p236, %s237, %s238
      %p242 = pneg %p236
      %p243 = scmp.eq.s32.totalorder %s17, 1
      %p244 = por %p242, %p243
      %p245 = scmp.ne.s32.totalorder %s237, %s240
      %p246 = scmp.eq.s32.totalorder %s17, 0
      %p247 = por %p245, %p246
      %p248 = scmp.ne.s32.totalorder %s237, %s240
      %p249 = scmp.eq.s32.totalorder %s22, 1
      %p250 = por %p248, %p249
      %p251 = scmp.ne.s32.totalorder %s240, %s241
      %p252 = scmp.eq.s32.totalorder %s22, 0
      %p253 = por %p251, %p252
      %p254 = scmp.ne.s32.totalorder %s240, %s241
      %p255 = scmp.eq.s32.totalorder %s23, 1
      %p256 = por %p254, %p255
      %p258 = scmp.ne.s32.totalorder %s241, %s257
      %p259 = scmp.eq.s32.totalorder %s23, 0
      %p260 = por %p258, %p259
      %s261 = ssub.s32 %s24, %s36
      %p262 = scmp.eq.s32.totalorder %s261, 0
      %s264 = sadd.s32 %s263, 1
      %s265 = scalar_select %p262, %s263, %s264
      %p268 = pneg %p262
      %p269 = scmp.eq.s32.totalorder %s17, 1
      %p270 = por %p268, %p269
      %p271 = scmp.ne.s32.totalorder %s263, %s266
      %p272 = scmp.eq.s32.totalorder %s17, 0
      %p273 = por %p271, %p272
      %p274 = scmp.ne.s32.totalorder %s263, %s266
      %p275 = scmp.eq.s32.totalorder %s22, 1
      %p276 = por %p274, %p275
      %p277 = scmp.ne.s32.totalorder %s266, %s267
      %p278 = scmp.eq.s32.totalorder %s22, 0
      %p279 = por %p277, %p278
      %p280 = scmp.ne.s32.totalorder %s266, %s267
      %p281 = scmp.eq.s32.totalorder %s23, 1
      %p282 = por %p280, %p281
      %p284 = scmp.ne.s32.totalorder %s267, %s283
      %p285 = scmp.eq.s32.totalorder %s23, 0
      %p286 = por %p284, %p285
      %p287 = scmp.le.s32.totalorder 1, %s17
      %p288 = scmp.lt.s32.totalorder %s17, 3
      %p289 = pnand %p287, %p288
      %p290 = pneg %p289
      // Predicated region
      $region9: #{tpu_custom_call.1} parent=5 // pred_check
        _
      $region10: #{tpu_custom_call.1} parent=5 // pred_check_branch
        %292 = sbr.rel (%p289) target = $region12
      $region11: #{tpu_custom_call.1} parent=5 // pred_region
        %s293 = ssub.s32 %s17, 1
      $region12: #{tpu_custom_call.1} parent=5 // pred_fallthru
        _
      %p294 = scmp.lt.s32.totalorder %s17, 2
      // Predicated region
      $region13: #{tpu_custom_call.1} parent=5 // pred_check
        %p295 = pneg %p294
      $region14: #{tpu_custom_call.1} parent=5 // pred_check_branch
        %297 = sbr.rel (%p295) target = $region16
      $region15: #{tpu_custom_call.1} parent=5 // pred_region
        // Predicated region
        $region17: #{tpu_custom_call.1} parent=15 // pred_check
          %p298 = pneg %p51
        $region18: #{tpu_custom_call.1} parent=15 // pred_check_branch
          %300 = sbr.rel (%p298) target = $region20
        $region19: #{tpu_custom_call.1} parent=15 // pred_region
          %s301 = smul.u32 4, %s25
          %p302 = scmp.lt.s32.totalorder %s24, 1
          %s303 = scalar_select %p302, %s24, 1
          %p304 = scmp.lt.s32.totalorder %s301, 3
          %s305 = scalar_select %p304, %s301, 3
          %s306 = smul.addr %s305, 2
          %s307 = smul.addr %s303, 8
          %s308 = sadd.s32 %s306, %s307
          %s309 = smul.addr %s308, 8
          %s310 = scalar_lea.vmem %s0, %s309
          %s311 = smul.u32 4, %s25
        $region20: #{tpu_custom_call.1} parent=15 // pred_fallthru
          _
        // Predicated region
        $region21: #{tpu_custom_call.1} parent=15 // pred_check
          %p312 = pneg %p79
        $region22: #{tpu_custom_call.1} parent=15 // pred_check_branch
          %314 = sbr.rel (%p312) target = $region24
        $region23: #{tpu_custom_call.1} parent=15 // pred_region
          %s315 = smul.u32 4, %s25
          %p316 = scmp.lt.s32.totalorder %s24, 1
          %s317 = scalar_select %p316, %s24, 1
          %p318 = scmp.lt.s32.totalorder %s315, 3
          %s319 = scalar_select %p318, %s315, 3
          %s320 = smul.addr %s319, 2
          %s321 = smul.addr %s317, 8
          %s322 = sadd.s32 %s320, %s321
          %s323 = smul.addr %s322, 8
          %s324 = scalar_lea.vmem %s1, %s323
          %s325 = smul.u32 4, %s25
        $region24: #{tpu_custom_call.1} parent=15 // pred_fallthru
          _
        // Predicated region
        $region25: #{tpu_custom_call.1} parent=15 // pred_check
          %p326 = pneg %p107
        $region26: #{tpu_custom_call.1} parent=15 // pred_check_branch
          %328 = sbr.rel (%p326) target = $region28
        $region27: #{tpu_custom_call.1} parent=15 // pred_region
          %s329 = smul.u32 4, %s25
          %p330 = scmp.lt.s32.totalorder %s24, 1
          %s331 = scalar_select %p330, %s24, 1
          %p332 = scmp.lt.s32.totalorder %s329, 3
          %s333 = scalar_select %p332, %s329, 3
          %s334 = smul.addr %s333, 2
          %s335 = smul.addr %s331, 8
          %s336 = sadd.s32 %s334, %s335
          %s337 = smul.addr %s336, 8
          %s338 = scalar_lea.vmem %s2, %s337
          %s339 = smul.u32 4, %s25
        $region28: #{tpu_custom_call.1} parent=15 // pred_fallthru
          _
        // Predicated region
        $region29: #{tpu_custom_call.1} parent=15 // pred_check
          %p340 = pneg %p135
        $region30: #{tpu_custom_call.1} parent=15 // pred_check_branch
          %342 = sbr.rel (%p340) target = $region32
        $region31: #{tpu_custom_call.1} parent=15 // pred_region
          %s343 = smul.u32 4, %s25
          %p344 = scmp.lt.s32.totalorder %s24, 1
          %s345 = scalar_select %p344, %s24, 1
          %p346 = scmp.lt.s32.totalorder %s343, 3
          %s347 = scalar_select %p346, %s343, 3
          %s348 = smul.addr %s347, 2
          %s349 = smul.addr %s345, 8
          %s350 = sadd.s32 %s348, %s349
          %s351 = smul.addr %s350, 8
          %s352 = scalar_lea.vmem %s3, %s351
          %s353 = smul.u32 4, %s25
        $region32: #{tpu_custom_call.1} parent=15 // pred_fallthru
          _
        // Predicated region
        $region33: #{tpu_custom_call.1} parent=15 // pred_check
          %p354 = pneg %p163
        $region34: #{tpu_custom_call.1} parent=15 // pred_check_branch
          %356 = sbr.rel (%p354) target = $region36
        $region35: #{tpu_custom_call.1} parent=15 // pred_region
          %s357 = smul.u32 4, %s25
          %p358 = scmp.lt.s32.totalorder %s24, 1
          %s359 = scalar_select %p358, %s24, 1
          %p360 = scmp.lt.s32.totalorder %s357, 3
          %s361 = scalar_select %p360, %s357, 3
          %s362 = smul.addr %s361, 2
          %s363 = smul.addr %s359, 8
          %s364 = sadd.s32 %s362, %s363
          %s365 = smul.addr %s364, 8
          %s366 = scalar_lea.vmem %s4, %s365
          %s367 = smul.u32 4, %s25
        $region36: #{tpu_custom_call.1} parent=15 // pred_fallthru
          _
        // Predicated region
        $region37: #{tpu_custom_call.1} parent=15 // pred_check
          %p368 = pneg %p191
        $region38: #{tpu_custom_call.1} parent=15 // pred_check_branch
          %370 = sbr.rel (%p368) target = $region40
        $region39: #{tpu_custom_call.1} parent=15 // pred_region
          %s371 = smul.u32 4, %s25
          %p372 = scmp.lt.s32.totalorder %s24, 1
          %s373 = scalar_select %p372, %s24, 1
          %p374 = scmp.lt.s32.totalorder %s371, 3
          %s375 = scalar_select %p374, %s371, 3
          %s376 = smul.addr %s375, 2
          %s377 = smul.addr %s373, 8
          %s378 = sadd.s32 %s376, %s377
          %s379 = smul.addr %s378, 8
          %s380 = scalar_lea.vmem %s5, %s379
          %s381 = smul.u32 4, %s25
        $region40: #{tpu_custom_call.1} parent=15 // pred_fallthru
          _
        // Predicated region
        $region41: #{tpu_custom_call.1} parent=15 // pred_check
          %p382 = pneg %p219
        $region42: #{tpu_custom_call.1} parent=15 // pred_check_branch
          %384 = sbr.rel (%p382) target = $region44
        $region43: #{tpu_custom_call.1} parent=15 // pred_region
          %s385 = smul.u32 4, %s25
          %p386 = scmp.lt.s32.totalorder %s24, 1
          %s387 = scalar_select %p386, %s24, 1
          %p388 = scmp.lt.s32.totalorder %s385, 3
          %s389 = scalar_select %p388, %s385, 3
          %s390 = smul.addr %s389, 2
          %s391 = smul.addr %s387, 8
          %s392 = sadd.s32 %s390, %s391
          %s393 = smul.addr %s392, 8
          %s394 = scalar_lea.vmem %s6, %s393
          %s395 = smul.u32 4, %s25
        $region44: #{tpu_custom_call.1} parent=15 // pred_fallthru
          _
        // Predicated region
        $region45: #{tpu_custom_call.1} parent=15 // pred_check
          %p396 = pneg %p247
        $region46: #{tpu_custom_call.1} parent=15 // pred_check_branch
          %398 = sbr.rel (%p396) target = $region48
        $region47: #{tpu_custom_call.1} parent=15 // pred_region
          %s399 = smul.u32 4, %s25
          %p400 = scmp.lt.s32.totalorder %s24, 1
          %s401 = scalar_select %p400, %s24, 1
          %p402 = scmp.lt.s32.totalorder %s399, 3
          %s403 = scalar_select %p402, %s399, 3
          %s404 = smul.addr %s403, 2
          %s405 = smul.addr %s401, 8
          %s406 = sadd.s32 %s404, %s405
          %s407 = smul.addr %s406, 8
          %s408 = scalar_lea.vmem %s7, %s407
          %s409 = smul.u32 4, %s25
        $region48: #{tpu_custom_call.1} parent=15 // pred_fallthru
          _
      $region16: #{tpu_custom_call.1} parent=5 // pred_fallthru
        _
      %p410 = scmp.le.s32.totalorder 1, %s17
      %p411 = scmp.lt.s32.totalorder %s17, 3
      %p412 = pnand %p410, %p411
      %p413 = pneg %p412
      // Predicated region
      $region49: #{tpu_custom_call.1} parent=5 // pred_check
        _
      $region50: #{tpu_custom_call.1} parent=5 // pred_check_branch
        %415 = sbr.rel (%p412) target = $region52
      $region51: #{tpu_custom_call.1} parent=5 // pred_region
        %s416 = ssub.s32 %s17, 1
        %s417 = smul.u32 4, %s27
        %p418 = scmp.lt.s32.totalorder %s26, 1
        %s419 = scalar_select %p418, %s26, 1
        %p420 = scmp.lt.s32.totalorder %s417, 3
        %s421 = scalar_select %p420, %s417, 3
        %s422 = smul.addr %s421, 2
        %s423 = smul.addr %s419, 8
        %s424 = sadd.s32 %s422, %s423
        %s425 = smul.addr %s424, 8
        %s426 = scalar_lea.vmem %s0, %s425
        %p427 = pneg %p57
        %p428 = pneg %p54
        %s429 = smul.u32 4, %s27
        %p430 = scmp.lt.s32.totalorder %s26, 1
        %s431 = scalar_select %p430, %s26, 1
        %p432 = scmp.lt.s32.totalorder %s429, 3
        %s433 = scalar_select %p432, %s429, 3
        %s434 = smul.addr %s433, 2
        %s435 = smul.addr %s431, 8
        %s436 = sadd.s32 %s434, %s435
        %s437 = smul.addr %s436, 8
        %s438 = scalar_lea.vmem %s1, %s437
        %p439 = pneg %p85
        %p440 = pneg %p82
        %s441 = smul.u32 4, %s27
        %p442 = scmp.lt.s32.totalorder %s26, 1
        %s443 = scalar_select %p442, %s26, 1
        %p444 = scmp.lt.s32.totalorder %s441, 3
        %s445 = scalar_select %p444, %s441, 3
        %s446 = smul.addr %s445, 2
        %s447 = smul.addr %s443, 8
        %s448 = sadd.s32 %s446, %s447
        %s449 = smul.addr %s448, 8
        %s450 = scalar_lea.vmem %s2, %s449
        %p451 = pneg %p113
        %p452 = pneg %p110
        %s453 = smul.u32 4, %s27
        %p454 = scmp.lt.s32.totalorder %s26, 1
        %s455 = scalar_select %p454, %s26, 1
        %p456 = scmp.lt.s32.totalorder %s453, 3
        %s457 = scalar_select %p456, %s453, 3
        %s458 = smul.addr %s457, 2
        %s459 = smul.addr %s455, 8
        %s460 = sadd.s32 %s458, %s459
        %s461 = smul.addr %s460, 8
        %s462 = scalar_lea.vmem %s3, %s461
        %p463 = pneg %p141
        %p464 = pneg %p138
        %s465 = smul.u32 4, %s27
        %p466 = scmp.lt.s32.totalorder %s26, 1
        %s467 = scalar_select %p466, %s26, 1
        %p468 = scmp.lt.s32.totalorder %s465, 3
        %s469 = scalar_select %p468, %s465, 3
        %s470 = smul.addr %s469, 2
        %s471 = smul.addr %s467, 8
        %s472 = sadd.s32 %s470, %s471
        %s473 = smul.addr %s472, 8
        %s474 = scalar_lea.vmem %s4, %s473
        %p475 = pneg %p169
        %p476 = pneg %p166
        %s477 = smul.u32 4, %s27
        %p478 = scmp.lt.s32.totalorder %s26, 1
        %s479 = scalar_select %p478, %s26, 1
        %p480 = scmp.lt.s32.totalorder %s477, 3
        %s481 = scalar_select %p480, %s477, 3
        %s482 = smul.addr %s481, 2
        %s483 = smul.addr %s479, 8
        %s484 = sadd.s32 %s482, %s483
        %s485 = smul.addr %s484, 8
        %s486 = scalar_lea.vmem %s5, %s485
        %p487 = pneg %p197
        %p488 = pneg %p194
        %s489 = smul.u32 4, %s27
        %p490 = scmp.lt.s32.totalorder %s26, 1
        %s491 = scalar_select %p490, %s26, 1
        %p492 = scmp.lt.s32.totalorder %s489, 3
        %s493 = scalar_select %p492, %s489, 3
        %s494 = smul.addr %s493, 2
        %s495 = smul.addr %s491, 8
        %s496 = sadd.s32 %s494, %s495
        %s497 = smul.addr %s496, 8
        %s498 = scalar_lea.vmem %s6, %s497
        %p499 = pneg %p225
        %p500 = pneg %p222
        %s501 = smul.u32 4, %s27
        %p502 = scmp.lt.s32.totalorder %s26, 1
        %s503 = scalar_select %p502, %s26, 1
        %p504 = scmp.lt.s32.totalorder %s501, 3
        %s505 = scalar_select %p504, %s501, 3
        %s506 = smul.addr %s505, 2
        %s507 = smul.addr %s503, 8
        %s508 = sadd.s32 %s506, %s507
        %s509 = smul.addr %s508, 8
        %s510 = scalar_lea.vmem %s7, %s509
        %p511 = pneg %p253
        %p512 = pneg %p250
        %p513 = pneg %p279
        %p514 = pneg %p276
        %s515 = sand.u32 %s266, 1
        %s516 = scalar_lea.sflag [#allocation4], %s515
        %s517 = sand.u32 %s266, 1
        %s518 = smul.addr %s517, 72
        %s519 = scalar_lea.vmem [#allocation3], %s518
        %s520 = smul.u32 4, %s27
        %p521 = scmp.lt.s32.totalorder %s26, 1
        %s522 = scalar_select %p521, %s26, 1
        %p523 = scmp.lt.s32.totalorder %s520, 3
        %s524 = scalar_select %p523, %s520, 3
        %s525 = smul.addr %s524, 2
        %s526 = smul.addr %s522, 8
        %s527 = sadd.s32 %s525, %s526
        %s528 = smul.addr %s527, 8
        %s529 = scalar_lea.vmem %s0, %s528
        %s530 = smul.u32 4, %s27
        %s531 = smul.u32 4, %s27
        %p532 = scmp.lt.s32.totalorder %s26, 1
        %s533 = scalar_select %p532, %s26, 1
        %p534 = scmp.lt.s32.totalorder %s531, 3
        %s535 = scalar_select %p534, %s531, 3
        %s536 = smul.addr %s535, 2
        %s537 = smul.addr %s533, 8
        %s538 = sadd.s32 %s536, %s537
        %s539 = smul.addr %s538, 8
        %s540 = scalar_lea.vmem %s1, %s539
        %s541 = smul.u32 4, %s27
        %s542 = smul.u32 4, %s27
        %p543 = scmp.lt.s32.totalorder %s26, 1
        %s544 = scalar_select %p543, %s26, 1
        %p545 = scmp.lt.s32.totalorder %s542, 3
        %s546 = scalar_select %p545, %s542, 3
        %s547 = smul.addr %s546, 2
        %s548 = smul.addr %s544, 8
        %s549 = sadd.s32 %s547, %s548
        %s550 = smul.addr %s549, 8
        %s551 = scalar_lea.vmem %s2, %s550
        %s552 = smul.u32 4, %s27
        %s553 = smul.u32 4, %s27
        %p554 = scmp.lt.s32.totalorder %s26, 1
        %s555 = scalar_select %p554, %s26, 1
        %p556 = scmp.lt.s32.totalorder %s553, 3
        %s557 = scalar_select %p556, %s553, 3
        %s558 = smul.addr %s557, 2
        %s559 = smul.addr %s555, 8
        %s560 = sadd.s32 %s558, %s559
        %s561 = smul.addr %s560, 8
        %s562 = scalar_lea.vmem %s3, %s561
        %s563 = smul.u32 4, %s27
        %s564 = smul.u32 4, %s27
        %p565 = scmp.lt.s32.totalorder %s26, 1
        %s566 = scalar_select %p565, %s26, 1
        %p567 = scmp.lt.s32.totalorder %s564, 3
        %s568 = scalar_select %p567, %s564, 3
        %s569 = smul.addr %s568, 2
        %s570 = smul.addr %s566, 8
        %s571 = sadd.s32 %s569, %s570
        %s572 = smul.addr %s571, 8
        %s573 = scalar_lea.vmem %s4, %s572
        %s574 = smul.u32 4, %s27
        %s575 = smul.u32 4, %s27
        %p576 = scmp.lt.s32.totalorder %s26, 1
        %s577 = scalar_select %p576, %s26, 1
        %p578 = scmp.lt.s32.totalorder %s575, 3
        %s579 = scalar_select %p578, %s575, 3
        %s580 = smul.addr %s579, 2
        %s581 = smul.addr %s577, 8
        %s582 = sadd.s32 %s580, %s581
        %s583 = smul.addr %s582, 8
        %s584 = scalar_lea.vmem %s5, %s583
        %s585 = smul.u32 4, %s27
        %s586 = smul.u32 4, %s27
        %p587 = scmp.lt.s32.totalorder %s26, 1
        %s588 = scalar_select %p587, %s26, 1
        %p589 = scmp.lt.s32.totalorder %s586, 3
        %s590 = scalar_select %p589, %s586, 3
        %s591 = smul.addr %s590, 2
        %s592 = smul.addr %s588, 8
        %s593 = sadd.s32 %s591, %s592
        %s594 = smul.addr %s593, 8
        %s595 = scalar_lea.vmem %s6, %s594
        %s596 = smul.u32 4, %s27
        %s597 = smul.u32 4, %s27
        %p598 = scmp.lt.s32.totalorder %s26, 1
        %s599 = scalar_select %p598, %s26, 1
        %p600 = scmp.lt.s32.totalorder %s597, 3
        %s601 = scalar_select %p600, %s597, 3
        %s602 = smul.addr %s601, 2
        %s603 = smul.addr %s599, 8
        %s604 = sadd.s32 %s602, %s603
        %s605 = smul.addr %s604, 8
        %s606 = scalar_lea.vmem %s7, %s605
        %s607 = smul.u32 4, %s27
        %p608 = scmp.eq.s32.totalorder %s27, 0
        // Predicated region
        $region53: #{tpu_custom_call.1} parent=51 // pred_check
          %p609 = pneg %p608
        $region54: #{tpu_custom_call.1} parent=51 // pred_check_branch
          %611 = sbr.rel (%p609) target = $region56
        $region55: #{tpu_custom_call.1} parent=51 // pred_region
          %vm612 = vcmask 64512
          %613 = vst.msk [vmem:[#allocation2] sm:$0xff] %vm612, 0.0
          %614 = vst.msk [vmem:[#allocation2 + $0x8] sm:$0xff] %vm612, 0.0
          %615 = vst.msk [vmem:[#allocation2 + $0x10] sm:$0xff] %vm612, 0.0
          %616 = vst.msk [vmem:[#allocation2 + $0x18] sm:$0xff] %vm612, 0.0
          %617 = vst.msk [vmem:[#allocation2 + $0x20] sm:$0xff] %vm612, 0.0
          %618 = vst.msk [vmem:[#allocation2 + $0x28] sm:$0xff] %vm612, 0.0
          %619 = vst.msk [vmem:[#allocation2 + $0x30] sm:$0xff] %vm612, 0.0
          %620 = vst.msk [vmem:[#allocation2 + $0x38] sm:$0xff] %vm612, 0.0
          %621 = vst.msk [vmem:[#allocation2 + $0x40] sm:$0xff] %vm612, 0.0
        $region56: #{tpu_custom_call.1} parent=51 // pred_fallthru
          _
        %v622 = vld [vmem:[%s529] sm:$0xff]
        %v623 = vld [vmem:[%s529 + $0x10] sm:$0xff]
        %v624 = vld [vmem:[%s529 + $0x20] sm:$0xff]
        %v625 = vld [vmem:[%s529 + $0x30] sm:$0xff]
        %v626 = vld [vmem:[%s573] sm:$0xff]
        %v627 = vld [vmem:[%s573 + $0x10] sm:$0xff]
        %v628 = vld [vmem:[%s573 + $0x20] sm:$0xff]
        %v629 = vld [vmem:[%s573 + $0x30] sm:$0xff]
        %v630 = vmul.f32 %v622, %v626
        %v631 = vmul.f32 %v623, %v627
        %v632 = vmul.f32 %v624, %v628
        %v633 = vmul.f32 %v625, %v629
        %vm634 = vcmask 64512
        %v635 = vsel %vm634, %v630, 0.0
        %v636 = vsel %vm634, %v631, 0.0
        %v637 = vadd.f32 %v635, %v636
        %v638 = vsel %vm634, %v632, 0.0
        %v639 = vadd.f32 %v637, %v638
        %v640 = vsel %vm634, %v633, 0.0
        %v641 = vadd.f32 %v639, %v640
        %v642 = vld [vmem:[#allocation2] sm:$0xff]
        %v643 = vadd.f32 %v642, %v641
        %644 = vst.msk [vmem:[#allocation2] sm:$0xff] %vm634, %v643
        %v645 = vld [vmem:[%s573] sm:$0xff]
        %v646 = vld [vmem:[%s573 + $0x10] sm:$0xff]
        %v647 = vld [vmem:[%s573 + $0x20] sm:$0xff]
        %v648 = vld [vmem:[%s573 + $0x30] sm:$0xff]
        %653 = vrot.lane.b32.xlu0 %v645, 127
        %v654 = vpop.permute.xlu0 %653
        %655 = vrot.lane.b32.xlu0 %v646, 127
        %v656 = vpop.permute.xlu0 %655
        %657 = vrot.lane.b32.xlu0 %v647, 127
        %v658 = vpop.permute.xlu0 %657
        %659 = vrot.lane.b32.xlu0 %v648, 127
        %v660 = vpop.permute.xlu0 %659
        %v665 = vmul.f32 %v622, %v654
        %v666 = vmul.f32 %v623, %v656
        %v667 = vmul.f32 %v624, %v658
        %v668 = vmul.f32 %v625, %v660
        %v669 = vsel %vm634, %v665, 0.0
        %v670 = vsel %vm634, %v666, 0.0
        %v671 = vadd.f32 %v669, %v670
        %v672 = vsel %vm634, %v667, 0.0
        %v673 = vadd.f32 %v671, %v672
        %v674 = vsel %vm634, %v668, 0.0
        %v675 = vadd.f32 %v673, %v674
        %s676 = scalar_lea.vmem [#allocation2], 8
        %v677 = vld [vmem:[%s676] sm:$0xff]
        %v678 = vadd.f32 %v677, %v675
        %679 = vst.msk [vmem:[%s676] sm:$0xff] %vm634, %v678
        %v680 = vld [vmem:[%s573] sm:$0xff]
        %v681 = vld [vmem:[%s573 + $0x10] sm:$0xff]
        %v682 = vld [vmem:[%s573 + $0x20] sm:$0xff]
        %v683 = vld [vmem:[%s573 + $0x30] sm:$0xff]
        %688 = vrot.lane.b32.xlu0 %v680, 126
        %v689 = vpop.permute.xlu0 %688
        %690 = vrot.lane.b32.xlu0 %v681, 126
        %v691 = vpop.permute.xlu0 %690
        %692 = vrot.lane.b32.xlu0 %v682, 126
        %v693 = vpop.permute.xlu0 %692
        %694 = vrot.lane.b32.xlu0 %v683, 126
        %v695 = vpop.permute.xlu0 %694
        %v700 = vmul.f32 %v622, %v689
        %v701 = vmul.f32 %v623, %v691
        %v702 = vmul.f32 %v624, %v693
        %v703 = vmul.f32 %v625, %v695
        %v704 = vsel %vm634, %v700, 0.0
        %v705 = vsel %vm634, %v701, 0.0
        %v706 = vadd.f32 %v704, %v705
        %v707 = vsel %vm634, %v702, 0.0
        %v708 = vadd.f32 %v706, %v707
        %v709 = vsel %vm634, %v703, 0.0
        %v710 = vadd.f32 %v708, %v709
        %s711 = scalar_lea.vmem [#allocation2], 16
        %v712 = vld [vmem:[%s711] sm:$0xff]
        %v713 = vadd.f32 %v712, %v710
        %714 = vst.msk [vmem:[%s711] sm:$0xff] %vm634, %v713
        %v715 = vld [vmem:[%s573 + $0x1] sm:$0xff]
        %v716 = vld [vmem:[%s573 + $0x11] sm:$0xff]
        %v717 = vld [vmem:[%s573 + $0x21] sm:$0xff]
        %v718 = vld [vmem:[%s573 + $0x31] sm:$0xff]
        %v719 = vmul.f32 %v622, %v715
        %v720 = vmul.f32 %v623, %v716
        %v721 = vmul.f32 %v624, %v717
        %v722 = vmul.f32 %v625, %v718
        %v723 = vsel %vm634, %v719, 0.0
        %v724 = vsel %vm634, %v720, 0.0
        %v725 = vadd.f32 %v723, %v724
        %v726 = vsel %vm634, %v721, 0.0
        %v727 = vadd.f32 %v725, %v726
        %v728 = vsel %vm634, %v722, 0.0
        %v729 = vadd.f32 %v727, %v728
        %s730 = scalar_lea.vmem [#allocation2], 24
        %v731 = vld [vmem:[%s730] sm:$0xff]
        %v732 = vadd.f32 %v731, %v729
        %733 = vst.msk [vmem:[%s730] sm:$0xff] %vm634, %v732
        %v734 = vld [vmem:[%s573 + $0x1] sm:$0xff]
        %v735 = vld [vmem:[%s573 + $0x11] sm:$0xff]
        %v736 = vld [vmem:[%s573 + $0x21] sm:$0xff]
        %v737 = vld [vmem:[%s573 + $0x31] sm:$0xff]
        %742 = vrot.lane.b32.xlu0 %v734, 127
        %v743 = vpop.permute.xlu0 %742
        %744 = vrot.lane.b32.xlu0 %v735, 127
        %v745 = vpop.permute.xlu0 %744
        %746 = vrot.lane.b32.xlu0 %v736, 127
        %v747 = vpop.permute.xlu0 %746
        %748 = vrot.lane.b32.xlu0 %v737, 127
        %v749 = vpop.permute.xlu0 %748
        %v754 = vmul.f32 %v622, %v743
        %v755 = vmul.f32 %v623, %v745
        %v756 = vmul.f32 %v624, %v747
        %v757 = vmul.f32 %v625, %v749
        %v758 = vsel %vm634, %v754, 0.0
        %v759 = vsel %vm634, %v755, 0.0
        %v760 = vadd.f32 %v758, %v759
        %v761 = vsel %vm634, %v756, 0.0
        %v762 = vadd.f32 %v760, %v761
        %v763 = vsel %vm634, %v757, 0.0
        %v764 = vadd.f32 %v762, %v763
        %s765 = scalar_lea.vmem [#allocation2], 32
        %v766 = vld [vmem:[%s765] sm:$0xff]
        %v767 = vadd.f32 %v766, %v764
        %768 = vst.msk [vmem:[%s765] sm:$0xff] %vm634, %v767
        %v769 = vld [vmem:[%s573 + $0x1] sm:$0xff]
        %v770 = vld [vmem:[%s573 + $0x11] sm:$0xff]
        %v771 = vld [vmem:[%s573 + $0x21] sm:$0xff]
        %v772 = vld [vmem:[%s573 + $0x31] sm:$0xff]
        %777 = vrot.lane.b32.xlu0 %v769, 126
        %v778 = vpop.permute.xlu0 %777
        %779 = vrot.lane.b32.xlu0 %v770, 126
        %v780 = vpop.permute.xlu0 %779
        %781 = vrot.lane.b32.xlu0 %v771, 126
        %v782 = vpop.permute.xlu0 %781
        %783 = vrot.lane.b32.xlu0 %v772, 126
        %v784 = vpop.permute.xlu0 %783
        %v789 = vmul.f32 %v622, %v778
        %v790 = vmul.f32 %v623, %v780
        %v791 = vmul.f32 %v624, %v782
        %v792 = vmul.f32 %v625, %v784
        %v793 = vsel %vm634, %v789, 0.0
        %v794 = vsel %vm634, %v790, 0.0
        %v795 = vadd.f32 %v793, %v794
        %v796 = vsel %vm634, %v791, 0.0
        %v797 = vadd.f32 %v795, %v796
        %v798 = vsel %vm634, %v792, 0.0
        %v799 = vadd.f32 %v797, %v798
        %s800 = scalar_lea.vmem [#allocation2], 40
        %v801 = vld [vmem:[%s800] sm:$0xff]
        %v802 = vadd.f32 %v801, %v799
        %803 = vst.msk [vmem:[%s800] sm:$0xff] %vm634, %v802
        %v804 = vld [vmem:[%s573 + $0x2] sm:$0xff]
        %v805 = vld [vmem:[%s573 + $0x12] sm:$0xff]
        %v806 = vld [vmem:[%s573 + $0x22] sm:$0xff]
        %v807 = vld [vmem:[%s573 + $0x32] sm:$0xff]
        %v808 = vmul.f32 %v622, %v804
        %v809 = vmul.f32 %v623, %v805
        %v810 = vmul.f32 %v624, %v806
        %v811 = vmul.f32 %v625, %v807
        %v812 = vsel %vm634, %v808, 0.0
        %v813 = vsel %vm634, %v809, 0.0
        %v814 = vadd.f32 %v812, %v813
        %v815 = vsel %vm634, %v810, 0.0
        %v816 = vadd.f32 %v814, %v815
        %v817 = vsel %vm634, %v811, 0.0
        %v818 = vadd.f32 %v816, %v817
        %s819 = scalar_lea.vmem [#allocation2], 48
        %v820 = vld [vmem:[%s819] sm:$0xff]
        %v821 = vadd.f32 %v820, %v818
        %822 = vst.msk [vmem:[%s819] sm:$0xff] %vm634, %v821
        %v823 = vld [vmem:[%s573 + $0x2] sm:$0xff]
        %v824 = vld [vmem:[%s573 + $0x12] sm:$0xff]
        %v825 = vld [vmem:[%s573 + $0x22] sm:$0xff]
        %v826 = vld [vmem:[%s573 + $0x32] sm:$0xff]
        %831 = vrot.lane.b32.xlu0 %v823, 127
        %v832 = vpop.permute.xlu0 %831
        %833 = vrot.lane.b32.xlu0 %v824, 127
        %v834 = vpop.permute.xlu0 %833
        %835 = vrot.lane.b32.xlu0 %v825, 127
        %v836 = vpop.permute.xlu0 %835
        %837 = vrot.lane.b32.xlu0 %v826, 127
        %v838 = vpop.permute.xlu0 %837
        %v843 = vmul.f32 %v622, %v832
        %v844 = vmul.f32 %v623, %v834
        %v845 = vmul.f32 %v624, %v836
        %v846 = vmul.f32 %v625, %v838
        %v847 = vsel %vm634, %v843, 0.0
        %v848 = vsel %vm634, %v844, 0.0
        %v849 = vadd.f32 %v847, %v848
        %v850 = vsel %vm634, %v845, 0.0
        %v851 = vadd.f32 %v849, %v850
        %v852 = vsel %vm634, %v846, 0.0
        %v853 = vadd.f32 %v851, %v852
        %s854 = scalar_lea.vmem [#allocation2], 56
        %v855 = vld [vmem:[%s854] sm:$0xff]
        %v856 = vadd.f32 %v855, %v853
        %857 = vst.msk [vmem:[%s854] sm:$0xff] %vm634, %v856
        %v858 = vld [vmem:[%s573 + $0x2] sm:$0xff]
        %v859 = vld [vmem:[%s573 + $0x12] sm:$0xff]
        %v860 = vld [vmem:[%s573 + $0x22] sm:$0xff]
        %v861 = vld [vmem:[%s573 + $0x32] sm:$0xff]
        %866 = vrot.lane.b32.xlu0 %v858, 126
        %v867 = vpop.permute.xlu0 %866
        %868 = vrot.lane.b32.xlu0 %v859, 126
        %v869 = vpop.permute.xlu0 %868
        %870 = vrot.lane.b32.xlu0 %v860, 126
        %v871 = vpop.permute.xlu0 %870
        %872 = vrot.lane.b32.xlu0 %v861, 126
        %v873 = vpop.permute.xlu0 %872
        %v878 = vmul.f32 %v622, %v867
        %v879 = vmul.f32 %v623, %v869
        %v880 = vmul.f32 %v624, %v871
        %v881 = vmul.f32 %v625, %v873
        %v882 = vsel %vm634, %v878, 0.0
        %v883 = vsel %vm634, %v879, 0.0
        %v884 = vadd.f32 %v882, %v883
        %v885 = vsel %vm634, %v880, 0.0
        %v886 = vadd.f32 %v884, %v885
        %v887 = vsel %vm634, %v881, 0.0
        %v888 = vadd.f32 %v886, %v887
        %s889 = scalar_lea.vmem [#allocation2], 64
        %v890 = vld [vmem:[%s889] sm:$0xff]
        %v891 = vadd.f32 %v890, %v888
        %892 = vst.msk [vmem:[%s889] sm:$0xff] %vm634, %v891
        %v893 = vld [vmem:[%s540] sm:$0xff]
        %v894 = vld [vmem:[%s540 + $0x10] sm:$0xff]
        %v895 = vld [vmem:[%s540 + $0x20] sm:$0xff]
        %v896 = vld [vmem:[%s540 + $0x30] sm:$0xff]
        %v897 = vld [vmem:[%s584] sm:$0xff]
        %v898 = vld [vmem:[%s584 + $0x10] sm:$0xff]
        %v899 = vld [vmem:[%s584 + $0x20] sm:$0xff]
        %v900 = vld [vmem:[%s584 + $0x30] sm:$0xff]
        %v901 = vmul.f32 %v893, %v897
        %v902 = vmul.f32 %v894, %v898
        %v903 = vmul.f32 %v895, %v899
        %v904 = vmul.f32 %v896, %v900
        %v905 = vsel %vm634, %v901, 0.0
        %v906 = vsel %vm634, %v902, 0.0
        %v907 = vadd.f32 %v905, %v906
        %v908 = vsel %vm634, %v903, 0.0
        %v909 = vadd.f32 %v907, %v908
        %v910 = vsel %vm634, %v904, 0.0
        %v911 = vadd.f32 %v909, %v910
        %v912 = vld [vmem:[#allocation2] sm:$0xff]
        %v913 = vadd.f32 %v912, %v911
        %914 = vst.msk [vmem:[#allocation2] sm:$0xff] %vm634, %v913
        %v915 = vld [vmem:[%s584] sm:$0xff]
        %v916 = vld [vmem:[%s584 + $0x10] sm:$0xff]
        %v917 = vld [vmem:[%s584 + $0x20] sm:$0xff]
        %v918 = vld [vmem:[%s584 + $0x30] sm:$0xff]
        %923 = vrot.lane.b32.xlu0 %v915, 127
        %v924 = vpop.permute.xlu0 %923
        %925 = vrot.lane.b32.xlu0 %v916, 127
        %v926 = vpop.permute.xlu0 %925
        %927 = vrot.lane.b32.xlu0 %v917, 127
        %v928 = vpop.permute.xlu0 %927
        %929 = vrot.lane.b32.xlu0 %v918, 127
        %v930 = vpop.permute.xlu0 %929
        %v935 = vmul.f32 %v893, %v924
        %v936 = vmul.f32 %v894, %v926
        %v937 = vmul.f32 %v895, %v928
        %v938 = vmul.f32 %v896, %v930
        %v939 = vsel %vm634, %v935, 0.0
        %v940 = vsel %vm634, %v936, 0.0
        %v941 = vadd.f32 %v939, %v940
        %v942 = vsel %vm634, %v937, 0.0
        %v943 = vadd.f32 %v941, %v942
        %v944 = vsel %vm634, %v938, 0.0
        %v945 = vadd.f32 %v943, %v944
        %v946 = vld [vmem:[%s676] sm:$0xff]
        %v947 = vadd.f32 %v946, %v945
        %948 = vst.msk [vmem:[%s676] sm:$0xff] %vm634, %v947
        %v949 = vld [vmem:[%s584] sm:$0xff]
        %v950 = vld [vmem:[%s584 + $0x10] sm:$0xff]
        %v951 = vld [vmem:[%s584 + $0x20] sm:$0xff]
        %v952 = vld [vmem:[%s584 + $0x30] sm:$0xff]
        %957 = vrot.lane.b32.xlu0 %v949, 126
        %v958 = vpop.permute.xlu0 %957
        %959 = vrot.lane.b32.xlu0 %v950, 126
        %v960 = vpop.permute.xlu0 %959
        %961 = vrot.lane.b32.xlu0 %v951, 126
        %v962 = vpop.permute.xlu0 %961
        %963 = vrot.lane.b32.xlu0 %v952, 126
        %v964 = vpop.permute.xlu0 %963
        %v969 = vmul.f32 %v893, %v958
        %v970 = vmul.f32 %v894, %v960
        %v971 = vmul.f32 %v895, %v962
        %v972 = vmul.f32 %v896, %v964
        %v973 = vsel %vm634, %v969, 0.0
        %v974 = vsel %vm634, %v970, 0.0
        %v975 = vadd.f32 %v973, %v974
        %v976 = vsel %vm634, %v971, 0.0
        %v977 = vadd.f32 %v975, %v976
        %v978 = vsel %vm634, %v972, 0.0
        %v979 = vadd.f32 %v977, %v978
        %v980 = vld [vmem:[%s711] sm:$0xff]
        %v981 = vadd.f32 %v980, %v979
        %982 = vst.msk [vmem:[%s711] sm:$0xff] %vm634, %v981
        %v983 = vld [vmem:[%s584 + $0x1] sm:$0xff]
        %v984 = vld [vmem:[%s584 + $0x11] sm:$0xff]
        %v985 = vld [vmem:[%s584 + $0x21] sm:$0xff]
        %v986 = vld [vmem:[%s584 + $0x31] sm:$0xff]
        %v987 = vmul.f32 %v893, %v983
        %v988 = vmul.f32 %v894, %v984
        %v989 = vmul.f32 %v895, %v985
        %v990 = vmul.f32 %v896, %v986
        %v991 = vsel %vm634, %v987, 0.0
        %v992 = vsel %vm634, %v988, 0.0
        %v993 = vadd.f32 %v991, %v992
        %v994 = vsel %vm634, %v989, 0.0
        %v995 = vadd.f32 %v993, %v994
        %v996 = vsel %vm634, %v990, 0.0
        %v997 = vadd.f32 %v995, %v996
        %v998 = vld [vmem:[%s730] sm:$0xff]
        %v999 = vadd.f32 %v998, %v997
        %1000 = vst.msk [vmem:[%s730] sm:$0xff] %vm634, %v999
        %v1001 = vld [vmem:[%s584 + $0x1] sm:$0xff]
        %v1002 = vld [vmem:[%s584 + $0x11] sm:$0xff]
        %v1003 = vld [vmem:[%s584 + $0x21] sm:$0xff]
        %v1004 = vld [vmem:[%s584 + $0x31] sm:$0xff]
        %1009 = vrot.lane.b32.xlu0 %v1001, 127
        %v1010 = vpop.permute.xlu0 %1009
        %1011 = vrot.lane.b32.xlu0 %v1002, 127
        %v1012 = vpop.permute.xlu0 %1011
        %1013 = vrot.lane.b32.xlu0 %v1003, 127
        %v1014 = vpop.permute.xlu0 %1013
        %1015 = vrot.lane.b32.xlu0 %v1004, 127
        %v1016 = vpop.permute.xlu0 %1015
        %v1021 = vmul.f32 %v893, %v1010
        %v1022 = vmul.f32 %v894, %v1012
        %v1023 = vmul.f32 %v895, %v1014
        %v1024 = vmul.f32 %v896, %v1016
        %v1025 = vsel %vm634, %v1021, 0.0
        %v1026 = vsel %vm634, %v1022, 0.0
        %v1027 = vadd.f32 %v1025, %v1026
        %v1028 = vsel %vm634, %v1023, 0.0
        %v1029 = vadd.f32 %v1027, %v1028
        %v1030 = vsel %vm634, %v1024, 0.0
        %v1031 = vadd.f32 %v1029, %v1030
        %v1032 = vld [vmem:[%s765] sm:$0xff]
        %v1033 = vadd.f32 %v1032, %v1031
        %1034 = vst.msk [vmem:[%s765] sm:$0xff] %vm634, %v1033
        %v1035 = vld [vmem:[%s584 + $0x1] sm:$0xff]
        %v1036 = vld [vmem:[%s584 + $0x11] sm:$0xff]
        %v1037 = vld [vmem:[%s584 + $0x21] sm:$0xff]
        %v1038 = vld [vmem:[%s584 + $0x31] sm:$0xff]
        %1043 = vrot.lane.b32.xlu0 %v1035, 126
        %v1044 = vpop.permute.xlu0 %1043
        %1045 = vrot.lane.b32.xlu0 %v1036, 126
        %v1046 = vpop.permute.xlu0 %1045
        %1047 = vrot.lane.b32.xlu0 %v1037, 126
        %v1048 = vpop.permute.xlu0 %1047
        %1049 = vrot.lane.b32.xlu0 %v1038, 126
        %v1050 = vpop.permute.xlu0 %1049
        %v1055 = vmul.f32 %v893, %v1044
        %v1056 = vmul.f32 %v894, %v1046
        %v1057 = vmul.f32 %v895, %v1048
        %v1058 = vmul.f32 %v896, %v1050
        %v1059 = vsel %vm634, %v1055, 0.0
        %v1060 = vsel %vm634, %v1056, 0.0
        %v1061 = vadd.f32 %v1059, %v1060
        %v1062 = vsel %vm634, %v1057, 0.0
        %v1063 = vadd.f32 %v1061, %v1062
        %v1064 = vsel %vm634, %v1058, 0.0
        %v1065 = vadd.f32 %v1063, %v1064
        %v1066 = vld [vmem:[%s800] sm:$0xff]
        %v1067 = vadd.f32 %v1066, %v1065
        %1068 = vst.msk [vmem:[%s800] sm:$0xff] %vm634, %v1067
        %v1069 = vld [vmem:[%s584 + $0x2] sm:$0xff]
        %v1070 = vld [vmem:[%s584 + $0x12] sm:$0xff]
        %v1071 = vld [vmem:[%s584 + $0x22] sm:$0xff]
        %v1072 = vld [vmem:[%s584 + $0x32] sm:$0xff]
        %v1073 = vmul.f32 %v893, %v1069
        %v1074 = vmul.f32 %v894, %v1070
        %v1075 = vmul.f32 %v895, %v1071
        %v1076 = vmul.f32 %v896, %v1072
        %v1077 = vsel %vm634, %v1073, 0.0
        %v1078 = vsel %vm634, %v1074, 0.0
        %v1079 = vadd.f32 %v1077, %v1078
        %v1080 = vsel %vm634, %v1075, 0.0
        %v1081 = vadd.f32 %v1079, %v1080
        %v1082 = vsel %vm634, %v1076, 0.0
        %v1083 = vadd.f32 %v1081, %v1082
        %v1084 = vld [vmem:[%s819] sm:$0xff]
        %v1085 = vadd.f32 %v1084, %v1083
        %1086 = vst.msk [vmem:[%s819] sm:$0xff] %vm634, %v1085
        %v1087 = vld [vmem:[%s584 + $0x2] sm:$0xff]
        %v1088 = vld [vmem:[%s584 + $0x12] sm:$0xff]
        %v1089 = vld [vmem:[%s584 + $0x22] sm:$0xff]
        %v1090 = vld [vmem:[%s584 + $0x32] sm:$0xff]
        %1095 = vrot.lane.b32.xlu0 %v1087, 127
        %v1096 = vpop.permute.xlu0 %1095
        %1097 = vrot.lane.b32.xlu0 %v1088, 127
        %v1098 = vpop.permute.xlu0 %1097
        %1099 = vrot.lane.b32.xlu0 %v1089, 127
        %v1100 = vpop.permute.xlu0 %1099
        %1101 = vrot.lane.b32.xlu0 %v1090, 127
        %v1102 = vpop.permute.xlu0 %1101
        %v1107 = vmul.f32 %v893, %v1096
        %v1108 = vmul.f32 %v894, %v1098
        %v1109 = vmul.f32 %v895, %v1100
        %v1110 = vmul.f32 %v896, %v1102
        %v1111 = vsel %vm634, %v1107, 0.0
        %v1112 = vsel %vm634, %v1108, 0.0
        %v1113 = vadd.f32 %v1111, %v1112
        %v1114 = vsel %vm634, %v1109, 0.0
        %v1115 = vadd.f32 %v1113, %v1114
        %v1116 = vsel %vm634, %v1110, 0.0
        %v1117 = vadd.f32 %v1115, %v1116
        %v1118 = vld [vmem:[%s854] sm:$0xff]
        %v1119 = vadd.f32 %v1118, %v1117
        %1120 = vst.msk [vmem:[%s854] sm:$0xff] %vm634, %v1119
        %v1121 = vld [vmem:[%s584 + $0x2] sm:$0xff]
        %v1122 = vld [vmem:[%s584 + $0x12] sm:$0xff]
        %v1123 = vld [vmem:[%s584 + $0x22] sm:$0xff]
        %v1124 = vld [vmem:[%s584 + $0x32] sm:$0xff]
        %1129 = vrot.lane.b32.xlu0 %v1121, 126
        %v1130 = vpop.permute.xlu0 %1129
        %1131 = vrot.lane.b32.xlu0 %v1122, 126
        %v1132 = vpop.permute.xlu0 %1131
        %1133 = vrot.lane.b32.xlu0 %v1123, 126
        %v1134 = vpop.permute.xlu0 %1133
        %1135 = vrot.lane.b32.xlu0 %v1124, 126
        %v1136 = vpop.permute.xlu0 %1135
        %v1141 = vmul.f32 %v893, %v1130
        %v1142 = vmul.f32 %v894, %v1132
        %v1143 = vmul.f32 %v895, %v1134
        %v1144 = vmul.f32 %v896, %v1136
        %v1145 = vsel %vm634, %v1141, 0.0
        %v1146 = vsel %vm634, %v1142, 0.0
        %v1147 = vadd.f32 %v1145, %v1146
        %v1148 = vsel %vm634, %v1143, 0.0
        %v1149 = vadd.f32 %v1147, %v1148
        %v1150 = vsel %vm634, %v1144, 0.0
        %v1151 = vadd.f32 %v1149, %v1150
        %v1152 = vld [vmem:[%s889] sm:$0xff]
        %v1153 = vadd.f32 %v1152, %v1151
        %1154 = vst.msk [vmem:[%s889] sm:$0xff] %vm634, %v1153
        %v1155 = vld [vmem:[%s529] sm:$0xff]
        %v1156 = vld [vmem:[%s529 + $0x10] sm:$0xff]
        %v1157 = vld [vmem:[%s529 + $0x20] sm:$0xff]
        %v1158 = vld [vmem:[%s529 + $0x30] sm:$0xff]
        %v1159 = vld [vmem:[%s573] sm:$0xff]
        %v1160 = vld [vmem:[%s573 + $0x10] sm:$0xff]
        %v1161 = vld [vmem:[%s573 + $0x20] sm:$0xff]
        %v1162 = vld [vmem:[%s573 + $0x30] sm:$0xff]
        %v1163 = vmul.f32 %v1155, %v1159
        %v1164 = vmul.f32 %v1156, %v1160
        %v1165 = vmul.f32 %v1157, %v1161
        %v1166 = vmul.f32 %v1158, %v1162
        %vm1167 = vcmask 72712
        %v1168 = vsel %vm1167, %v1163, 0.0
        %v1169 = vsel %vm1167, %v1164, 0.0
        %v1170 = vadd.f32 %v1168, %v1169
        %v1171 = vsel %vm1167, %v1165, 0.0
        %v1172 = vadd.f32 %v1170, %v1171
        %v1173 = vsel %vm1167, %v1166, 0.0
        %v1174 = vadd.f32 %v1172, %v1173
        %v1175 = vld [vmem:[#allocation2] sm:$0xff]
        %1177 = vrot.lane.b32.xlu0 %v1174, 127
        %v1178 = vpop.permute.xlu0 %1177
        %v1180 = vadd.f32 %v1175, %v1178
        %1181 = vst.msk [vmem:[#allocation2] sm:$0xff] %vm634, %v1180
        %v1182 = vld [vmem:[%s573] sm:$0xff]
        %v1183 = vld [vmem:[%s573 + $0x10] sm:$0xff]
        %v1184 = vld [vmem:[%s573 + $0x20] sm:$0xff]
        %v1185 = vld [vmem:[%s573 + $0x30] sm:$0xff]
        %1190 = vrot.lane.b32.xlu0 %v1182, 127
        %v1191 = vpop.permute.xlu0 %1190
        %1192 = vrot.lane.b32.xlu0 %v1183, 127
        %v1193 = vpop.permute.xlu0 %1192
        %1194 = vrot.lane.b32.xlu0 %v1184, 127
        %v1195 = vpop.permute.xlu0 %1194
        %1196 = vrot.lane.b32.xlu0 %v1185, 127
        %v1197 = vpop.permute.xlu0 %1196
        %v1202 = vmul.f32 %v1155, %v1191
        %v1203 = vmul.f32 %v1156, %v1193
        %v1204 = vmul.f32 %v1157, %v1195
        %v1205 = vmul.f32 %v1158, %v1197
        %v1206 = vsel %vm1167, %v1202, 0.0
        %v1207 = vsel %vm1167, %v1203, 0.0
        %v1208 = vadd.f32 %v1206, %v1207
        %v1209 = vsel %vm1167, %v1204, 0.0
        %v1210 = vadd.f32 %v1208, %v1209
        %v1211 = vsel %vm1167, %v1205, 0.0
        %v1212 = vadd.f32 %v1210, %v1211
        %v1213 = vld [vmem:[%s676] sm:$0xff]
        %1215 = vrot.lane.b32.xlu0 %v1212, 127
        %v1216 = vpop.permute.xlu0 %1215
        %v1218 = vadd.f32 %v1213, %v1216
        %1219 = vst.msk [vmem:[%s676] sm:$0xff] %vm634, %v1218
        %v1220 = vld [vmem:[%s573] sm:$0xff]
        %v1221 = vld [vmem:[%s573 + $0x10] sm:$0xff]
        %v1222 = vld [vmem:[%s573 + $0x20] sm:$0xff]
        %v1223 = vld [vmem:[%s573 + $0x30] sm:$0xff]
        %1228 = vrot.lane.b32.xlu0 %v1220, 126
        %v1229 = vpop.permute.xlu0 %1228
        %1230 = vrot.lane.b32.xlu0 %v1221, 126
        %v1231 = vpop.permute.xlu0 %1230
        %1232 = vrot.lane.b32.xlu0 %v1222, 126
        %v1233 = vpop.permute.xlu0 %1232
        %1234 = vrot.lane.b32.xlu0 %v1223, 126
        %v1235 = vpop.permute.xlu0 %1234
        %v1240 = vmul.f32 %v1155, %v1229
        %v1241 = vmul.f32 %v1156, %v1231
        %v1242 = vmul.f32 %v1157, %v1233
        %v1243 = vmul.f32 %v1158, %v1235
        %v1244 = vsel %vm1167, %v1240, 0.0
        %v1245 = vsel %vm1167, %v1241, 0.0
        %v1246 = vadd.f32 %v1244, %v1245
        %v1247 = vsel %vm1167, %v1242, 0.0
        %v1248 = vadd.f32 %v1246, %v1247
        %v1249 = vsel %vm1167, %v1243, 0.0
        %v1250 = vadd.f32 %v1248, %v1249
        %v1251 = vld [vmem:[%s711] sm:$0xff]
        %1253 = vrot.lane.b32.xlu0 %v1250, 127
        %v1254 = vpop.permute.xlu0 %1253
        %v1256 = vadd.f32 %v1251, %v1254
        %1257 = vst.msk [vmem:[%s711] sm:$0xff] %vm634, %v1256
        %v1258 = vld [vmem:[%s573 + $0x1] sm:$0xff]
        %v1259 = vld [vmem:[%s573 + $0x11] sm:$0xff]
        %v1260 = vld [vmem:[%s573 + $0x21] sm:$0xff]
        %v1261 = vld [vmem:[%s573 + $0x31] sm:$0xff]
        %v1262 = vmul.f32 %v1155, %v1258
        %v1263 = vmul.f32 %v1156, %v1259
        %v1264 = vmul.f32 %v1157, %v1260
        %v1265 = vmul.f32 %v1158, %v1261
        %v1266 = vsel %vm1167, %v1262, 0.0
        %v1267 = vsel %vm1167, %v1263, 0.0
        %v1268 = vadd.f32 %v1266, %v1267
        %v1269 = vsel %vm1167, %v1264, 0.0
        %v1270 = vadd.f32 %v1268, %v1269
        %v1271 = vsel %vm1167, %v1265, 0.0
        %v1272 = vadd.f32 %v1270, %v1271
        %v1273 = vld [vmem:[%s730] sm:$0xff]
        %1275 = vrot.lane.b32.xlu0 %v1272, 127
        %v1276 = vpop.permute.xlu0 %1275
        %v1278 = vadd.f32 %v1273, %v1276
        %1279 = vst.msk [vmem:[%s730] sm:$0xff] %vm634, %v1278
        %v1280 = vld [vmem:[%s573 + $0x1] sm:$0xff]
        %v1281 = vld [vmem:[%s573 + $0x11] sm:$0xff]
        %v1282 = vld [vmem:[%s573 + $0x21] sm:$0xff]
        %v1283 = vld [vmem:[%s573 + $0x31] sm:$0xff]
        %1288 = vrot.lane.b32.xlu0 %v1280, 127
        %v1289 = vpop.permute.xlu0 %1288
        %1290 = vrot.lane.b32.xlu0 %v1281, 127
        %v1291 = vpop.permute.xlu0 %1290
        %1292 = vrot.lane.b32.xlu0 %v1282, 127
        %v1293 = vpop.permute.xlu0 %1292
        %1294 = vrot.lane.b32.xlu0 %v1283, 127
        %v1295 = vpop.permute.xlu0 %1294
        %v1300 = vmul.f32 %v1155, %v1289
        %v1301 = vmul.f32 %v1156, %v1291
        %v1302 = vmul.f32 %v1157, %v1293
        %v1303 = vmul.f32 %v1158, %v1295
        %v1304 = vsel %vm1167, %v1300, 0.0
        %v1305 = vsel %vm1167, %v1301, 0.0
        %v1306 = vadd.f32 %v1304, %v1305
        %v1307 = vsel %vm1167, %v1302, 0.0
        %v1308 = vadd.f32 %v1306, %v1307
        %v1309 = vsel %vm1167, %v1303, 0.0
        %v1310 = vadd.f32 %v1308, %v1309
        %v1311 = vld [vmem:[%s765] sm:$0xff]
        %1313 = vrot.lane.b32.xlu0 %v1310, 127
        %v1314 = vpop.permute.xlu0 %1313
        %v1316 = vadd.f32 %v1311, %v1314
        %1317 = vst.msk [vmem:[%s765] sm:$0xff] %vm634, %v1316
        %v1318 = vld [vmem:[%s573 + $0x1] sm:$0xff]
        %v1319 = vld [vmem:[%s573 + $0x11] sm:$0xff]
        %v1320 = vld [vmem:[%s573 + $0x21] sm:$0xff]
        %v1321 = vld [vmem:[%s573 + $0x31] sm:$0xff]
        %1326 = vrot.lane.b32.xlu0 %v1318, 126
        %v1327 = vpop.permute.xlu0 %1326
        %1328 = vrot.lane.b32.xlu0 %v1319, 126
        %v1329 = vpop.permute.xlu0 %1328
        %1330 = vrot.lane.b32.xlu0 %v1320, 126
        %v1331 = vpop.permute.xlu0 %1330
        %1332 = vrot.lane.b32.xlu0 %v1321, 126
        %v1333 = vpop.permute.xlu0 %1332
        %v1338 = vmul.f32 %v1155, %v1327
        %v1339 = vmul.f32 %v1156, %v1329
        %v1340 = vmul.f32 %v1157, %v1331
        %v1341 = vmul.f32 %v1158, %v1333
        %v1342 = vsel %vm1167, %v1338, 0.0
        %v1343 = vsel %vm1167, %v1339, 0.0
        %v1344 = vadd.f32 %v1342, %v1343
        %v1345 = vsel %vm1167, %v1340, 0.0
        %v1346 = vadd.f32 %v1344, %v1345
        %v1347 = vsel %vm1167, %v1341, 0.0
        %v1348 = vadd.f32 %v1346, %v1347
        %v1349 = vld [vmem:[%s800] sm:$0xff]
        %1351 = vrot.lane.b32.xlu0 %v1348, 127
        %v1352 = vpop.permute.xlu0 %1351
        %v1354 = vadd.f32 %v1349, %v1352
        %1355 = vst.msk [vmem:[%s800] sm:$0xff] %vm634, %v1354
        %v1356 = vld [vmem:[%s573 + $0x2] sm:$0xff]
        %v1357 = vld [vmem:[%s573 + $0x12] sm:$0xff]
        %v1358 = vld [vmem:[%s573 + $0x22] sm:$0xff]
        %v1359 = vld [vmem:[%s573 + $0x32] sm:$0xff]
        %v1360 = vmul.f32 %v1155, %v1356
        %v1361 = vmul.f32 %v1156, %v1357
        %v1362 = vmul.f32 %v1157, %v1358
        %v1363 = vmul.f32 %v1158, %v1359
        %v1364 = vsel %vm1167, %v1360, 0.0
        %v1365 = vsel %vm1167, %v1361, 0.0
        %v1366 = vadd.f32 %v1364, %v1365
        %v1367 = vsel %vm1167, %v1362, 0.0
        %v1368 = vadd.f32 %v1366, %v1367
        %v1369 = vsel %vm1167, %v1363, 0.0
        %v1370 = vadd.f32 %v1368, %v1369
        %v1371 = vld [vmem:[%s819] sm:$0xff]
        %1373 = vrot.lane.b32.xlu0 %v1370, 127
        %v1374 = vpop.permute.xlu0 %1373
        %v1376 = vadd.f32 %v1371, %v1374
        %1377 = vst.msk [vmem:[%s819] sm:$0xff] %vm634, %v1376
        %v1378 = vld [vmem:[%s573 + $0x2] sm:$0xff]
        %v1379 = vld [vmem:[%s573 + $0x12] sm:$0xff]
        %v1380 = vld [vmem:[%s573 + $0x22] sm:$0xff]
        %v1381 = vld [vmem:[%s573 + $0x32] sm:$0xff]
        %1386 = vrot.lane.b32.xlu0 %v1378, 127
        %v1387 = vpop.permute.xlu0 %1386
        %1388 = vrot.lane.b32.xlu0 %v1379, 127
        %v1389 = vpop.permute.xlu0 %1388
        %1390 = vrot.lane.b32.xlu0 %v1380, 127
        %v1391 = vpop.permute.xlu0 %1390
        %1392 = vrot.lane.b32.xlu0 %v1381, 127
        %v1393 = vpop.permute.xlu0 %1392
        %v1398 = vmul.f32 %v1155, %v1387
        %v1399 = vmul.f32 %v1156, %v1389
        %v1400 = vmul.f32 %v1157, %v1391
        %v1401 = vmul.f32 %v1158, %v1393
        %v1402 = vsel %vm1167, %v1398, 0.0
        %v1403 = vsel %vm1167, %v1399, 0.0
        %v1404 = vadd.f32 %v1402, %v1403
        %v1405 = vsel %vm1167, %v1400, 0.0
        %v1406 = vadd.f32 %v1404, %v1405
        %v1407 = vsel %vm1167, %v1401, 0.0
        %v1408 = vadd.f32 %v1406, %v1407
        %v1409 = vld [vmem:[%s854] sm:$0xff]
        %1411 = vrot.lane.b32.xlu0 %v1408, 127
        %v1412 = vpop.permute.xlu0 %1411
        %v1414 = vadd.f32 %v1409, %v1412
        %1415 = vst.msk [vmem:[%s854] sm:$0xff] %vm634, %v1414
        %v1416 = vld [vmem:[%s573 + $0x2] sm:$0xff]
        %v1417 = vld [vmem:[%s573 + $0x12] sm:$0xff]
        %v1418 = vld [vmem:[%s573 + $0x22] sm:$0xff]
        %v1419 = vld [vmem:[%s573 + $0x32] sm:$0xff]
        %1424 = vrot.lane.b32.xlu0 %v1416, 126
        %v1425 = vpop.permute.xlu0 %1424
        %1426 = vrot.lane.b32.xlu0 %v1417, 126
        %v1427 = vpop.permute.xlu0 %1426
        %1428 = vrot.lane.b32.xlu0 %v1418, 126
        %v1429 = vpop.permute.xlu0 %1428
        %1430 = vrot.lane.b32.xlu0 %v1419, 126
        %v1431 = vpop.permute.xlu0 %1430
        %v1436 = vmul.f32 %v1155, %v1425
        %v1437 = vmul.f32 %v1156, %v1427
        %v1438 = vmul.f32 %v1157, %v1429
        %v1439 = vmul.f32 %v1158, %v1431
        %v1440 = vsel %vm1167, %v1436, 0.0
        %v1441 = vsel %vm1167, %v1437, 0.0
        %v1442 = vadd.f32 %v1440, %v1441
        %v1443 = vsel %vm1167, %v1438, 0.0
        %v1444 = vadd.f32 %v1442, %v1443
        %v1445 = vsel %vm1167, %v1439, 0.0
        %v1446 = vadd.f32 %v1444, %v1445
        %v1447 = vld [vmem:[%s889] sm:$0xff]
        %1449 = vrot.lane.b32.xlu0 %v1446, 127
        %v1450 = vpop.permute.xlu0 %1449
        %v1452 = vadd.f32 %v1447, %v1450
        %1453 = vst.msk [vmem:[%s889] sm:$0xff] %vm634, %v1452
        %v1454 = vld [vmem:[%s551] sm:$0xff]
        %v1455 = vld [vmem:[%s551 + $0x10] sm:$0xff]
        %v1456 = vld [vmem:[%s551 + $0x20] sm:$0xff]
        %v1457 = vld [vmem:[%s551 + $0x30] sm:$0xff]
        %v1458 = vld [vmem:[%s595] sm:$0xff]
        %v1459 = vld [vmem:[%s595 + $0x10] sm:$0xff]
        %v1460 = vld [vmem:[%s595 + $0x20] sm:$0xff]
        %v1461 = vld [vmem:[%s595 + $0x30] sm:$0xff]
        %v1462 = vmul.f32 %v1454, %v1458
        %v1463 = vmul.f32 %v1455, %v1459
        %v1464 = vmul.f32 %v1456, %v1460
        %v1465 = vmul.f32 %v1457, %v1461
        %v1466 = vsel %vm634, %v1462, 0.0
        %v1467 = vsel %vm634, %v1463, 0.0
        %v1468 = vadd.f32 %v1466, %v1467
        %v1469 = vsel %vm634, %v1464, 0.0
        %v1470 = vadd.f32 %v1468, %v1469
        %v1471 = vsel %vm634, %v1465, 0.0
        %v1472 = vadd.f32 %v1470, %v1471
        %v1473 = vld [vmem:[#allocation2] sm:$0xff]
        %v1474 = vadd.f32 %v1473, %v1472
        %1475 = vst.msk [vmem:[#allocation2] sm:$0xff] %vm634, %v1474
        %v1476 = vld [vmem:[%s595] sm:$0xff]
        %v1477 = vld [vmem:[%s595 + $0x10] sm:$0xff]
        %v1478 = vld [vmem:[%s595 + $0x20] sm:$0xff]
        %v1479 = vld [vmem:[%s595 + $0x30] sm:$0xff]
        %1484 = vrot.lane.b32.xlu0 %v1476, 127
        %v1485 = vpop.permute.xlu0 %1484
        %1486 = vrot.lane.b32.xlu0 %v1477, 127
        %v1487 = vpop.permute.xlu0 %1486
        %1488 = vrot.lane.b32.xlu0 %v1478, 127
        %v1489 = vpop.permute.xlu0 %1488
        %1490 = vrot.lane.b32.xlu0 %v1479, 127
        %v1491 = vpop.permute.xlu0 %1490
        %v1496 = vmul.f32 %v1454, %v1485
        %v1497 = vmul.f32 %v1455, %v1487
        %v1498 = vmul.f32 %v1456, %v1489
        %v1499 = vmul.f32 %v1457, %v1491
        %v1500 = vsel %vm634, %v1496, 0.0
        %v1501 = vsel %vm634, %v1497, 0.0
        %v1502 = vadd.f32 %v1500, %v1501
        %v1503 = vsel %vm634, %v1498, 0.0
        %v1504 = vadd.f32 %v1502, %v1503
        %v1505 = vsel %vm634, %v1499, 0.0
        %v1506 = vadd.f32 %v1504, %v1505
        %v1507 = vld [vmem:[%s676] sm:$0xff]
        %v1508 = vadd.f32 %v1507, %v1506
        %1509 = vst.msk [vmem:[%s676] sm:$0xff] %vm634, %v1508
        %v1510 = vld [vmem:[%s595] sm:$0xff]
        %v1511 = vld [vmem:[%s595 + $0x10] sm:$0xff]
        %v1512 = vld [vmem:[%s595 + $0x20] sm:$0xff]
        %v1513 = vld [vmem:[%s595 + $0x30] sm:$0xff]
        %1518 = vrot.lane.b32.xlu0 %v1510, 126
        %v1519 = vpop.permute.xlu0 %1518
        %1520 = vrot.lane.b32.xlu0 %v1511, 126
        %v1521 = vpop.permute.xlu0 %1520
        %1522 = vrot.lane.b32.xlu0 %v1512, 126
        %v1523 = vpop.permute.xlu0 %1522
        %1524 = vrot.lane.b32.xlu0 %v1513, 126
        %v1525 = vpop.permute.xlu0 %1524
        %v1530 = vmul.f32 %v1454, %v1519
        %v1531 = vmul.f32 %v1455, %v1521
        %v1532 = vmul.f32 %v1456, %v1523
        %v1533 = vmul.f32 %v1457, %v1525
        %v1534 = vsel %vm634, %v1530, 0.0
        %v1535 = vsel %vm634, %v1531, 0.0
        %v1536 = vadd.f32 %v1534, %v1535
        %v1537 = vsel %vm634, %v1532, 0.0
        %v1538 = vadd.f32 %v1536, %v1537
        %v1539 = vsel %vm634, %v1533, 0.0
        %v1540 = vadd.f32 %v1538, %v1539
        %v1541 = vld [vmem:[%s711] sm:$0xff]
        %v1542 = vadd.f32 %v1541, %v1540
        %1543 = vst.msk [vmem:[%s711] sm:$0xff] %vm634, %v1542
        %v1544 = vld [vmem:[%s595 + $0x1] sm:$0xff]
        %v1545 = vld [vmem:[%s595 + $0x11] sm:$0xff]
        %v1546 = vld [vmem:[%s595 + $0x21] sm:$0xff]
        %v1547 = vld [vmem:[%s595 + $0x31] sm:$0xff]
        %v1548 = vmul.f32 %v1454, %v1544
        %v1549 = vmul.f32 %v1455, %v1545
        %v1550 = vmul.f32 %v1456, %v1546
        %v1551 = vmul.f32 %v1457, %v1547
        %v1552 = vsel %vm634, %v1548, 0.0
        %v1553 = vsel %vm634, %v1549, 0.0
        %v1554 = vadd.f32 %v1552, %v1553
        %v1555 = vsel %vm634, %v1550, 0.0
        %v1556 = vadd.f32 %v1554, %v1555
        %v1557 = vsel %vm634, %v1551, 0.0
        %v1558 = vadd.f32 %v1556, %v1557
        %v1559 = vld [vmem:[%s730] sm:$0xff]
        %v1560 = vadd.f32 %v1559, %v1558
        %1561 = vst.msk [vmem:[%s730] sm:$0xff] %vm634, %v1560
        %v1562 = vld [vmem:[%s595 + $0x1] sm:$0xff]
        %v1563 = vld [vmem:[%s595 + $0x11] sm:$0xff]
        %v1564 = vld [vmem:[%s595 + $0x21] sm:$0xff]
        %v1565 = vld [vmem:[%s595 + $0x31] sm:$0xff]
        %1570 = vrot.lane.b32.xlu0 %v1562, 127
        %v1571 = vpop.permute.xlu0 %1570
        %1572 = vrot.lane.b32.xlu0 %v1563, 127
        %v1573 = vpop.permute.xlu0 %1572
        %1574 = vrot.lane.b32.xlu0 %v1564, 127
        %v1575 = vpop.permute.xlu0 %1574
        %1576 = vrot.lane.b32.xlu0 %v1565, 127
        %v1577 = vpop.permute.xlu0 %1576
        %v1582 = vmul.f32 %v1454, %v1571
        %v1583 = vmul.f32 %v1455, %v1573
        %v1584 = vmul.f32 %v1456, %v1575
        %v1585 = vmul.f32 %v1457, %v1577
        %v1586 = vsel %vm634, %v1582, 0.0
        %v1587 = vsel %vm634, %v1583, 0.0
        %v1588 = vadd.f32 %v1586, %v1587
        %v1589 = vsel %vm634, %v1584, 0.0
        %v1590 = vadd.f32 %v1588, %v1589
        %v1591 = vsel %vm634, %v1585, 0.0
        %v1592 = vadd.f32 %v1590, %v1591
        %v1593 = vld [vmem:[%s765] sm:$0xff]
        %v1594 = vadd.f32 %v1593, %v1592
        %1595 = vst.msk [vmem:[%s765] sm:$0xff] %vm634, %v1594
        %v1596 = vld [vmem:[%s595 + $0x1] sm:$0xff]
        %v1597 = vld [vmem:[%s595 + $0x11] sm:$0xff]
        %v1598 = vld [vmem:[%s595 + $0x21] sm:$0xff]
        %v1599 = vld [vmem:[%s595 + $0x31] sm:$0xff]
        %1604 = vrot.lane.b32.xlu0 %v1596, 126
        %v1605 = vpop.permute.xlu0 %1604
        %1606 = vrot.lane.b32.xlu0 %v1597, 126
        %v1607 = vpop.permute.xlu0 %1606
        %1608 = vrot.lane.b32.xlu0 %v1598, 126
        %v1609 = vpop.permute.xlu0 %1608
        %1610 = vrot.lane.b32.xlu0 %v1599, 126
        %v1611 = vpop.permute.xlu0 %1610
        %v1616 = vmul.f32 %v1454, %v1605
        %v1617 = vmul.f32 %v1455, %v1607
        %v1618 = vmul.f32 %v1456, %v1609
        %v1619 = vmul.f32 %v1457, %v1611
        %v1620 = vsel %vm634, %v1616, 0.0
        %v1621 = vsel %vm634, %v1617, 0.0
        %v1622 = vadd.f32 %v1620, %v1621
        %v1623 = vsel %vm634, %v1618, 0.0
        %v1624 = vadd.f32 %v1622, %v1623
        %v1625 = vsel %vm634, %v1619, 0.0
        %v1626 = vadd.f32 %v1624, %v1625
        %v1627 = vld [vmem:[%s800] sm:$0xff]
        %v1628 = vadd.f32 %v1627, %v1626
        %1629 = vst.msk [vmem:[%s800] sm:$0xff] %vm634, %v1628
        %v1630 = vld [vmem:[%s595 + $0x2] sm:$0xff]
        %v1631 = vld [vmem:[%s595 + $0x12] sm:$0xff]
        %v1632 = vld [vmem:[%s595 + $0x22] sm:$0xff]
        %v1633 = vld [vmem:[%s595 + $0x32] sm:$0xff]
        %v1634 = vmul.f32 %v1454, %v1630
        %v1635 = vmul.f32 %v1455, %v1631
        %v1636 = vmul.f32 %v1456, %v1632
        %v1637 = vmul.f32 %v1457, %v1633
        %v1638 = vsel %vm634, %v1634, 0.0
        %v1639 = vsel %vm634, %v1635, 0.0
        %v1640 = vadd.f32 %v1638, %v1639
        %v1641 = vsel %vm634, %v1636, 0.0
        %v1642 = vadd.f32 %v1640, %v1641
        %v1643 = vsel %vm634, %v1637, 0.0
        %v1644 = vadd.f32 %v1642, %v1643
        %v1645 = vld [vmem:[%s819] sm:$0xff]
        %v1646 = vadd.f32 %v1645, %v1644
        %1647 = vst.msk [vmem:[%s819] sm:$0xff] %vm634, %v1646
        %v1648 = vld [vmem:[%s595 + $0x2] sm:$0xff]
        %v1649 = vld [vmem:[%s595 + $0x12] sm:$0xff]
        %v1650 = vld [vmem:[%s595 + $0x22] sm:$0xff]
        %v1651 = vld [vmem:[%s595 + $0x32] sm:$0xff]
        %1656 = vrot.lane.b32.xlu0 %v1648, 127
        %v1657 = vpop.permute.xlu0 %1656
        %1658 = vrot.lane.b32.xlu0 %v1649, 127
        %v1659 = vpop.permute.xlu0 %1658
        %1660 = vrot.lane.b32.xlu0 %v1650, 127
        %v1661 = vpop.permute.xlu0 %1660
        %1662 = vrot.lane.b32.xlu0 %v1651, 127
        %v1663 = vpop.permute.xlu0 %1662
        %v1668 = vmul.f32 %v1454, %v1657
        %v1669 = vmul.f32 %v1455, %v1659
        %v1670 = vmul.f32 %v1456, %v1661
        %v1671 = vmul.f32 %v1457, %v1663
        %v1672 = vsel %vm634, %v1668, 0.0
        %v1673 = vsel %vm634, %v1669, 0.0
        %v1674 = vadd.f32 %v1672, %v1673
        %v1675 = vsel %vm634, %v1670, 0.0
        %v1676 = vadd.f32 %v1674, %v1675
        %v1677 = vsel %vm634, %v1671, 0.0
        %v1678 = vadd.f32 %v1676, %v1677
        %v1679 = vld [vmem:[%s854] sm:$0xff]
        %v1680 = vadd.f32 %v1679, %v1678
        %1681 = vst.msk [vmem:[%s854] sm:$0xff] %vm634, %v1680
        %v1682 = vld [vmem:[%s595 + $0x2] sm:$0xff]
        %v1683 = vld [vmem:[%s595 + $0x12] sm:$0xff]
        %v1684 = vld [vmem:[%s595 + $0x22] sm:$0xff]
        %v1685 = vld [vmem:[%s595 + $0x32] sm:$0xff]
        %1690 = vrot.lane.b32.xlu0 %v1682, 126
        %v1691 = vpop.permute.xlu0 %1690
        %1692 = vrot.lane.b32.xlu0 %v1683, 126
        %v1693 = vpop.permute.xlu0 %1692
        %1694 = vrot.lane.b32.xlu0 %v1684, 126
        %v1695 = vpop.permute.xlu0 %1694
        %1696 = vrot.lane.b32.xlu0 %v1685, 126
        %v1697 = vpop.permute.xlu0 %1696
        %v1702 = vmul.f32 %v1454, %v1691
        %v1703 = vmul.f32 %v1455, %v1693
        %v1704 = vmul.f32 %v1456, %v1695
        %v1705 = vmul.f32 %v1457, %v1697
        %v1706 = vsel %vm634, %v1702, 0.0
        %v1707 = vsel %vm634, %v1703, 0.0
        %v1708 = vadd.f32 %v1706, %v1707
        %v1709 = vsel %vm634, %v1704, 0.0
        %v1710 = vadd.f32 %v1708, %v1709
        %v1711 = vsel %vm634, %v1705, 0.0
        %v1712 = vadd.f32 %v1710, %v1711
        %v1713 = vld [vmem:[%s889] sm:$0xff]
        %v1714 = vadd.f32 %v1713, %v1712
        %1715 = vst.msk [vmem:[%s889] sm:$0xff] %vm634, %v1714
        %v1716 = vld [vmem:[%s562] sm:$0xff]
        %v1717 = vld [vmem:[%s562 + $0x10] sm:$0xff]
        %v1718 = vld [vmem:[%s562 + $0x20] sm:$0xff]
        %v1719 = vld [vmem:[%s562 + $0x30] sm:$0xff]
        %v1720 = vld [vmem:[%s606] sm:$0xff]
        %v1721 = vld [vmem:[%s606 + $0x10] sm:$0xff]
        %v1722 = vld [vmem:[%s606 + $0x20] sm:$0xff]
        %v1723 = vld [vmem:[%s606 + $0x30] sm:$0xff]
        %v1724 = vmul.f32 %v1716, %v1720
        %v1725 = vmul.f32 %v1717, %v1721
        %v1726 = vmul.f32 %v1718, %v1722
        %v1727 = vmul.f32 %v1719, %v1723
        %v1728 = vsel %vm634, %v1724, 0.0
        %v1729 = vsel %vm634, %v1725, 0.0
        %v1730 = vadd.f32 %v1728, %v1729
        %v1731 = vsel %vm634, %v1726, 0.0
        %v1732 = vadd.f32 %v1730, %v1731
        %v1733 = vsel %vm634, %v1727, 0.0
        %v1734 = vadd.f32 %v1732, %v1733
        %v1735 = vld [vmem:[#allocation2] sm:$0xff]
        %v1736 = vadd.f32 %v1735, %v1734
        %1737 = vst.msk [vmem:[#allocation2] sm:$0xff] %vm634, %v1736
        %v1738 = vld [vmem:[%s606] sm:$0xff]
        %v1739 = vld [vmem:[%s606 + $0x10] sm:$0xff]
        %v1740 = vld [vmem:[%s606 + $0x20] sm:$0xff]
        %v1741 = vld [vmem:[%s606 + $0x30] sm:$0xff]
        %1746 = vrot.lane.b32.xlu0 %v1738, 127
        %v1747 = vpop.permute.xlu0 %1746
        %1748 = vrot.lane.b32.xlu0 %v1739, 127
        %v1749 = vpop.permute.xlu0 %1748
        %1750 = vrot.lane.b32.xlu0 %v1740, 127
        %v1751 = vpop.permute.xlu0 %1750
        %1752 = vrot.lane.b32.xlu0 %v1741, 127
        %v1753 = vpop.permute.xlu0 %1752
        %v1758 = vmul.f32 %v1716, %v1747
        %v1759 = vmul.f32 %v1717, %v1749
        %v1760 = vmul.f32 %v1718, %v1751
        %v1761 = vmul.f32 %v1719, %v1753
        %v1762 = vsel %vm634, %v1758, 0.0
        %v1763 = vsel %vm634, %v1759, 0.0
        %v1764 = vadd.f32 %v1762, %v1763
        %v1765 = vsel %vm634, %v1760, 0.0
        %v1766 = vadd.f32 %v1764, %v1765
        %v1767 = vsel %vm634, %v1761, 0.0
        %v1768 = vadd.f32 %v1766, %v1767
        %v1769 = vld [vmem:[%s676] sm:$0xff]
        %v1770 = vadd.f32 %v1769, %v1768
        %1771 = vst.msk [vmem:[%s676] sm:$0xff] %vm634, %v1770
        %v1772 = vld [vmem:[%s606] sm:$0xff]
        %v1773 = vld [vmem:[%s606 + $0x10] sm:$0xff]
        %v1774 = vld [vmem:[%s606 + $0x20] sm:$0xff]
        %v1775 = vld [vmem:[%s606 + $0x30] sm:$0xff]
        %1780 = vrot.lane.b32.xlu0 %v1772, 126
        %v1781 = vpop.permute.xlu0 %1780
        %1782 = vrot.lane.b32.xlu0 %v1773, 126
        %v1783 = vpop.permute.xlu0 %1782
        %1784 = vrot.lane.b32.xlu0 %v1774, 126
        %v1785 = vpop.permute.xlu0 %1784
        %1786 = vrot.lane.b32.xlu0 %v1775, 126
        %v1787 = vpop.permute.xlu0 %1786
        %v1792 = vmul.f32 %v1716, %v1781
        %v1793 = vmul.f32 %v1717, %v1783
        %v1794 = vmul.f32 %v1718, %v1785
        %v1795 = vmul.f32 %v1719, %v1787
        %v1796 = vsel %vm634, %v1792, 0.0
        %v1797 = vsel %vm634, %v1793, 0.0
        %v1798 = vadd.f32 %v1796, %v1797
        %v1799 = vsel %vm634, %v1794, 0.0
        %v1800 = vadd.f32 %v1798, %v1799
        %v1801 = vsel %vm634, %v1795, 0.0
        %v1802 = vadd.f32 %v1800, %v1801
        %v1803 = vld [vmem:[%s711] sm:$0xff]
        %v1804 = vadd.f32 %v1803, %v1802
        %1805 = vst.msk [vmem:[%s711] sm:$0xff] %vm634, %v1804
        %v1806 = vld [vmem:[%s606 + $0x1] sm:$0xff]
        %v1807 = vld [vmem:[%s606 + $0x11] sm:$0xff]
        %v1808 = vld [vmem:[%s606 + $0x21] sm:$0xff]
        %v1809 = vld [vmem:[%s606 + $0x31] sm:$0xff]
        %v1810 = vmul.f32 %v1716, %v1806
        %v1811 = vmul.f32 %v1717, %v1807
        %v1812 = vmul.f32 %v1718, %v1808
        %v1813 = vmul.f32 %v1719, %v1809
        %v1814 = vsel %vm634, %v1810, 0.0
        %v1815 = vsel %vm634, %v1811, 0.0
        %v1816 = vadd.f32 %v1814, %v1815
        %v1817 = vsel %vm634, %v1812, 0.0
        %v1818 = vadd.f32 %v1816, %v1817
        %v1819 = vsel %vm634, %v1813, 0.0
        %v1820 = vadd.f32 %v1818, %v1819
        %v1821 = vld [vmem:[%s730] sm:$0xff]
        %v1822 = vadd.f32 %v1821, %v1820
        %1823 = vst.msk [vmem:[%s730] sm:$0xff] %vm634, %v1822
        %v1824 = vld [vmem:[%s606 + $0x1] sm:$0xff]
        %v1825 = vld [vmem:[%s606 + $0x11] sm:$0xff]
        %v1826 = vld [vmem:[%s606 + $0x21] sm:$0xff]
        %v1827 = vld [vmem:[%s606 + $0x31] sm:$0xff]
        %1832 = vrot.lane.b32.xlu0 %v1824, 127
        %v1833 = vpop.permute.xlu0 %1832
        %1834 = vrot.lane.b32.xlu0 %v1825, 127
        %v1835 = vpop.permute.xlu0 %1834
        %1836 = vrot.lane.b32.xlu0 %v1826, 127
        %v1837 = vpop.permute.xlu0 %1836
        %1838 = vrot.lane.b32.xlu0 %v1827, 127
        %v1839 = vpop.permute.xlu0 %1838
        %v1844 = vmul.f32 %v1716, %v1833
        %v1845 = vmul.f32 %v1717, %v1835
        %v1846 = vmul.f32 %v1718, %v1837
        %v1847 = vmul.f32 %v1719, %v1839
        %v1848 = vsel %vm634, %v1844, 0.0
        %v1849 = vsel %vm634, %v1845, 0.0
        %v1850 = vadd.f32 %v1848, %v1849
        %v1851 = vsel %vm634, %v1846, 0.0
        %v1852 = vadd.f32 %v1850, %v1851
        %v1853 = vsel %vm634, %v1847, 0.0
        %v1854 = vadd.f32 %v1852, %v1853
        %v1855 = vld [vmem:[%s765] sm:$0xff]
        %v1856 = vadd.f32 %v1855, %v1854
        %1857 = vst.msk [vmem:[%s765] sm:$0xff] %vm634, %v1856
        %v1858 = vld [vmem:[%s606 + $0x1] sm:$0xff]
        %v1859 = vld [vmem:[%s606 + $0x11] sm:$0xff]
        %v1860 = vld [vmem:[%s606 + $0x21] sm:$0xff]
        %v1861 = vld [vmem:[%s606 + $0x31] sm:$0xff]
        %1866 = vrot.lane.b32.xlu0 %v1858, 126
        %v1867 = vpop.permute.xlu0 %1866
        %1868 = vrot.lane.b32.xlu0 %v1859, 126
        %v1869 = vpop.permute.xlu0 %1868
        %1870 = vrot.lane.b32.xlu0 %v1860, 126
        %v1871 = vpop.permute.xlu0 %1870
        %1872 = vrot.lane.b32.xlu0 %v1861, 126
        %v1873 = vpop.permute.xlu0 %1872
        %v1878 = vmul.f32 %v1716, %v1867
        %v1879 = vmul.f32 %v1717, %v1869
        %v1880 = vmul.f32 %v1718, %v1871
        %v1881 = vmul.f32 %v1719, %v1873
        %v1882 = vsel %vm634, %v1878, 0.0
        %v1883 = vsel %vm634, %v1879, 0.0
        %v1884 = vadd.f32 %v1882, %v1883
        %v1885 = vsel %vm634, %v1880, 0.0
        %v1886 = vadd.f32 %v1884, %v1885
        %v1887 = vsel %vm634, %v1881, 0.0
        %v1888 = vadd.f32 %v1886, %v1887
        %v1889 = vld [vmem:[%s800] sm:$0xff]
        %v1890 = vadd.f32 %v1889, %v1888
        %1891 = vst.msk [vmem:[%s800] sm:$0xff] %vm634, %v1890
        %v1892 = vld [vmem:[%s606 + $0x2] sm:$0xff]
        %v1893 = vld [vmem:[%s606 + $0x12] sm:$0xff]
        %v1894 = vld [vmem:[%s606 + $0x22] sm:$0xff]
        %v1895 = vld [vmem:[%s606 + $0x32] sm:$0xff]
        %v1896 = vmul.f32 %v1716, %v1892
        %v1897 = vmul.f32 %v1717, %v1893
        %v1898 = vmul.f32 %v1718, %v1894
        %v1899 = vmul.f32 %v1719, %v1895
        %v1900 = vsel %vm634, %v1896, 0.0
        %v1901 = vsel %vm634, %v1897, 0.0
        %v1902 = vadd.f32 %v1900, %v1901
        %v1903 = vsel %vm634, %v1898, 0.0
        %v1904 = vadd.f32 %v1902, %v1903
        %v1905 = vsel %vm634, %v1899, 0.0
        %v1906 = vadd.f32 %v1904, %v1905
        %v1907 = vld [vmem:[%s819] sm:$0xff]
        %v1908 = vadd.f32 %v1907, %v1906
        %1909 = vst.msk [vmem:[%s819] sm:$0xff] %vm634, %v1908
        %v1910 = vld [vmem:[%s606 + $0x2] sm:$0xff]
        %v1911 = vld [vmem:[%s606 + $0x12] sm:$0xff]
        %v1912 = vld [vmem:[%s606 + $0x22] sm:$0xff]
        %v1913 = vld [vmem:[%s606 + $0x32] sm:$0xff]
        %1918 = vrot.lane.b32.xlu0 %v1910, 127
        %v1919 = vpop.permute.xlu0 %1918
        %1920 = vrot.lane.b32.xlu0 %v1911, 127
        %v1921 = vpop.permute.xlu0 %1920
        %1922 = vrot.lane.b32.xlu0 %v1912, 127
        %v1923 = vpop.permute.xlu0 %1922
        %1924 = vrot.lane.b32.xlu0 %v1913, 127
        %v1925 = vpop.permute.xlu0 %1924
        %v1930 = vmul.f32 %v1716, %v1919
        %v1931 = vmul.f32 %v1717, %v1921
        %v1932 = vmul.f32 %v1718, %v1923
        %v1933 = vmul.f32 %v1719, %v1925
        %v1934 = vsel %vm634, %v1930, 0.0
        %v1935 = vsel %vm634, %v1931, 0.0
        %v1936 = vadd.f32 %v1934, %v1935
        %v1937 = vsel %vm634, %v1932, 0.0
        %v1938 = vadd.f32 %v1936, %v1937
        %v1939 = vsel %vm634, %v1933, 0.0
        %v1940 = vadd.f32 %v1938, %v1939
        %v1941 = vld [vmem:[%s854] sm:$0xff]
        %v1942 = vadd.f32 %v1941, %v1940
        %1943 = vst.msk [vmem:[%s854] sm:$0xff] %vm634, %v1942
        %v1944 = vld [vmem:[%s606 + $0x2] sm:$0xff]
        %v1945 = vld [vmem:[%s606 + $0x12] sm:$0xff]
        %v1946 = vld [vmem:[%s606 + $0x22] sm:$0xff]
        %v1947 = vld [vmem:[%s606 + $0x32] sm:$0xff]
        %1952 = vrot.lane.b32.xlu0 %v1944, 126
        %v1953 = vpop.permute.xlu0 %1952
        %1954 = vrot.lane.b32.xlu0 %v1945, 126
        %v1955 = vpop.permute.xlu0 %1954
        %1956 = vrot.lane.b32.xlu0 %v1946, 126
        %v1957 = vpop.permute.xlu0 %1956
        %1958 = vrot.lane.b32.xlu0 %v1947, 126
        %v1959 = vpop.permute.xlu0 %1958
        %v1964 = vmul.f32 %v1716, %v1953
        %v1965 = vmul.f32 %v1717, %v1955
        %v1966 = vmul.f32 %v1718, %v1957
        %v1967 = vmul.f32 %v1719, %v1959
        %v1968 = vsel %vm634, %v1964, 0.0
        %v1969 = vsel %vm634, %v1965, 0.0
        %v1970 = vadd.f32 %v1968, %v1969
        %v1971 = vsel %vm634, %v1966, 0.0
        %v1972 = vadd.f32 %v1970, %v1971
        %v1973 = vsel %vm634, %v1967, 0.0
        %v1974 = vadd.f32 %v1972, %v1973
        %v1975 = vld [vmem:[%s889] sm:$0xff]
        %v1976 = vadd.f32 %v1975, %v1974
        %1977 = vst.msk [vmem:[%s889] sm:$0xff] %vm634, %v1976
        %v1978 = vld [vmem:[%s551] sm:$0xff]
        %v1979 = vld [vmem:[%s551 + $0x10] sm:$0xff]
        %v1980 = vld [vmem:[%s551 + $0x20] sm:$0xff]
        %v1981 = vld [vmem:[%s551 + $0x30] sm:$0xff]
        %v1982 = vld [vmem:[%s595] sm:$0xff]
        %v1983 = vld [vmem:[%s595 + $0x10] sm:$0xff]
        %v1984 = vld [vmem:[%s595 + $0x20] sm:$0xff]
        %v1985 = vld [vmem:[%s595 + $0x30] sm:$0xff]
        %v1986 = vmul.f32 %v1978, %v1982
        %v1987 = vmul.f32 %v1979, %v1983
        %v1988 = vmul.f32 %v1980, %v1984
        %v1989 = vmul.f32 %v1981, %v1985
        %v1990 = vsel %vm1167, %v1986, 0.0
        %v1991 = vsel %vm1167, %v1987, 0.0
        %v1992 = vadd.f32 %v1990, %v1991
        %v1993 = vsel %vm1167, %v1988, 0.0
        %v1994 = vadd.f32 %v1992, %v1993
        %v1995 = vsel %vm1167, %v1989, 0.0
        %v1996 = vadd.f32 %v1994, %v1995
        %v1997 = vld [vmem:[#allocation2] sm:$0xff]
        %1999 = vrot.lane.b32.xlu0 %v1996, 127
        %v2000 = vpop.permute.xlu0 %1999
        %v2002 = vadd.f32 %v1997, %v2000
        %2003 = vst.msk [vmem:[#allocation2] sm:$0xff] %vm634, %v2002
        %v2004 = vld [vmem:[%s595] sm:$0xff]
        %v2005 = vld [vmem:[%s595 + $0x10] sm:$0xff]
        %v2006 = vld [vmem:[%s595 + $0x20] sm:$0xff]
        %v2007 = vld [vmem:[%s595 + $0x30] sm:$0xff]
        %2012 = vrot.lane.b32.xlu0 %v2004, 127
        %v2013 = vpop.permute.xlu0 %2012
        %2014 = vrot.lane.b32.xlu0 %v2005, 127
        %v2015 = vpop.permute.xlu0 %2014
        %2016 = vrot.lane.b32.xlu0 %v2006, 127
        %v2017 = vpop.permute.xlu0 %2016
        %2018 = vrot.lane.b32.xlu0 %v2007, 127
        %v2019 = vpop.permute.xlu0 %2018
        %v2024 = vmul.f32 %v1978, %v2013
        %v2025 = vmul.f32 %v1979, %v2015
        %v2026 = vmul.f32 %v1980, %v2017
        %v2027 = vmul.f32 %v1981, %v2019
        %v2028 = vsel %vm1167, %v2024, 0.0
        %v2029 = vsel %vm1167, %v2025, 0.0
        %v2030 = vadd.f32 %v2028, %v2029
        %v2031 = vsel %vm1167, %v2026, 0.0
        %v2032 = vadd.f32 %v2030, %v2031
        %v2033 = vsel %vm1167, %v2027, 0.0
        %v2034 = vadd.f32 %v2032, %v2033
        %v2035 = vld [vmem:[%s676] sm:$0xff]
        %2037 = vrot.lane.b32.xlu0 %v2034, 127
        %v2038 = vpop.permute.xlu0 %2037
        %v2040 = vadd.f32 %v2035, %v2038
        %2041 = vst.msk [vmem:[%s676] sm:$0xff] %vm634, %v2040
        %v2042 = vld [vmem:[%s595] sm:$0xff]
        %v2043 = vld [vmem:[%s595 + $0x10] sm:$0xff]
        %v2044 = vld [vmem:[%s595 + $0x20] sm:$0xff]
        %v2045 = vld [vmem:[%s595 + $0x30] sm:$0xff]
        %2050 = vrot.lane.b32.xlu0 %v2042, 126
        %v2051 = vpop.permute.xlu0 %2050
        %2052 = vrot.lane.b32.xlu0 %v2043, 126
        %v2053 = vpop.permute.xlu0 %2052
        %2054 = vrot.lane.b32.xlu0 %v2044, 126
        %v2055 = vpop.permute.xlu0 %2054
        %2056 = vrot.lane.b32.xlu0 %v2045, 126
        %v2057 = vpop.permute.xlu0 %2056
        %v2062 = vmul.f32 %v1978, %v2051
        %v2063 = vmul.f32 %v1979, %v2053
        %v2064 = vmul.f32 %v1980, %v2055
        %v2065 = vmul.f32 %v1981, %v2057
        %v2066 = vsel %vm1167, %v2062, 0.0
        %v2067 = vsel %vm1167, %v2063, 0.0
        %v2068 = vadd.f32 %v2066, %v2067
        %v2069 = vsel %vm1167, %v2064, 0.0
        %v2070 = vadd.f32 %v2068, %v2069
        %v2071 = vsel %vm1167, %v2065, 0.0
        %v2072 = vadd.f32 %v2070, %v2071
        %v2073 = vld [vmem:[%s711] sm:$0xff]
        %2075 = vrot.lane.b32.xlu0 %v2072, 127
        %v2076 = vpop.permute.xlu0 %2075
        %v2078 = vadd.f32 %v2073, %v2076
        %2079 = vst.msk [vmem:[%s711] sm:$0xff] %vm634, %v2078
        %v2080 = vld [vmem:[%s595 + $0x1] sm:$0xff]
        %v2081 = vld [vmem:[%s595 + $0x11] sm:$0xff]
        %v2082 = vld [vmem:[%s595 + $0x21] sm:$0xff]
        %v2083 = vld [vmem:[%s595 + $0x31] sm:$0xff]
        %v2084 = vmul.f32 %v1978, %v2080
        %v2085 = vmul.f32 %v1979, %v2081
        %v2086 = vmul.f32 %v1980, %v2082
        %v2087 = vmul.f32 %v1981, %v2083
        %v2088 = vsel %vm1167, %v2084, 0.0
        %v2089 = vsel %vm1167, %v2085, 0.0
        %v2090 = vadd.f32 %v2088, %v2089
        %v2091 = vsel %vm1167, %v2086, 0.0
        %v2092 = vadd.f32 %v2090, %v2091
        %v2093 = vsel %vm1167, %v2087, 0.0
        %v2094 = vadd.f32 %v2092, %v2093
        %v2095 = vld [vmem:[%s730] sm:$0xff]
        %2097 = vrot.lane.b32.xlu0 %v2094, 127
        %v2098 = vpop.permute.xlu0 %2097
        %v2100 = vadd.f32 %v2095, %v2098
        %2101 = vst.msk [vmem:[%s730] sm:$0xff] %vm634, %v2100
        %v2102 = vld [vmem:[%s595 + $0x1] sm:$0xff]
        %v2103 = vld [vmem:[%s595 + $0x11] sm:$0xff]
        %v2104 = vld [vmem:[%s595 + $0x21] sm:$0xff]
        %v2105 = vld [vmem:[%s595 + $0x31] sm:$0xff]
        %2110 = vrot.lane.b32.xlu0 %v2102, 127
        %v2111 = vpop.permute.xlu0 %2110
        %2112 = vrot.lane.b32.xlu0 %v2103, 127
        %v2113 = vpop.permute.xlu0 %2112
        %2114 = vrot.lane.b32.xlu0 %v2104, 127
        %v2115 = vpop.permute.xlu0 %2114
        %2116 = vrot.lane.b32.xlu0 %v2105, 127
        %v2117 = vpop.permute.xlu0 %2116
        %v2122 = vmul.f32 %v1978, %v2111
        %v2123 = vmul.f32 %v1979, %v2113
        %v2124 = vmul.f32 %v1980, %v2115
        %v2125 = vmul.f32 %v1981, %v2117
        %v2126 = vsel %vm1167, %v2122, 0.0
        %v2127 = vsel %vm1167, %v2123, 0.0
        %v2128 = vadd.f32 %v2126, %v2127
        %v2129 = vsel %vm1167, %v2124, 0.0
        %v2130 = vadd.f32 %v2128, %v2129
        %v2131 = vsel %vm1167, %v2125, 0.0
        %v2132 = vadd.f32 %v2130, %v2131
        %v2133 = vld [vmem:[%s765] sm:$0xff]
        %2135 = vrot.lane.b32.xlu0 %v2132, 127
        %v2136 = vpop.permute.xlu0 %2135
        %v2138 = vadd.f32 %v2133, %v2136
        %2139 = vst.msk [vmem:[%s765] sm:$0xff] %vm634, %v2138
        %v2140 = vld [vmem:[%s595 + $0x1] sm:$0xff]
        %v2141 = vld [vmem:[%s595 + $0x11] sm:$0xff]
        %v2142 = vld [vmem:[%s595 + $0x21] sm:$0xff]
        %v2143 = vld [vmem:[%s595 + $0x31] sm:$0xff]
        %2148 = vrot.lane.b32.xlu0 %v2140, 126
        %v2149 = vpop.permute.xlu0 %2148
        %2150 = vrot.lane.b32.xlu0 %v2141, 126
        %v2151 = vpop.permute.xlu0 %2150
        %2152 = vrot.lane.b32.xlu0 %v2142, 126
        %v2153 = vpop.permute.xlu0 %2152
        %2154 = vrot.lane.b32.xlu0 %v2143, 126
        %v2155 = vpop.permute.xlu0 %2154
        %v2160 = vmul.f32 %v1978, %v2149
        %v2161 = vmul.f32 %v1979, %v2151
        %v2162 = vmul.f32 %v1980, %v2153
        %v2163 = vmul.f32 %v1981, %v2155
        %v2164 = vsel %vm1167, %v2160, 0.0
        %v2165 = vsel %vm1167, %v2161, 0.0
        %v2166 = vadd.f32 %v2164, %v2165
        %v2167 = vsel %vm1167, %v2162, 0.0
        %v2168 = vadd.f32 %v2166, %v2167
        %v2169 = vsel %vm1167, %v2163, 0.0
        %v2170 = vadd.f32 %v2168, %v2169
        %v2171 = vld [vmem:[%s800] sm:$0xff]
        %2173 = vrot.lane.b32.xlu0 %v2170, 127
        %v2174 = vpop.permute.xlu0 %2173
        %v2176 = vadd.f32 %v2171, %v2174
        %2177 = vst.msk [vmem:[%s800] sm:$0xff] %vm634, %v2176
        %v2178 = vld [vmem:[%s595 + $0x2] sm:$0xff]
        %v2179 = vld [vmem:[%s595 + $0x12] sm:$0xff]
        %v2180 = vld [vmem:[%s595 + $0x22] sm:$0xff]
        %v2181 = vld [vmem:[%s595 + $0x32] sm:$0xff]
        %v2182 = vmul.f32 %v1978, %v2178
        %v2183 = vmul.f32 %v1979, %v2179
        %v2184 = vmul.f32 %v1980, %v2180
        %v2185 = vmul.f32 %v1981, %v2181
        %v2186 = vsel %vm1167, %v2182, 0.0
        %v2187 = vsel %vm1167, %v2183, 0.0
        %v2188 = vadd.f32 %v2186, %v2187
        %v2189 = vsel %vm1167, %v2184, 0.0
        %v2190 = vadd.f32 %v2188, %v2189
        %v2191 = vsel %vm1167, %v2185, 0.0
        %v2192 = vadd.f32 %v2190, %v2191
        %v2193 = vld [vmem:[%s819] sm:$0xff]
        %2195 = vrot.lane.b32.xlu0 %v2192, 127
        %v2196 = vpop.permute.xlu0 %2195
        %v2198 = vadd.f32 %v2193, %v2196
        %2199 = vst.msk [vmem:[%s819] sm:$0xff] %vm634, %v2198
        %v2200 = vld [vmem:[%s595 + $0x2] sm:$0xff]
        %v2201 = vld [vmem:[%s595 + $0x12] sm:$0xff]
        %v2202 = vld [vmem:[%s595 + $0x22] sm:$0xff]
        %v2203 = vld [vmem:[%s595 + $0x32] sm:$0xff]
        %2208 = vrot.lane.b32.xlu0 %v2200, 127
        %v2209 = vpop.permute.xlu0 %2208
        %2210 = vrot.lane.b32.xlu0 %v2201, 127
        %v2211 = vpop.permute.xlu0 %2210
        %2212 = vrot.lane.b32.xlu0 %v2202, 127
        %v2213 = vpop.permute.xlu0 %2212
        %2214 = vrot.lane.b32.xlu0 %v2203, 127
        %v2215 = vpop.permute.xlu0 %2214
        %v2220 = vmul.f32 %v1978, %v2209
        %v2221 = vmul.f32 %v1979, %v2211
        %v2222 = vmul.f32 %v1980, %v2213
        %v2223 = vmul.f32 %v1981, %v2215
        %v2224 = vsel %vm1167, %v2220, 0.0
        %v2225 = vsel %vm1167, %v2221, 0.0
        %v2226 = vadd.f32 %v2224, %v2225
        %v2227 = vsel %vm1167, %v2222, 0.0
        %v2228 = vadd.f32 %v2226, %v2227
        %v2229 = vsel %vm1167, %v2223, 0.0
        %v2230 = vadd.f32 %v2228, %v2229
        %v2231 = vld [vmem:[%s854] sm:$0xff]
        %2233 = vrot.lane.b32.xlu0 %v2230, 127
        %v2234 = vpop.permute.xlu0 %2233
        %v2236 = vadd.f32 %v2231, %v2234
        %2237 = vst.msk [vmem:[%s854] sm:$0xff] %vm634, %v2236
        %v2238 = vld [vmem:[%s595 + $0x2] sm:$0xff]
        %v2239 = vld [vmem:[%s595 + $0x12] sm:$0xff]
        %v2240 = vld [vmem:[%s595 + $0x22] sm:$0xff]
        %v2241 = vld [vmem:[%s595 + $0x32] sm:$0xff]
        %2246 = vrot.lane.b32.xlu0 %v2238, 126
        %v2247 = vpop.permute.xlu0 %2246
        %2248 = vrot.lane.b32.xlu0 %v2239, 126
        %v2249 = vpop.permute.xlu0 %2248
        %2250 = vrot.lane.b32.xlu0 %v2240, 126
        %v2251 = vpop.permute.xlu0 %2250
        %2252 = vrot.lane.b32.xlu0 %v2241, 126
        %v2253 = vpop.permute.xlu0 %2252
        %v2258 = vmul.f32 %v1978, %v2247
        %v2259 = vmul.f32 %v1979, %v2249
        %v2260 = vmul.f32 %v1980, %v2251
        %v2261 = vmul.f32 %v1981, %v2253
        %v2262 = vsel %vm1167, %v2258, 0.0
        %v2263 = vsel %vm1167, %v2259, 0.0
        %v2264 = vadd.f32 %v2262, %v2263
        %v2265 = vsel %vm1167, %v2260, 0.0
        %v2266 = vadd.f32 %v2264, %v2265
        %v2267 = vsel %vm1167, %v2261, 0.0
        %v2268 = vadd.f32 %v2266, %v2267
        %v2269 = vld [vmem:[%s889] sm:$0xff]
        %2271 = vrot.lane.b32.xlu0 %v2268, 127
        %v2272 = vpop.permute.xlu0 %2271
        %v2274 = vadd.f32 %v2269, %v2272
        %2275 = vst.msk [vmem:[%s889] sm:$0xff] %vm634, %v2274
        %v2276 = vld [vmem:[%s529 + $0x1] sm:$0xff]
        %v2277 = vld [vmem:[%s529 + $0x11] sm:$0xff]
        %v2278 = vld [vmem:[%s529 + $0x21] sm:$0xff]
        %v2279 = vld [vmem:[%s529 + $0x31] sm:$0xff]
        %v2280 = vld [vmem:[%s573 + $0x1] sm:$0xff]
        %v2281 = vld [vmem:[%s573 + $0x11] sm:$0xff]
        %v2282 = vld [vmem:[%s573 + $0x21] sm:$0xff]
        %v2283 = vld [vmem:[%s573 + $0x31] sm:$0xff]
        %v2284 = vmul.f32 %v2276, %v2280
        %v2285 = vmul.f32 %v2277, %v2281
        %v2286 = vmul.f32 %v2278, %v2282
        %v2287 = vmul.f32 %v2279, %v2283
        %v2288 = vsel %vm634, %v2284, 0.0
        %v2289 = vsel %vm634, %v2285, 0.0
        %v2290 = vadd.f32 %v2288, %v2289
        %v2291 = vsel %vm634, %v2286, 0.0
        %v2292 = vadd.f32 %v2290, %v2291
        %v2293 = vsel %vm634, %v2287, 0.0
        %v2294 = vadd.f32 %v2292, %v2293
        %v2295 = vld [vmem:[#allocation2] sm:$0xff]
        %v2296 = vadd.f32 %v2295, %v2294
        %2297 = vst.msk [vmem:[#allocation2] sm:$0xff] %vm634, %v2296
        %v2298 = vld [vmem:[%s573 + $0x1] sm:$0xff]
        %v2299 = vld [vmem:[%s573 + $0x11] sm:$0xff]
        %v2300 = vld [vmem:[%s573 + $0x21] sm:$0xff]
        %v2301 = vld [vmem:[%s573 + $0x31] sm:$0xff]
        %2306 = vrot.lane.b32.xlu0 %v2298, 127
        %v2307 = vpop.permute.xlu0 %2306
        %2308 = vrot.lane.b32.xlu0 %v2299, 127
        %v2309 = vpop.permute.xlu0 %2308
        %2310 = vrot.lane.b32.xlu0 %v2300, 127
        %v2311 = vpop.permute.xlu0 %2310
        %2312 = vrot.lane.b32.xlu0 %v2301, 127
        %v2313 = vpop.permute.xlu0 %2312
        %v2318 = vmul.f32 %v2276, %v2307
        %v2319 = vmul.f32 %v2277, %v2309
        %v2320 = vmul.f32 %v2278, %v2311
        %v2321 = vmul.f32 %v2279, %v2313
        %v2322 = vsel %vm634, %v2318, 0.0
        %v2323 = vsel %vm634, %v2319, 0.0
        %v2324 = vadd.f32 %v2322, %v2323
        %v2325 = vsel %vm634, %v2320, 0.0
        %v2326 = vadd.f32 %v2324, %v2325
        %v2327 = vsel %vm634, %v2321, 0.0
        %v2328 = vadd.f32 %v2326, %v2327
        %v2329 = vld [vmem:[%s676] sm:$0xff]
        %v2330 = vadd.f32 %v2329, %v2328
        %2331 = vst.msk [vmem:[%s676] sm:$0xff] %vm634, %v2330
        %v2332 = vld [vmem:[%s573 + $0x1] sm:$0xff]
        %v2333 = vld [vmem:[%s573 + $0x11] sm:$0xff]
        %v2334 = vld [vmem:[%s573 + $0x21] sm:$0xff]
        %v2335 = vld [vmem:[%s573 + $0x31] sm:$0xff]
        %2340 = vrot.lane.b32.xlu0 %v2332, 126
        %v2341 = vpop.permute.xlu0 %2340
        %2342 = vrot.lane.b32.xlu0 %v2333, 126
        %v2343 = vpop.permute.xlu0 %2342
        %2344 = vrot.lane.b32.xlu0 %v2334, 126
        %v2345 = vpop.permute.xlu0 %2344
        %2346 = vrot.lane.b32.xlu0 %v2335, 126
        %v2347 = vpop.permute.xlu0 %2346
        %v2352 = vmul.f32 %v2276, %v2341
        %v2353 = vmul.f32 %v2277, %v2343
        %v2354 = vmul.f32 %v2278, %v2345
        %v2355 = vmul.f32 %v2279, %v2347
        %v2356 = vsel %vm634, %v2352, 0.0
        %v2357 = vsel %vm634, %v2353, 0.0
        %v2358 = vadd.f32 %v2356, %v2357
        %v2359 = vsel %vm634, %v2354, 0.0
        %v2360 = vadd.f32 %v2358, %v2359
        %v2361 = vsel %vm634, %v2355, 0.0
        %v2362 = vadd.f32 %v2360, %v2361
        %v2363 = vld [vmem:[%s711] sm:$0xff]
        %v2364 = vadd.f32 %v2363, %v2362
        %2365 = vst.msk [vmem:[%s711] sm:$0xff] %vm634, %v2364
        %v2366 = vld [vmem:[%s573 + $0x2] sm:$0xff]
        %v2367 = vld [vmem:[%s573 + $0x12] sm:$0xff]
        %v2368 = vld [vmem:[%s573 + $0x22] sm:$0xff]
        %v2369 = vld [vmem:[%s573 + $0x32] sm:$0xff]
        %v2370 = vmul.f32 %v2276, %v2366
        %v2371 = vmul.f32 %v2277, %v2367
        %v2372 = vmul.f32 %v2278, %v2368
        %v2373 = vmul.f32 %v2279, %v2369
        %v2374 = vsel %vm634, %v2370, 0.0
        %v2375 = vsel %vm634, %v2371, 0.0
        %v2376 = vadd.f32 %v2374, %v2375
        %v2377 = vsel %vm634, %v2372, 0.0
        %v2378 = vadd.f32 %v2376, %v2377
        %v2379 = vsel %vm634, %v2373, 0.0
        %v2380 = vadd.f32 %v2378, %v2379
        %v2381 = vld [vmem:[%s730] sm:$0xff]
        %v2382 = vadd.f32 %v2381, %v2380
        %2383 = vst.msk [vmem:[%s730] sm:$0xff] %vm634, %v2382
        %v2384 = vld [vmem:[%s573 + $0x2] sm:$0xff]
        %v2385 = vld [vmem:[%s573 + $0x12] sm:$0xff]
        %v2386 = vld [vmem:[%s573 + $0x22] sm:$0xff]
        %v2387 = vld [vmem:[%s573 + $0x32] sm:$0xff]
        %2392 = vrot.lane.b32.xlu0 %v2384, 127
        %v2393 = vpop.permute.xlu0 %2392
        %2394 = vrot.lane.b32.xlu0 %v2385, 127
        %v2395 = vpop.permute.xlu0 %2394
        %2396 = vrot.lane.b32.xlu0 %v2386, 127
        %v2397 = vpop.permute.xlu0 %2396
        %2398 = vrot.lane.b32.xlu0 %v2387, 127
        %v2399 = vpop.permute.xlu0 %2398
        %v2404 = vmul.f32 %v2276, %v2393
        %v2405 = vmul.f32 %v2277, %v2395
        %v2406 = vmul.f32 %v2278, %v2397
        %v2407 = vmul.f32 %v2279, %v2399
        %v2408 = vsel %vm634, %v2404, 0.0
        %v2409 = vsel %vm634, %v2405, 0.0
        %v2410 = vadd.f32 %v2408, %v2409
        %v2411 = vsel %vm634, %v2406, 0.0
        %v2412 = vadd.f32 %v2410, %v2411
        %v2413 = vsel %vm634, %v2407, 0.0
        %v2414 = vadd.f32 %v2412, %v2413
        %v2415 = vld [vmem:[%s765] sm:$0xff]
        %v2416 = vadd.f32 %v2415, %v2414
        %2417 = vst.msk [vmem:[%s765] sm:$0xff] %vm634, %v2416
        %v2418 = vld [vmem:[%s573 + $0x2] sm:$0xff]
        %v2419 = vld [vmem:[%s573 + $0x12] sm:$0xff]
        %v2420 = vld [vmem:[%s573 + $0x22] sm:$0xff]
        %v2421 = vld [vmem:[%s573 + $0x32] sm:$0xff]
        %2426 = vrot.lane.b32.xlu0 %v2418, 126
        %v2427 = vpop.permute.xlu0 %2426
        %2428 = vrot.lane.b32.xlu0 %v2419, 126
        %v2429 = vpop.permute.xlu0 %2428
        %2430 = vrot.lane.b32.xlu0 %v2420, 126
        %v2431 = vpop.permute.xlu0 %2430
        %2432 = vrot.lane.b32.xlu0 %v2421, 126
        %v2433 = vpop.permute.xlu0 %2432
        %v2438 = vmul.f32 %v2276, %v2427
        %v2439 = vmul.f32 %v2277, %v2429
        %v2440 = vmul.f32 %v2278, %v2431
        %v2441 = vmul.f32 %v2279, %v2433
        %v2442 = vsel %vm634, %v2438, 0.0
        %v2443 = vsel %vm634, %v2439, 0.0
        %v2444 = vadd.f32 %v2442, %v2443
        %v2445 = vsel %vm634, %v2440, 0.0
        %v2446 = vadd.f32 %v2444, %v2445
        %v2447 = vsel %vm634, %v2441, 0.0
        %v2448 = vadd.f32 %v2446, %v2447
        %v2449 = vld [vmem:[%s800] sm:$0xff]
        %v2450 = vadd.f32 %v2449, %v2448
        %2451 = vst.msk [vmem:[%s800] sm:$0xff] %vm634, %v2450
        %v2452 = vld [vmem:[%s573 + $0x3] sm:$0xff]
        %v2453 = vld [vmem:[%s573 + $0x13] sm:$0xff]
        %v2454 = vld [vmem:[%s573 + $0x23] sm:$0xff]
        %v2455 = vld [vmem:[%s573 + $0x33] sm:$0xff]
        %v2456 = vmul.f32 %v2276, %v2452
        %v2457 = vmul.f32 %v2277, %v2453
        %v2458 = vmul.f32 %v2278, %v2454
        %v2459 = vmul.f32 %v2279, %v2455
        %v2460 = vsel %vm634, %v2456, 0.0
        %v2461 = vsel %vm634, %v2457, 0.0
        %v2462 = vadd.f32 %v2460, %v2461
        %v2463 = vsel %vm634, %v2458, 0.0
        %v2464 = vadd.f32 %v2462, %v2463
        %v2465 = vsel %vm634, %v2459, 0.0
        %v2466 = vadd.f32 %v2464, %v2465
        %v2467 = vld [vmem:[%s819] sm:$0xff]
        %v2468 = vadd.f32 %v2467, %v2466
        %2469 = vst.msk [vmem:[%s819] sm:$0xff] %vm634, %v2468
        %v2470 = vld [vmem:[%s573 + $0x3] sm:$0xff]
        %v2471 = vld [vmem:[%s573 + $0x13] sm:$0xff]
        %v2472 = vld [vmem:[%s573 + $0x23] sm:$0xff]
        %v2473 = vld [vmem:[%s573 + $0x33] sm:$0xff]
        %2478 = vrot.lane.b32.xlu0 %v2470, 127
        %v2479 = vpop.permute.xlu0 %2478
        %2480 = vrot.lane.b32.xlu0 %v2471, 127
        %v2481 = vpop.permute.xlu0 %2480
        %2482 = vrot.lane.b32.xlu0 %v2472, 127
        %v2483 = vpop.permute.xlu0 %2482
        %2484 = vrot.lane.b32.xlu0 %v2473, 127
        %v2485 = vpop.permute.xlu0 %2484
        %v2490 = vmul.f32 %v2276, %v2479
        %v2491 = vmul.f32 %v2277, %v2481
        %v2492 = vmul.f32 %v2278, %v2483
        %v2493 = vmul.f32 %v2279, %v2485
        %v2494 = vsel %vm634, %v2490, 0.0
        %v2495 = vsel %vm634, %v2491, 0.0
        %v2496 = vadd.f32 %v2494, %v2495
        %v2497 = vsel %vm634, %v2492, 0.0
        %v2498 = vadd.f32 %v2496, %v2497
        %v2499 = vsel %vm634, %v2493, 0.0
        %v2500 = vadd.f32 %v2498, %v2499
        %v2501 = vld [vmem:[%s854] sm:$0xff]
        %v2502 = vadd.f32 %v2501, %v2500
        %2503 = vst.msk [vmem:[%s854] sm:$0xff] %vm634, %v2502
        %v2504 = vld [vmem:[%s573 + $0x3] sm:$0xff]
        %v2505 = vld [vmem:[%s573 + $0x13] sm:$0xff]
        %v2506 = vld [vmem:[%s573 + $0x23] sm:$0xff]
        %v2507 = vld [vmem:[%s573 + $0x33] sm:$0xff]
        %2512 = vrot.lane.b32.xlu0 %v2504, 126
        %v2513 = vpop.permute.xlu0 %2512
        %2514 = vrot.lane.b32.xlu0 %v2505, 126
        %v2515 = vpop.permute.xlu0 %2514
        %2516 = vrot.lane.b32.xlu0 %v2506, 126
        %v2517 = vpop.permute.xlu0 %2516
        %2518 = vrot.lane.b32.xlu0 %v2507, 126
        %v2519 = vpop.permute.xlu0 %2518
        %v2524 = vmul.f32 %v2276, %v2513
        %v2525 = vmul.f32 %v2277, %v2515
        %v2526 = vmul.f32 %v2278, %v2517
        %v2527 = vmul.f32 %v2279, %v2519
        %v2528 = vsel %vm634, %v2524, 0.0
        %v2529 = vsel %vm634, %v2525, 0.0
        %v2530 = vadd.f32 %v2528, %v2529
        %v2531 = vsel %vm634, %v2526, 0.0
        %v2532 = vadd.f32 %v2530, %v2531
        %v2533 = vsel %vm634, %v2527, 0.0
        %v2534 = vadd.f32 %v2532, %v2533
        %v2535 = vld [vmem:[%s889] sm:$0xff]
        %v2536 = vadd.f32 %v2535, %v2534
        %2537 = vst.msk [vmem:[%s889] sm:$0xff] %vm634, %v2536
        %v2538 = vld [vmem:[%s540 + $0x1] sm:$0xff]
        %v2539 = vld [vmem:[%s540 + $0x11] sm:$0xff]
        %v2540 = vld [vmem:[%s540 + $0x21] sm:$0xff]
        %v2541 = vld [vmem:[%s540 + $0x31] sm:$0xff]
        %v2542 = vld [vmem:[%s584 + $0x1] sm:$0xff]
        %v2543 = vld [vmem:[%s584 + $0x11] sm:$0xff]
        %v2544 = vld [vmem:[%s584 + $0x21] sm:$0xff]
        %v2545 = vld [vmem:[%s584 + $0x31] sm:$0xff]
        %v2546 = vmul.f32 %v2538, %v2542
        %v2547 = vmul.f32 %v2539, %v2543
        %v2548 = vmul.f32 %v2540, %v2544
        %v2549 = vmul.f32 %v2541, %v2545
        %v2550 = vsel %vm634, %v2546, 0.0
        %v2551 = vsel %vm634, %v2547, 0.0
        %v2552 = vadd.f32 %v2550, %v2551
        %v2553 = vsel %vm634, %v2548, 0.0
        %v2554 = vadd.f32 %v2552, %v2553
        %v2555 = vsel %vm634, %v2549, 0.0
        %v2556 = vadd.f32 %v2554, %v2555
        %v2557 = vld [vmem:[#allocation2] sm:$0xff]
        %v2558 = vadd.f32 %v2557, %v2556
        %2559 = vst.msk [vmem:[#allocation2] sm:$0xff] %vm634, %v2558
        %v2560 = vld [vmem:[%s584 + $0x1] sm:$0xff]
        %v2561 = vld [vmem:[%s584 + $0x11] sm:$0xff]
        %v2562 = vld [vmem:[%s584 + $0x21] sm:$0xff]
        %v2563 = vld [vmem:[%s584 + $0x31] sm:$0xff]
        %2568 = vrot.lane.b32.xlu0 %v2560, 127
        %v2569 = vpop.permute.xlu0 %2568
        %2570 = vrot.lane.b32.xlu0 %v2561, 127
        %v2571 = vpop.permute.xlu0 %2570
        %2572 = vrot.lane.b32.xlu0 %v2562, 127
        %v2573 = vpop.permute.xlu0 %2572
        %2574 = vrot.lane.b32.xlu0 %v2563, 127
        %v2575 = vpop.permute.xlu0 %2574
        %v2580 = vmul.f32 %v2538, %v2569
        %v2581 = vmul.f32 %v2539, %v2571
        %v2582 = vmul.f32 %v2540, %v2573
        %v2583 = vmul.f32 %v2541, %v2575
        %v2584 = vsel %vm634, %v2580, 0.0
        %v2585 = vsel %vm634, %v2581, 0.0
        %v2586 = vadd.f32 %v2584, %v2585
        %v2587 = vsel %vm634, %v2582, 0.0
        %v2588 = vadd.f32 %v2586, %v2587
        %v2589 = vsel %vm634, %v2583, 0.0
        %v2590 = vadd.f32 %v2588, %v2589
        %v2591 = vld [vmem:[%s676] sm:$0xff]
        %v2592 = vadd.f32 %v2591, %v2590
        %2593 = vst.msk [vmem:[%s676] sm:$0xff] %vm634, %v2592
        %v2594 = vld [vmem:[%s584 + $0x1] sm:$0xff]
        %v2595 = vld [vmem:[%s584 + $0x11] sm:$0xff]
        %v2596 = vld [vmem:[%s584 + $0x21] sm:$0xff]
        %v2597 = vld [vmem:[%s584 + $0x31] sm:$0xff]
        %2602 = vrot.lane.b32.xlu0 %v2594, 126
        %v2603 = vpop.permute.xlu0 %2602
        %2604 = vrot.lane.b32.xlu0 %v2595, 126
        %v2605 = vpop.permute.xlu0 %2604
        %2606 = vrot.lane.b32.xlu0 %v2596, 126
        %v2607 = vpop.permute.xlu0 %2606
        %2608 = vrot.lane.b32.xlu0 %v2597, 126
        %v2609 = vpop.permute.xlu0 %2608
        %v2614 = vmul.f32 %v2538, %v2603
        %v2615 = vmul.f32 %v2539, %v2605
        %v2616 = vmul.f32 %v2540, %v2607
        %v2617 = vmul.f32 %v2541, %v2609
        %v2618 = vsel %vm634, %v2614, 0.0
        %v2619 = vsel %vm634, %v2615, 0.0
        %v2620 = vadd.f32 %v2618, %v2619
        %v2621 = vsel %vm634, %v2616, 0.0
        %v2622 = vadd.f32 %v2620, %v2621
        %v2623 = vsel %vm634, %v2617, 0.0
        %v2624 = vadd.f32 %v2622, %v2623
        %v2625 = vld [vmem:[%s711] sm:$0xff]
        %v2626 = vadd.f32 %v2625, %v2624
        %2627 = vst.msk [vmem:[%s711] sm:$0xff] %vm634, %v2626
        %v2628 = vld [vmem:[%s584 + $0x2] sm:$0xff]
        %v2629 = vld [vmem:[%s584 + $0x12] sm:$0xff]
        %v2630 = vld [vmem:[%s584 + $0x22] sm:$0xff]
        %v2631 = vld [vmem:[%s584 + $0x32] sm:$0xff]
        %v2632 = vmul.f32 %v2538, %v2628
        %v2633 = vmul.f32 %v2539, %v2629
        %v2634 = vmul.f32 %v2540, %v2630
        %v2635 = vmul.f32 %v2541, %v2631
        %v2636 = vsel %vm634, %v2632, 0.0
        %v2637 = vsel %vm634, %v2633, 0.0
        %v2638 = vadd.f32 %v2636, %v2637
        %v2639 = vsel %vm634, %v2634, 0.0
        %v2640 = vadd.f32 %v2638, %v2639
        %v2641 = vsel %vm634, %v2635, 0.0
        %v2642 = vadd.f32 %v2640, %v2641
        %v2643 = vld [vmem:[%s730] sm:$0xff]
        %v2644 = vadd.f32 %v2643, %v2642
        %2645 = vst.msk [vmem:[%s730] sm:$0xff] %vm634, %v2644
        %v2646 = vld [vmem:[%s584 + $0x2] sm:$0xff]
        %v2647 = vld [vmem:[%s584 + $0x12] sm:$0xff]
        %v2648 = vld [vmem:[%s584 + $0x22] sm:$0xff]
        %v2649 = vld [vmem:[%s584 + $0x32] sm:$0xff]
        %2654 = vrot.lane.b32.xlu0 %v2646, 127
        %v2655 = vpop.permute.xlu0 %2654
        %2656 = vrot.lane.b32.xlu0 %v2647, 127
        %v2657 = vpop.permute.xlu0 %2656
        %2658 = vrot.lane.b32.xlu0 %v2648, 127
        %v2659 = vpop.permute.xlu0 %2658
        %2660 = vrot.lane.b32.xlu0 %v2649, 127
        %v2661 = vpop.permute.xlu0 %2660
        %v2666 = vmul.f32 %v2538, %v2655
        %v2667 = vmul.f32 %v2539, %v2657
        %v2668 = vmul.f32 %v2540, %v2659
        %v2669 = vmul.f32 %v2541, %v2661
        %v2670 = vsel %vm634, %v2666, 0.0
        %v2671 = vsel %vm634, %v2667, 0.0
        %v2672 = vadd.f32 %v2670, %v2671
        %v2673 = vsel %vm634, %v2668, 0.0
        %v2674 = vadd.f32 %v2672, %v2673
        %v2675 = vsel %vm634, %v2669, 0.0
        %v2676 = vadd.f32 %v2674, %v2675
        %v2677 = vld [vmem:[%s765] sm:$0xff]
        %v2678 = vadd.f32 %v2677, %v2676
        %2679 = vst.msk [vmem:[%s765] sm:$0xff] %vm634, %v2678
        %v2680 = vld [vmem:[%s584 + $0x2] sm:$0xff]
        %v2681 = vld [vmem:[%s584 + $0x12] sm:$0xff]
        %v2682 = vld [vmem:[%s584 + $0x22] sm:$0xff]
        %v2683 = vld [vmem:[%s584 + $0x32] sm:$0xff]
        %2688 = vrot.lane.b32.xlu0 %v2680, 126
        %v2689 = vpop.permute.xlu0 %2688
        %2690 = vrot.lane.b32.xlu0 %v2681, 126
        %v2691 = vpop.permute.xlu0 %2690
        %2692 = vrot.lane.b32.xlu0 %v2682, 126
        %v2693 = vpop.permute.xlu0 %2692
        %2694 = vrot.lane.b32.xlu0 %v2683, 126
        %v2695 = vpop.permute.xlu0 %2694
        %v2700 = vmul.f32 %v2538, %v2689
        %v2701 = vmul.f32 %v2539, %v2691
        %v2702 = vmul.f32 %v2540, %v2693
        %v2703 = vmul.f32 %v2541, %v2695
        %v2704 = vsel %vm634, %v2700, 0.0
        %v2705 = vsel %vm634, %v2701, 0.0
        %v2706 = vadd.f32 %v2704, %v2705
        %v2707 = vsel %vm634, %v2702, 0.0
        %v2708 = vadd.f32 %v2706, %v2707
        %v2709 = vsel %vm634, %v2703, 0.0
        %v2710 = vadd.f32 %v2708, %v2709
        %v2711 = vld [vmem:[%s800] sm:$0xff]
        %v2712 = vadd.f32 %v2711, %v2710
        %2713 = vst.msk [vmem:[%s800] sm:$0xff] %vm634, %v2712
        %v2714 = vld [vmem:[%s584 + $0x3] sm:$0xff]
        %v2715 = vld [vmem:[%s584 + $0x13] sm:$0xff]
        %v2716 = vld [vmem:[%s584 + $0x23] sm:$0xff]
        %v2717 = vld [vmem:[%s584 + $0x33] sm:$0xff]
        %v2718 = vmul.f32 %v2538, %v2714
        %v2719 = vmul.f32 %v2539, %v2715
        %v2720 = vmul.f32 %v2540, %v2716
        %v2721 = vmul.f32 %v2541, %v2717
        %v2722 = vsel %vm634, %v2718, 0.0
        %v2723 = vsel %vm634, %v2719, 0.0
        %v2724 = vadd.f32 %v2722, %v2723
        %v2725 = vsel %vm634, %v2720, 0.0
        %v2726 = vadd.f32 %v2724, %v2725
        %v2727 = vsel %vm634, %v2721, 0.0
        %v2728 = vadd.f32 %v2726, %v2727
        %v2729 = vld [vmem:[%s819] sm:$0xff]
        %v2730 = vadd.f32 %v2729, %v2728
        %2731 = vst.msk [vmem:[%s819] sm:$0xff] %vm634, %v2730
        %v2732 = vld [vmem:[%s584 + $0x3] sm:$0xff]
        %v2733 = vld [vmem:[%s584 + $0x13] sm:$0xff]
        %v2734 = vld [vmem:[%s584 + $0x23] sm:$0xff]
        %v2735 = vld [vmem:[%s584 + $0x33] sm:$0xff]
        %2740 = vrot.lane.b32.xlu0 %v2732, 127
        %v2741 = vpop.permute.xlu0 %2740
        %2742 = vrot.lane.b32.xlu0 %v2733, 127
        %v2743 = vpop.permute.xlu0 %2742
        %2744 = vrot.lane.b32.xlu0 %v2734, 127
        %v2745 = vpop.permute.xlu0 %2744
        %2746 = vrot.lane.b32.xlu0 %v2735, 127
        %v2747 = vpop.permute.xlu0 %2746
        %v2752 = vmul.f32 %v2538, %v2741
        %v2753 = vmul.f32 %v2539, %v2743
        %v2754 = vmul.f32 %v2540, %v2745
        %v2755 = vmul.f32 %v2541, %v2747
        %v2756 = vsel %vm634, %v2752, 0.0
        %v2757 = vsel %vm634, %v2753, 0.0
        %v2758 = vadd.f32 %v2756, %v2757
        %v2759 = vsel %vm634, %v2754, 0.0
        %v2760 = vadd.f32 %v2758, %v2759
        %v2761 = vsel %vm634, %v2755, 0.0
        %v2762 = vadd.f32 %v2760, %v2761
        %v2763 = vld [vmem:[%s854] sm:$0xff]
        %v2764 = vadd.f32 %v2763, %v2762
        %2765 = vst.msk [vmem:[%s854] sm:$0xff] %vm634, %v2764
        %v2766 = vld [vmem:[%s584 + $0x3] sm:$0xff]
        %v2767 = vld [vmem:[%s584 + $0x13] sm:$0xff]
        %v2768 = vld [vmem:[%s584 + $0x23] sm:$0xff]
        %v2769 = vld [vmem:[%s584 + $0x33] sm:$0xff]
        %2774 = vrot.lane.b32.xlu0 %v2766, 126
        %v2775 = vpop.permute.xlu0 %2774
        %2776 = vrot.lane.b32.xlu0 %v2767, 126
        %v2777 = vpop.permute.xlu0 %2776
        %2778 = vrot.lane.b32.xlu0 %v2768, 126
        %v2779 = vpop.permute.xlu0 %2778
        %2780 = vrot.lane.b32.xlu0 %v2769, 126
        %v2781 = vpop.permute.xlu0 %2780
        %v2786 = vmul.f32 %v2538, %v2775
        %v2787 = vmul.f32 %v2539, %v2777
        %v2788 = vmul.f32 %v2540, %v2779
        %v2789 = vmul.f32 %v2541, %v2781
        %v2790 = vsel %vm634, %v2786, 0.0
        %v2791 = vsel %vm634, %v2787, 0.0
        %v2792 = vadd.f32 %v2790, %v2791
        %v2793 = vsel %vm634, %v2788, 0.0
        %v2794 = vadd.f32 %v2792, %v2793
        %v2795 = vsel %vm634, %v2789, 0.0
        %v2796 = vadd.f32 %v2794, %v2795
        %v2797 = vld [vmem:[%s889] sm:$0xff]
        %v2798 = vadd.f32 %v2797, %v2796
        %2799 = vst.msk [vmem:[%s889] sm:$0xff] %vm634, %v2798
        %v2800 = vld [vmem:[%s529 + $0x1] sm:$0xff]
        %v2801 = vld [vmem:[%s529 + $0x11] sm:$0xff]
        %v2802 = vld [vmem:[%s529 + $0x21] sm:$0xff]
        %v2803 = vld [vmem:[%s529 + $0x31] sm:$0xff]
        %v2804 = vld [vmem:[%s573 + $0x1] sm:$0xff]
        %v2805 = vld [vmem:[%s573 + $0x11] sm:$0xff]
        %v2806 = vld [vmem:[%s573 + $0x21] sm:$0xff]
        %v2807 = vld [vmem:[%s573 + $0x31] sm:$0xff]
        %v2808 = vmul.f32 %v2800, %v2804
        %v2809 = vmul.f32 %v2801, %v2805
        %v2810 = vmul.f32 %v2802, %v2806
        %v2811 = vmul.f32 %v2803, %v2807
        %v2812 = vsel %vm1167, %v2808, 0.0
        %v2813 = vsel %vm1167, %v2809, 0.0
        %v2814 = vadd.f32 %v2812, %v2813
        %v2815 = vsel %vm1167, %v2810, 0.0
        %v2816 = vadd.f32 %v2814, %v2815
        %v2817 = vsel %vm1167, %v2811, 0.0
        %v2818 = vadd.f32 %v2816, %v2817
        %v2819 = vld [vmem:[#allocation2] sm:$0xff]
        %2821 = vrot.lane.b32.xlu0 %v2818, 127
        %v2822 = vpop.permute.xlu0 %2821
        %v2824 = vadd.f32 %v2819, %v2822
        %2825 = vst.msk [vmem:[#allocation2] sm:$0xff] %vm634, %v2824
        %v2826 = vld [vmem:[%s573 + $0x1] sm:$0xff]
        %v2827 = vld [vmem:[%s573 + $0x11] sm:$0xff]
        %v2828 = vld [vmem:[%s573 + $0x21] sm:$0xff]
        %v2829 = vld [vmem:[%s573 + $0x31] sm:$0xff]
        %2834 = vrot.lane.b32.xlu0 %v2826, 127
        %v2835 = vpop.permute.xlu0 %2834
        %2836 = vrot.lane.b32.xlu0 %v2827, 127
        %v2837 = vpop.permute.xlu0 %2836
        %2838 = vrot.lane.b32.xlu0 %v2828, 127
        %v2839 = vpop.permute.xlu0 %2838
        %2840 = vrot.lane.b32.xlu0 %v2829, 127
        %v2841 = vpop.permute.xlu0 %2840
        %v2846 = vmul.f32 %v2800, %v2835
        %v2847 = vmul.f32 %v2801, %v2837
        %v2848 = vmul.f32 %v2802, %v2839
        %v2849 = vmul.f32 %v2803, %v2841
        %v2850 = vsel %vm1167, %v2846, 0.0
        %v2851 = vsel %vm1167, %v2847, 0.0
        %v2852 = vadd.f32 %v2850, %v2851
        %v2853 = vsel %vm1167, %v2848, 0.0
        %v2854 = vadd.f32 %v2852, %v2853
        %v2855 = vsel %vm1167, %v2849, 0.0
        %v2856 = vadd.f32 %v2854, %v2855
        %v2857 = vld [vmem:[%s676] sm:$0xff]
        %2859 = vrot.lane.b32.xlu0 %v2856, 127
        %v2860 = vpop.permute.xlu0 %2859
        %v2862 = vadd.f32 %v2857, %v2860
        %2863 = vst.msk [vmem:[%s676] sm:$0xff] %vm634, %v2862
        %v2864 = vld [vmem:[%s573 + $0x1] sm:$0xff]
        %v2865 = vld [vmem:[%s573 + $0x11] sm:$0xff]
        %v2866 = vld [vmem:[%s573 + $0x21] sm:$0xff]
        %v2867 = vld [vmem:[%s573 + $0x31] sm:$0xff]
        %2872 = vrot.lane.b32.xlu0 %v2864, 126
        %v2873 = vpop.permute.xlu0 %2872
        %2874 = vrot.lane.b32.xlu0 %v2865, 126
        %v2875 = vpop.permute.xlu0 %2874
        %2876 = vrot.lane.b32.xlu0 %v2866, 126
        %v2877 = vpop.permute.xlu0 %2876
        %2878 = vrot.lane.b32.xlu0 %v2867, 126
        %v2879 = vpop.permute.xlu0 %2878
        %v2884 = vmul.f32 %v2800, %v2873
        %v2885 = vmul.f32 %v2801, %v2875
        %v2886 = vmul.f32 %v2802, %v2877
        %v2887 = vmul.f32 %v2803, %v2879
        %v2888 = vsel %vm1167, %v2884, 0.0
        %v2889 = vsel %vm1167, %v2885, 0.0
        %v2890 = vadd.f32 %v2888, %v2889
        %v2891 = vsel %vm1167, %v2886, 0.0
        %v2892 = vadd.f32 %v2890, %v2891
        %v2893 = vsel %vm1167, %v2887, 0.0
        %v2894 = vadd.f32 %v2892, %v2893
        %v2895 = vld [vmem:[%s711] sm:$0xff]
        %2897 = vrot.lane.b32.xlu0 %v2894, 127
        %v2898 = vpop.permute.xlu0 %2897
        %v2900 = vadd.f32 %v2895, %v2898
        %2901 = vst.msk [vmem:[%s711] sm:$0xff] %vm634, %v2900
        %v2902 = vld [vmem:[%s573 + $0x2] sm:$0xff]
        %v2903 = vld [vmem:[%s573 + $0x12] sm:$0xff]
        %v2904 = vld [vmem:[%s573 + $0x22] sm:$0xff]
        %v2905 = vld [vmem:[%s573 + $0x32] sm:$0xff]
        %v2906 = vmul.f32 %v2800, %v2902
        %v2907 = vmul.f32 %v2801, %v2903
        %v2908 = vmul.f32 %v2802, %v2904
        %v2909 = vmul.f32 %v2803, %v2905
        %v2910 = vsel %vm1167, %v2906, 0.0
        %v2911 = vsel %vm1167, %v2907, 0.0
        %v2912 = vadd.f32 %v2910, %v2911
        %v2913 = vsel %vm1167, %v2908, 0.0
        %v2914 = vadd.f32 %v2912, %v2913
        %v2915 = vsel %vm1167, %v2909, 0.0
        %v2916 = vadd.f32 %v2914, %v2915
        %v2917 = vld [vmem:[%s730] sm:$0xff]
        %2919 = vrot.lane.b32.xlu0 %v2916, 127
        %v2920 = vpop.permute.xlu0 %2919
        %v2922 = vadd.f32 %v2917, %v2920
        %2923 = vst.msk [vmem:[%s730] sm:$0xff] %vm634, %v2922
        %v2924 = vld [vmem:[%s573 + $0x2] sm:$0xff]
        %v2925 = vld [vmem:[%s573 + $0x12] sm:$0xff]
        %v2926 = vld [vmem:[%s573 + $0x22] sm:$0xff]
        %v2927 = vld [vmem:[%s573 + $0x32] sm:$0xff]
        %2932 = vrot.lane.b32.xlu0 %v2924, 127
        %v2933 = vpop.permute.xlu0 %2932
        %2934 = vrot.lane.b32.xlu0 %v2925, 127
        %v2935 = vpop.permute.xlu0 %2934
        %2936 = vrot.lane.b32.xlu0 %v2926, 127
        %v2937 = vpop.permute.xlu0 %2936
        %2938 = vrot.lane.b32.xlu0 %v2927, 127
        %v2939 = vpop.permute.xlu0 %2938
        %v2944 = vmul.f32 %v2800, %v2933
        %v2945 = vmul.f32 %v2801, %v2935
        %v2946 = vmul.f32 %v2802, %v2937
        %v2947 = vmul.f32 %v2803, %v2939
        %v2948 = vsel %vm1167, %v2944, 0.0
        %v2949 = vsel %vm1167, %v2945, 0.0
        %v2950 = vadd.f32 %v2948, %v2949
        %v2951 = vsel %vm1167, %v2946, 0.0
        %v2952 = vadd.f32 %v2950, %v2951
        %v2953 = vsel %vm1167, %v2947, 0.0
        %v2954 = vadd.f32 %v2952, %v2953
        %v2955 = vld [vmem:[%s765] sm:$0xff]
        %2957 = vrot.lane.b32.xlu0 %v2954, 127
        %v2958 = vpop.permute.xlu0 %2957
        %v2960 = vadd.f32 %v2955, %v2958
        %2961 = vst.msk [vmem:[%s765] sm:$0xff] %vm634, %v2960
        %v2962 = vld [vmem:[%s573 + $0x2] sm:$0xff]
        %v2963 = vld [vmem:[%s573 + $0x12] sm:$0xff]
        %v2964 = vld [vmem:[%s573 + $0x22] sm:$0xff]
        %v2965 = vld [vmem:[%s573 + $0x32] sm:$0xff]
        %2970 = vrot.lane.b32.xlu0 %v2962, 126
        %v2971 = vpop.permute.xlu0 %2970
        %2972 = vrot.lane.b32.xlu0 %v2963, 126
        %v2973 = vpop.permute.xlu0 %2972
        %2974 = vrot.lane.b32.xlu0 %v2964, 126
        %v2975 = vpop.permute.xlu0 %2974
        %2976 = vrot.lane.b32.xlu0 %v2965, 126
        %v2977 = vpop.permute.xlu0 %2976
        %v2982 = vmul.f32 %v2800, %v2971
        %v2983 = vmul.f32 %v2801, %v2973
        %v2984 = vmul.f32 %v2802, %v2975
        %v2985 = vmul.f32 %v2803, %v2977
        %v2986 = vsel %vm1167, %v2982, 0.0
        %v2987 = vsel %vm1167, %v2983, 0.0
        %v2988 = vadd.f32 %v2986, %v2987
        %v2989 = vsel %vm1167, %v2984, 0.0
        %v2990 = vadd.f32 %v2988, %v2989
        %v2991 = vsel %vm1167, %v2985, 0.0
        %v2992 = vadd.f32 %v2990, %v2991
        %v2993 = vld [vmem:[%s800] sm:$0xff]
        %2995 = vrot.lane.b32.xlu0 %v2992, 127
        %v2996 = vpop.permute.xlu0 %2995
        %v2998 = vadd.f32 %v2993, %v2996
        %2999 = vst.msk [vmem:[%s800] sm:$0xff] %vm634, %v2998
        %v3000 = vld [vmem:[%s573 + $0x3] sm:$0xff]
        %v3001 = vld [vmem:[%s573 + $0x13] sm:$0xff]
        %v3002 = vld [vmem:[%s573 + $0x23] sm:$0xff]
        %v3003 = vld [vmem:[%s573 + $0x33] sm:$0xff]
        %v3004 = vmul.f32 %v2800, %v3000
        %v3005 = vmul.f32 %v2801, %v3001
        %v3006 = vmul.f32 %v2802, %v3002
        %v3007 = vmul.f32 %v2803, %v3003
        %v3008 = vsel %vm1167, %v3004, 0.0
        %v3009 = vsel %vm1167, %v3005, 0.0
        %v3010 = vadd.f32 %v3008, %v3009
        %v3011 = vsel %vm1167, %v3006, 0.0
        %v3012 = vadd.f32 %v3010, %v3011
        %v3013 = vsel %vm1167, %v3007, 0.0
        %v3014 = vadd.f32 %v3012, %v3013
        %v3015 = vld [vmem:[%s819] sm:$0xff]
        %3017 = vrot.lane.b32.xlu0 %v3014, 127
        %v3018 = vpop.permute.xlu0 %3017
        %v3020 = vadd.f32 %v3015, %v3018
        %3021 = vst.msk [vmem:[%s819] sm:$0xff] %vm634, %v3020
        %v3022 = vld [vmem:[%s573 + $0x3] sm:$0xff]
        %v3023 = vld [vmem:[%s573 + $0x13] sm:$0xff]
        %v3024 = vld [vmem:[%s573 + $0x23] sm:$0xff]
        %v3025 = vld [vmem:[%s573 + $0x33] sm:$0xff]
        %3030 = vrot.lane.b32.xlu0 %v3022, 127
        %v3031 = vpop.permute.xlu0 %3030
        %3032 = vrot.lane.b32.xlu0 %v3023, 127
        %v3033 = vpop.permute.xlu0 %3032
        %3034 = vrot.lane.b32.xlu0 %v3024, 127
        %v3035 = vpop.permute.xlu0 %3034
        %3036 = vrot.lane.b32.xlu0 %v3025, 127
        %v3037 = vpop.permute.xlu0 %3036
        %v3042 = vmul.f32 %v2800, %v3031
        %v3043 = vmul.f32 %v2801, %v3033
        %v3044 = vmul.f32 %v2802, %v3035
        %v3045 = vmul.f32 %v2803, %v3037
        %v3046 = vsel %vm1167, %v3042, 0.0
        %v3047 = vsel %vm1167, %v3043, 0.0
        %v3048 = vadd.f32 %v3046, %v3047
        %v3049 = vsel %vm1167, %v3044, 0.0
        %v3050 = vadd.f32 %v3048, %v3049
        %v3051 = vsel %vm1167, %v3045, 0.0
        %v3052 = vadd.f32 %v3050, %v3051
        %v3053 = vld [vmem:[%s854] sm:$0xff]
        %3055 = vrot.lane.b32.xlu0 %v3052, 127
        %v3056 = vpop.permute.xlu0 %3055
        %v3058 = vadd.f32 %v3053, %v3056
        %3059 = vst.msk [vmem:[%s854] sm:$0xff] %vm634, %v3058
        %v3060 = vld [vmem:[%s573 + $0x3] sm:$0xff]
        %v3061 = vld [vmem:[%s573 + $0x13] sm:$0xff]
        %v3062 = vld [vmem:[%s573 + $0x23] sm:$0xff]
        %v3063 = vld [vmem:[%s573 + $0x33] sm:$0xff]
        %3068 = vrot.lane.b32.xlu0 %v3060, 126
        %v3069 = vpop.permute.xlu0 %3068
        %3070 = vrot.lane.b32.xlu0 %v3061, 126
        %v3071 = vpop.permute.xlu0 %3070
        %3072 = vrot.lane.b32.xlu0 %v3062, 126
        %v3073 = vpop.permute.xlu0 %3072
        %3074 = vrot.lane.b32.xlu0 %v3063, 126
        %v3075 = vpop.permute.xlu0 %3074
        %v3080 = vmul.f32 %v2800, %v3069
        %v3081 = vmul.f32 %v2801, %v3071
        %v3082 = vmul.f32 %v2802, %v3073
        %v3083 = vmul.f32 %v2803, %v3075
        %v3084 = vsel %vm1167, %v3080, 0.0
        %v3085 = vsel %vm1167, %v3081, 0.0
        %v3086 = vadd.f32 %v3084, %v3085
        %v3087 = vsel %vm1167, %v3082, 0.0
        %v3088 = vadd.f32 %v3086, %v3087
        %v3089 = vsel %vm1167, %v3083, 0.0
        %v3090 = vadd.f32 %v3088, %v3089
        %v3091 = vld [vmem:[%s889] sm:$0xff]
        %3093 = vrot.lane.b32.xlu0 %v3090, 127
        %v3094 = vpop.permute.xlu0 %3093
        %v3096 = vadd.f32 %v3091, %v3094
        %3097 = vst.msk [vmem:[%s889] sm:$0xff] %vm634, %v3096
        // Predicated region
        $region57: #{tpu_custom_call.1} parent=51 // pred_check
          %p3098 = pneg %p608
        $region58: #{tpu_custom_call.1} parent=51 // pred_check_branch
          %3100 = sbr.rel (%p3098) target = $region60
        $region59: #{tpu_custom_call.1} parent=51 // pred_region
          %v3101 = vld [vmem:[#allocation2] sm:$0xff]
          %v3102 = vld [vmem:[#allocation2 + $0x8] sm:$0xff]
          %v3103 = vld [vmem:[#allocation2 + $0x10] sm:$0xff]
          %v3104 = vld [vmem:[#allocation2 + $0x18] sm:$0xff]
          %v3105 = vld [vmem:[#allocation2 + $0x20] sm:$0xff]
          %v3106 = vld [vmem:[#allocation2 + $0x28] sm:$0xff]
          %v3107 = vld [vmem:[#allocation2 + $0x30] sm:$0xff]
          %v3108 = vld [vmem:[#allocation2 + $0x38] sm:$0xff]
          %v3109 = vld [vmem:[#allocation2 + $0x40] sm:$0xff]
          %3110 = vst.msk [vmem:[%s519] sm:$0xff] %vm634, %v3101
          %3111 = vst.msk [vmem:[%s519 + $0x8] sm:$0xff] %vm634, %v3102
          %3112 = vst.msk [vmem:[%s519 + $0x10] sm:$0xff] %vm634, %v3103
          %3113 = vst.msk [vmem:[%s519 + $0x18] sm:$0xff] %vm634, %v3104
          %3114 = vst.msk [vmem:[%s519 + $0x20] sm:$0xff] %vm634, %v3105
          %3115 = vst.msk [vmem:[%s519 + $0x28] sm:$0xff] %vm634, %v3106
          %3116 = vst.msk [vmem:[%s519 + $0x30] sm:$0xff] %vm634, %v3107
          %3117 = vst.msk [vmem:[%s519 + $0x38] sm:$0xff] %vm634, %v3108
          %3118 = vst.msk [vmem:[%s519 + $0x40] sm:$0xff] %vm634, %v3109
        $region60: #{tpu_custom_call.1} parent=51 // pred_fallthru
          _
        %s3119 = sand.u32 %s266, 1
        %s3120 = scalar_lea.sflag [#allocation4], %s3119
        %s3121 = sand.u32 %s266, 1
        %s3122 = smul.addr %s3121, 72
        %s3123 = scalar_lea.vmem [#allocation3], %s3122
        // Predicated region
        $region61: #{tpu_custom_call.1} parent=51 // pred_check
          %p3124 = pneg %p276
        $region62: #{tpu_custom_call.1} parent=51 // pred_check_branch
          %3126 = sbr.rel (%p3124) target = $region64
        $region63: #{tpu_custom_call.1} parent=51 // pred_region
          %s3128 = ssub.s32 1152, 1152
          %3129 = vsyncadd %s3120, %s3128
          %s3130 = smul.addr %s26, 9
          %s3131 = smul.addr %s3130, 128
          %s3132 = scalar_lea.hbm %s8, %s3131
          %s3133 = sshll.u32 %s3123, 4
          %s3134 = int_to_ptr.vmem [resolvable:$true] %s3133
          %3139 = dma.vmem_to_hbm [thread:$0]  %s3134, 1152, %s3132, %s3120, 128, 128, 8
        $region64: #{tpu_custom_call.1} parent=51 // pred_fallthru
          _
      $region52: #{tpu_custom_call.1} parent=5 // pred_fallthru
        _
      %p3140 = scmp.le.s32.totalorder 2, %s17
      // Predicated region
      $region65: #{tpu_custom_call.1} parent=5 // pred_check
        %p3141 = pneg %p3140
      $region66: #{tpu_custom_call.1} parent=5 // pred_check_branch
        %3143 = sbr.rel (%p3141) target = $region68
      $region67: #{tpu_custom_call.1} parent=5 // pred_region
        %s3144 = ssub.s32 %s17, 2
        // Predicated region
        $region69: #{tpu_custom_call.1} parent=67 // pred_check
          %p3145 = pneg %p282
        $region70: #{tpu_custom_call.1} parent=67 // pred_check_branch
          %3147 = sbr.rel (%p3145) target = $region72
        $region71: #{tpu_custom_call.1} parent=67 // pred_region
          %s3148 = sand.u32 %s267, 1
          %s3149 = scalar_lea.sflag [#allocation4], %s3148
          %s3150 = sand.u32 %s267, 1
          %s3151 = smul.addr %s3150, 72
          %s3152 = scalar_lea.vmem [#allocation3], %s3151
          %3153 = dma.done %s3149, 1152
        $region72: #{tpu_custom_call.1} parent=67 // pred_fallthru
          _
      $region68: #{tpu_custom_call.1} parent=5 // pred_fallthru
        _
    $region6: #{tpu_custom_call.1} parent=1 // loop_footer
      %s21 = sadd.s32 1, %s17
    $region7: #{tpu_custom_call.1} parent=1 // loop_footer_branch
      %16 = sbr.rel target = $region3
    $region8: #{tpu_custom_call.1} parent=1 // loop_exit
      _
    %3154 = vsyncpa [#allocation4], 1
    %s3155 = scalar_lea.sflag [#allocation4], 1
    %3156 = vsyncpa %s3155, 1

</llo_original>
